<compile_context>
chip_gen: v7x
topology: tpu7x:2x2x1
jax: 0.10.0
libtpu: 0.0.40
codegen_flags: <defaults>
</compile_context>

<pallas_src>
import functools
import math

import jax
import jax.numpy as jnp
from jax.experimental import pallas as pl
from jax.experimental.pallas import tpu as pltpu


# ----------------------------------------------------------------------------
# Kernel
# ----------------------------------------------------------------------------
def _layernorm_kernel(x_ref, g_ref, b_ref, o_ref, *, eps):
    # x_ref: (TILE_M, D) rows; g_ref/b_ref: (1, D) broadcast params.
    x = x_ref[...].astype(jnp.float32)
    d = x.shape[-1]

    # Two-pass mean / centered variance on the vreg-resident tile.  Matches the
    # PyTorch module exactly: torch.std is UNBIASED (divides by D-1) and eps is
    # added to std (not to the variance).
    mean = jnp.mean(x, axis=-1, keepdims=True)
    centered = x - mean
    var = jnp.sum(centered * centered, axis=-1, keepdims=True) * (1.0 / (d - 1))
    std = jnp.sqrt(var)

    # Multiply by reciprocal instead of dividing (frees VPU slots; EUP path).
    # approx=False keeps numerics essentially bit-matching the reference.
    inv = pl.reciprocal(std + eps, approx=False)

    o_ref[...] = (g_ref[...] * (centered * inv) + b_ref[...]).astype(o_ref.dtype)


# ----------------------------------------------------------------------------
# Wrapper
# ----------------------------------------------------------------------------
def _choose_tile_m(M, D, itemsize=4, vmem_budget_bytes=8 * 1024 * 1024):
    """Rows per grid step.

    Budget: input + output tiles, each double-buffered (4 tiles of TILE_M*D),
    kept well under the scoped-VMEM default on every generation (16 MiB v5e,
    32 MiB v6e/v7x) with headroom for gain/bias and compiler scratch.
    """
    bytes_per_row = 4 * D * itemsize
    tm = vmem_budget_bytes // max(bytes_per_row, 1)
    tm = int(min(tm, 1024, M))
    if tm >= M:
        return M                      # block == full extent, always legal
    return max(8, (tm // 8) * 8)      # sublane-aligned (8, 128) tiling rule


def layer_norm(x, gain, bias, eps=1e-6):
    """LayerNorm over the last axis of `x` (any leading shape)."""
    *lead, D = x.shape
    x2d = x.reshape(-1, D)
    M = x2d.shape[0]

    tm = _choose_tile_m(M, D)

    # Pad the row axis so the grid divides evenly (padded rows are sliced off;
    # they produce finite values: gain*0/(0+eps)+bias).
    Mp = pl.cdiv(M, tm) * tm
    if Mp != M:
        x2d = jnp.pad(x2d, ((0, Mp - M), (0, 0)))

    kern = functools.partial(_layernorm_kernel, eps=eps)
    y = pl.pallas_call(
        kern,
        out_shape=jax.ShapeDtypeStruct((Mp, D), x.dtype),
        grid=(Mp // tm,),
        in_specs=[
            pl.BlockSpec((tm, D), lambda i: (i, 0)),   # rows, pipelined
            pl.BlockSpec((1, D), lambda i: (0, 0)),    # gain (resident)
            pl.BlockSpec((1, D), lambda i: (0, 0)),    # bias (resident)
        ],
        out_specs=pl.BlockSpec((tm, D), lambda i: (i, 0)),
        compiler_params=pltpu.CompilerParams(
            # Row axis is embarrassingly parallel -> sharded across the two
            # TensorCores on v7x; neutral on v5e/v6e.
            dimension_semantics=("parallel",),
        ),
    )(x2d, gain.reshape(1, D), bias.reshape(1, D))

    if Mp != M:
        y = y[:M]
    return y.reshape(*lead, D)


# ----------------------------------------------------------------------------
# Pure-JAX reference (mirrors the PyTorch module semantics)
# ----------------------------------------------------------------------------
def layer_norm_ref(x, gain, bias, eps=1e-6):
    d = x.shape[-1]
    mean = jnp.mean(x, axis=-1, keepdims=True)
    var = jnp.sum((x - mean) ** 2, axis=-1, keepdims=True) / (d - 1)  # unbiased
    std = jnp.sqrt(var)
    return gain * (x - mean) / (std + eps) + bias


# ----------------------------------------------------------------------------
if __name__ == "__main__":
    # Small but lane-dense shapes: hidden D = 256 (multiple of 128), enough
    # rows (B*S = 1024) for a multi-step pipelined grid.
    B, S, D = 2, 512, 256
    EPS = 1e-6

    key = jax.random.PRNGKey(0)
    kx, kg, kb = jax.random.split(key, 3)

    x = jax.random.normal(kx, (B, S, D), jnp.float32) * 2.0 + 0.5
    # Module initializes gain=ones, bias=zeros; perturb slightly so the affine
    # part of the kernel is actually exercised.
    gain = jnp.ones((D,), jnp.float32) + 0.1 * jax.random.normal(kg, (D,), jnp.float32)
    bias = 0.1 * jax.random.normal(kb, (D,), jnp.float32)

    out = layer_norm(x, gain, bias, eps=EPS)
    out = jax.block_until_ready(out)

    assert out.shape == (B, S, D)
    assert bool(jnp.all(jnp.isfinite(out)))

    ref = layer_norm_ref(x, gain, bias, eps=EPS)
    assert bool(jnp.allclose(out, ref, rtol=1e-5, atol=1e-5)), (
        "mismatch: max abs err = %g" % float(jnp.max(jnp.abs(out - ref))))

    print("KERNEL_OK")
</pallas_src>

<mosaic_0001>
module attributes {stable_mosaic.version = 11 : i64} {
  func.func @_layernorm_kernel(%arg0: i32, %arg1: memref<1024x256xf32, #tpu.memory_space<vmem>>, %arg2: memref<1x256xf32, #tpu.memory_space<vmem>>, %arg3: memref<1x256xf32, #tpu.memory_space<vmem>>, %arg4: memref<1024x256xf32, #tpu.memory_space<vmem>>) attributes {dimension_semantics = [#tpu.dimension_semantics<parallel>], iteration_bounds = array<i64: 1>, scalar_prefetch = 0 : i64, scratch_operands = 0 : i64, tpu.core_type = #tpu.core_type<tc>, window_params = [{transform_indices = @transform_0, window_bounds = array<i64: 1024, 256>}, {pipeline_mode = #tpu.pipeline_mode<synchronous>, transform_indices = @transform_1, window_bounds = array<i64: 1, 256>}, {pipeline_mode = #tpu.pipeline_mode<synchronous>, transform_indices = @transform_2, window_bounds = array<i64: 1, 256>}, {transform_indices = @transform_3, window_bounds = array<i64: 1024, 256>}]} {
    %c0 = arith.constant 0 : index
    %c0_0 = arith.constant 0 : index
    %0 = vector.load %arg1[%c0, %c0_0] : memref<1024x256xf32, #tpu.memory_space<vmem>>, vector<1024x256xf32>
    %cst = arith.constant dense<0.000000e+00> : vector<1024xf32>
    %1 = vector.multi_reduction <add>, %0, %cst [1] : vector<1024x256xf32> to vector<1024xf32>
    %2 = vector.shape_cast %1 : vector<1024xf32> to vector<1024x1xf32>
    %cst_1 = arith.constant 2.560000e+02 : f32
    %3 = vector.broadcast %cst_1 : f32 to vector<1024x1xf32>
    %4 = arith.divf %2, %3 : vector<1024x1xf32>
    %5 = vector.broadcast %4 : vector<1024x1xf32> to vector<1024x256xf32>
    %6 = arith.subf %0, %5 : vector<1024x256xf32>
    %7 = arith.mulf %6, %6 : vector<1024x256xf32>
    %cst_2 = arith.constant dense<0.000000e+00> : vector<1024xf32>
    %8 = vector.multi_reduction <add>, %7, %cst_2 [1] : vector<1024x256xf32> to vector<1024xf32>
    %9 = vector.shape_cast %8 : vector<1024xf32> to vector<1024x1xf32>
    %cst_3 = arith.constant 0.00392156886 : f32
    %10 = vector.broadcast %cst_3 : f32 to vector<1024x1xf32>
    %11 = arith.mulf %9, %10 : vector<1024x1xf32>
    %12 = math.sqrt %11 : vector<1024x1xf32>
    %cst_4 = arith.constant 9.99999997E-7 : f32
    %13 = vector.broadcast %cst_4 : f32 to vector<1024x1xf32>
    %14 = arith.addf %12, %13 : vector<1024x1xf32>
    %15 = tpu.reciprocal %14 : vector<1024x1xf32> -> vector<1024x1xf32>
    %c0_5 = arith.constant 0 : index
    %c0_6 = arith.constant 0 : index
    %16 = vector.load %arg2[%c0_5, %c0_6] : memref<1x256xf32, #tpu.memory_space<vmem>>, vector<1x256xf32>
    %17 = vector.broadcast %15 : vector<1024x1xf32> to vector<1024x256xf32>
    %18 = arith.mulf %6, %17 : vector<1024x256xf32>
    %19 = vector.broadcast %16 : vector<1x256xf32> to vector<1024x256xf32>
    %20 = arith.mulf %19, %18 : vector<1024x256xf32>
    %c0_7 = arith.constant 0 : index
    %c0_8 = arith.constant 0 : index
    %21 = vector.load %arg3[%c0_7, %c0_8] : memref<1x256xf32, #tpu.memory_space<vmem>>, vector<1x256xf32>
    %22 = vector.broadcast %21 : vector<1x256xf32> to vector<1024x256xf32>
    %23 = arith.addf %20, %22 : vector<1024x256xf32>
    %c0_9 = arith.constant 0 : index
    %c0_10 = arith.constant 0 : index
    %24 = vector.load %arg4[%c0_9, %c0_10] : memref<1024x256xf32, #tpu.memory_space<vmem>>, vector<1024x256xf32>
    tpu.vector_store %arg4[%c0_9, %c0_10], %23 {strides = array<i32>} : memref<1024x256xf32, #tpu.memory_space<vmem>>, vector<1024x256xf32>,
    return
  }
  func.func @transform_0(%arg0: i32) -> (i32, i32) {
    %c0_i32 = arith.constant 0 : i32
    %c0_i32_0 = arith.constant 0 : i32
    return %arg0, %c0_i32 : i32, i32
  }
  func.func @transform_1(%arg0: i32) -> (i32, i32) {
    %c0_i32 = arith.constant 0 : i32
    %c0_i32_0 = arith.constant 0 : i32
    %c0_i32_1 = arith.constant 0 : i32
    return %c0_i32, %c0_i32_0 : i32, i32
  }
  func.func @transform_2(%arg0: i32) -> (i32, i32) {
    %c0_i32 = arith.constant 0 : i32
    %c0_i32_0 = arith.constant 0 : i32
    %c0_i32_1 = arith.constant 0 : i32
    return %c0_i32, %c0_i32_0 : i32, i32
  }
  func.func @transform_3(%arg0: i32) -> (i32, i32) {
    %c0_i32 = arith.constant 0 : i32
    %c0_i32_0 = arith.constant 0 : i32
    return %arg0, %c0_i32 : i32, i32
  }
}

</mosaic_0001>

<llo_original>
// kernel: tpu_custom_call.1
$region0: #{tpu_custom_call.1}
  #allocation0 [shape = 'u32[]', space=smem, size = 0x4, offset = 0x4, fixed_abs, tag = 'smem constant byte address 0x4 - core index']
  #allocation1 [shape = 'u32[144,128]{1,0:T(1,128)}', space=vmem, size = 0x12000, scoped, tag = 'internal scratch']
  %s0 = inlined_call_operand.hbm [shape: f32[1024,256], index: 0, kind: input, shape index: {}]
  %s1 = inlined_call_operand.vmem [shape: f32[1,256], index: 1, kind: input, shape index: {}]
  %s2 = inlined_call_operand.vmem [shape: f32[1,256], index: 2, kind: input, shape index: {}]
  %s3 = inlined_call_operand.hbm [shape: f32[1024,256], index: 3, kind: output, shape index: {}]
  %s4 = sld [smem:[#allocation0]]
  $region26: #{tpu_custom_call.1} parent=0
    _
  %s6 = ssub.s32 1, %s4
  %s7 = scalar_select 0, %s6, %s4
  $region1: #{tpu_custom_call.1} parent=0
    #allocation2 [shape = 'u8[1048576]{0}', space=vmem, size = 0x100000, scoped, tag = 'input window, operand 0, single buffered']
    #allocation3 [shape = 's32[1]{0}', space=sflag, size = 0x4, scoped, tag = 'scoped memory for tpu_custom_call.1']
    #allocation4 [shape = 's32[1]{0}', space=sflag, size = 0x4, scoped, tag = 'scoped memory for tpu_custom_call.1']
    #allocation5 [shape = 'u8[1048576]{0}', space=vmem, size = 0x100000, scoped, tag = 'output window, operand 0, single buffered']
    %8 = vsyncpa [#allocation3], 0
    %9 = vsyncpa [#allocation4], 0
    // Predicated region
    $region2: #{tpu_custom_call.1} parent=1 // pred_check
      _
    $region3: #{tpu_custom_call.1} parent=1 // pred_check_branch
      %11 = sbr.rel (0) target = $region5
    $region4: #{tpu_custom_call.1} parent=1 // pred_region
      %s13 = ssub.s32 32768, 32768
      %14 = vsyncadd [#allocation3], %s13
      %s15 = sshll.u32 [#allocation2], 4
      %s16 = int_to_ptr.vmem [resolvable:$true] %s15
      %21 = dma.hbm_to_vmem [thread:$0]  %s0, 32768, %s16, [#allocation3], 256, 256, 16
    $region5: #{tpu_custom_call.1} parent=1 // pred_fallthru
      _
    // Predicated region
    $region6: #{tpu_custom_call.1} parent=1 // pred_check
      _
    $region7: #{tpu_custom_call.1} parent=1 // pred_check_branch
      %23 = sbr.rel (0) target = $region9
    $region8: #{tpu_custom_call.1} parent=1 // pred_region
      _
    $region9: #{tpu_custom_call.1} parent=1 // pred_fallthru
      _
    // Predicated region
    $region10: #{tpu_custom_call.1} parent=1 // pred_check
      _
    $region11: #{tpu_custom_call.1} parent=1 // pred_check_branch
      %25 = sbr.rel (0) target = $region13
    $region12: #{tpu_custom_call.1} parent=1 // pred_region
      _
    $region13: #{tpu_custom_call.1} parent=1 // pred_fallthru
      _
    // Predicated region
    $region14: #{tpu_custom_call.1} parent=1 // pred_check
      _
    $region15: #{tpu_custom_call.1} parent=1 // pred_check_branch
      %27 = sbr.rel (0) target = $region17
    $region16: #{tpu_custom_call.1} parent=1 // pred_region
      %28 = dma.done [#allocation3], 32768
    $region17: #{tpu_custom_call.1} parent=1 // pred_fallthru
      _
    %v29 = vld [vmem:[#allocation2] sm:$0xff]
    %v30 = vld [vmem:[#allocation2 + $0x8] sm:$0xff]
    %v31 = vld [vmem:[#allocation2 + $0x10] sm:$0xff]
    %v32 = vld [vmem:[#allocation2 + $0x18] sm:$0xff]
    %v33 = vld [vmem:[#allocation2 + $0x20] sm:$0xff]
    %v34 = vld [vmem:[#allocation2 + $0x28] sm:$0xff]
    %v35 = vld [vmem:[#allocation2 + $0x30] sm:$0xff]
    %v36 = vld [vmem:[#allocation2 + $0x38] sm:$0xff]
    %v37 = vld [vmem:[#allocation2 + $0x40] sm:$0xff]
    %v38 = vld [vmem:[#allocation2 + $0x48] sm:$0xff]
    %v39 = vld [vmem:[#allocation2 + $0x50] sm:$0xff]
    %v40 = vld [vmem:[#allocation2 + $0x58] sm:$0xff]
    %v41 = vld [vmem:[#allocation2 + $0x60] sm:$0xff]
    %v42 = vld [vmem:[#allocation2 + $0x68] sm:$0xff]
    %v43 = vld [vmem:[#allocation2 + $0x70] sm:$0xff]
    %v44 = vld [vmem:[#allocation2 + $0x78] sm:$0xff]
    %v45 = vld [vmem:[#allocation2 + $0x80] sm:$0xff]
    %v46 = vld [vmem:[#allocation2 + $0x88] sm:$0xff]
    %v47 = vld [vmem:[#allocation2 + $0x90] sm:$0xff]
    %v48 = vld [vmem:[#allocation2 + $0x98] sm:$0xff]
    %v49 = vld [vmem:[#allocation2 + $0xa0] sm:$0xff]
    %v50 = vld [vmem:[#allocation2 + $0xa8] sm:$0xff]
    %v51 = vld [vmem:[#allocation2 + $0xb0] sm:$0xff]
    %v52 = vld [vmem:[#allocation2 + $0xb8] sm:$0xff]
    %v53 = vld [vmem:[#allocation2 + $0xc0] sm:$0xff]
    %v54 = vld [vmem:[#allocation2 + $0xc8] sm:$0xff]
    %v55 = vld [vmem:[#allocation2 + $0xd0] sm:$0xff]
    %v56 = vld [vmem:[#allocation2 + $0xd8] sm:$0xff]
    %v57 = vld [vmem:[#allocation2 + $0xe0] sm:$0xff]
    %v58 = vld [vmem:[#allocation2 + $0xe8] sm:$0xff]
    %v59 = vld [vmem:[#allocation2 + $0xf0] sm:$0xff]
    %v60 = vld [vmem:[#allocation2 + $0xf8] sm:$0xff]
    %v61 = vld [vmem:[#allocation2 + $0x100] sm:$0xff]
    %v62 = vld [vmem:[#allocation2 + $0x108] sm:$0xff]
    %v63 = vld [vmem:[#allocation2 + $0x110] sm:$0xff]
    %v64 = vld [vmem:[#allocation2 + $0x118] sm:$0xff]
    %v65 = vld [vmem:[#allocation2 + $0x120] sm:$0xff]
    %v66 = vld [vmem:[#allocation2 + $0x128] sm:$0xff]
    %v67 = vld [vmem:[#allocation2 + $0x130] sm:$0xff]
    %v68 = vld [vmem:[#allocation2 + $0x138] sm:$0xff]
    %v69 = vld [vmem:[#allocation2 + $0x140] sm:$0xff]
    %v70 = vld [vmem:[#allocation2 + $0x148] sm:$0xff]
    %v71 = vld [vmem:[#allocation2 + $0x150] sm:$0xff]
    %v72 = vld [vmem:[#allocation2 + $0x158] sm:$0xff]
    %v73 = vld [vmem:[#allocation2 + $0x160] sm:$0xff]
    %v74 = vld [vmem:[#allocation2 + $0x168] sm:$0xff]
    %v75 = vld [vmem:[#allocation2 + $0x170] sm:$0xff]
    %v76 = vld [vmem:[#allocation2 + $0x178] sm:$0xff]
    %v77 = vld [vmem:[#allocation2 + $0x180] sm:$0xff]
    %v78 = vld [vmem:[#allocation2 + $0x188] sm:$0xff]
    %v79 = vld [vmem:[#allocation2 + $0x190] sm:$0xff]
    %v80 = vld [vmem:[#allocation2 + $0x198] sm:$0xff]
    %v81 = vld [vmem:[#allocation2 + $0x1a0] sm:$0xff]
    %v82 = vld [vmem:[#allocation2 + $0x1a8] sm:$0xff]
    %v83 = vld [vmem:[#allocation2 + $0x1b0] sm:$0xff]
    %v84 = vld [vmem:[#allocation2 + $0x1b8] sm:$0xff]
    %v85 = vld [vmem:[#allocation2 + $0x1c0] sm:$0xff]
    %v86 = vld [vmem:[#allocation2 + $0x1c8] sm:$0xff]
    %v87 = vld [vmem:[#allocation2 + $0x1d0] sm:$0xff]
    %v88 = vld [vmem:[#allocation2 + $0x1d8] sm:$0xff]
    %v89 = vld [vmem:[#allocation2 + $0x1e0] sm:$0xff]
    %v90 = vld [vmem:[#allocation2 + $0x1e8] sm:$0xff]
    %v91 = vld [vmem:[#allocation2 + $0x1f0] sm:$0xff]
    %v92 = vld [vmem:[#allocation2 + $0x1f8] sm:$0xff]
    %v93 = vld [vmem:[#allocation2 + $0x200] sm:$0xff]
    %v94 = vld [vmem:[#allocation2 + $0x208] sm:$0xff]
    %v95 = vld [vmem:[#allocation2 + $0x210] sm:$0xff]
    %v96 = vld [vmem:[#allocation2 + $0x218] sm:$0xff]
    %v97 = vld [vmem:[#allocation2 + $0x220] sm:$0xff]
    %v98 = vld [vmem:[#allocation2 + $0x228] sm:$0xff]
    %v99 = vld [vmem:[#allocation2 + $0x230] sm:$0xff]
    %v100 = vld [vmem:[#allocation2 + $0x238] sm:$0xff]
    %v101 = vld [vmem:[#allocation2 + $0x240] sm:$0xff]
    %v102 = vld [vmem:[#allocation2 + $0x248] sm:$0xff]
    %v103 = vld [vmem:[#allocation2 + $0x250] sm:$0xff]
    %v104 = vld [vmem:[#allocation2 + $0x258] sm:$0xff]
    %v105 = vld [vmem:[#allocation2 + $0x260] sm:$0xff]
    %v106 = vld [vmem:[#allocation2 + $0x268] sm:$0xff]
    %v107 = vld [vmem:[#allocation2 + $0x270] sm:$0xff]
    %v108 = vld [vmem:[#allocation2 + $0x278] sm:$0xff]
    %v109 = vld [vmem:[#allocation2 + $0x280] sm:$0xff]
    %v110 = vld [vmem:[#allocation2 + $0x288] sm:$0xff]
    %v111 = vld [vmem:[#allocation2 + $0x290] sm:$0xff]
    %v112 = vld [vmem:[#allocation2 + $0x298] sm:$0xff]
    %v113 = vld [vmem:[#allocation2 + $0x2a0] sm:$0xff]
    %v114 = vld [vmem:[#allocation2 + $0x2a8] sm:$0xff]
    %v115 = vld [vmem:[#allocation2 + $0x2b0] sm:$0xff]
    %v116 = vld [vmem:[#allocation2 + $0x2b8] sm:$0xff]
    %v117 = vld [vmem:[#allocation2 + $0x2c0] sm:$0xff]
    %v118 = vld [vmem:[#allocation2 + $0x2c8] sm:$0xff]
    %v119 = vld [vmem:[#allocation2 + $0x2d0] sm:$0xff]
    %v120 = vld [vmem:[#allocation2 + $0x2d8] sm:$0xff]
    %v121 = vld [vmem:[#allocation2 + $0x2e0] sm:$0xff]
    %v122 = vld [vmem:[#allocation2 + $0x2e8] sm:$0xff]
    %v123 = vld [vmem:[#allocation2 + $0x2f0] sm:$0xff]
    %v124 = vld [vmem:[#allocation2 + $0x2f8] sm:$0xff]
    %v125 = vld [vmem:[#allocation2 + $0x300] sm:$0xff]
    %v126 = vld [vmem:[#allocation2 + $0x308] sm:$0xff]
    %v127 = vld [vmem:[#allocation2 + $0x310] sm:$0xff]
    %v128 = vld [vmem:[#allocation2 + $0x318] sm:$0xff]
    %v129 = vld [vmem:[#allocation2 + $0x320] sm:$0xff]
    %v130 = vld [vmem:[#allocation2 + $0x328] sm:$0xff]
    %v131 = vld [vmem:[#allocation2 + $0x330] sm:$0xff]
    %v132 = vld [vmem:[#allocation2 + $0x338] sm:$0xff]
    %v133 = vld [vmem:[#allocation2 + $0x340] sm:$0xff]
    %v134 = vld [vmem:[#allocation2 + $0x348] sm:$0xff]
    %v135 = vld [vmem:[#allocation2 + $0x350] sm:$0xff]
    %v136 = vld [vmem:[#allocation2 + $0x358] sm:$0xff]
    %v137 = vld [vmem:[#allocation2 + $0x360] sm:$0xff]
    %v138 = vld [vmem:[#allocation2 + $0x368] sm:$0xff]
    %v139 = vld [vmem:[#allocation2 + $0x370] sm:$0xff]
    %v140 = vld [vmem:[#allocation2 + $0x378] sm:$0xff]
    %v141 = vld [vmem:[#allocation2 + $0x380] sm:$0xff]
    %v142 = vld [vmem:[#allocation2 + $0x388] sm:$0xff]
    %v143 = vld [vmem:[#allocation2 + $0x390] sm:$0xff]
    %v144 = vld [vmem:[#allocation2 + $0x398] sm:$0xff]
    %v145 = vld [vmem:[#allocation2 + $0x3a0] sm:$0xff]
    %v146 = vld [vmem:[#allocation2 + $0x3a8] sm:$0xff]
    %v147 = vld [vmem:[#allocation2 + $0x3b0] sm:$0xff]
    %v148 = vld [vmem:[#allocation2 + $0x3b8] sm:$0xff]
    %v149 = vld [vmem:[#allocation2 + $0x3c0] sm:$0xff]
    %v150 = vld [vmem:[#allocation2 + $0x3c8] sm:$0xff]
    %v151 = vld [vmem:[#allocation2 + $0x3d0] sm:$0xff]
    %v152 = vld [vmem:[#allocation2 + $0x3d8] sm:$0xff]
    %v153 = vld [vmem:[#allocation2 + $0x3e0] sm:$0xff]
    %v154 = vld [vmem:[#allocation2 + $0x3e8] sm:$0xff]
    %v155 = vld [vmem:[#allocation2 + $0x3f0] sm:$0xff]
    %v156 = vld [vmem:[#allocation2 + $0x3f8] sm:$0xff]
    %v157 = vld [vmem:[#allocation2 + $0x400] sm:$0xff]
    %v158 = vld [vmem:[#allocation2 + $0x408] sm:$0xff]
    %v159 = vld [vmem:[#allocation2 + $0x410] sm:$0xff]
    %v160 = vld [vmem:[#allocation2 + $0x418] sm:$0xff]
    %v161 = vld [vmem:[#allocation2 + $0x420] sm:$0xff]
    %v162 = vld [vmem:[#allocation2 + $0x428] sm:$0xff]
    %v163 = vld [vmem:[#allocation2 + $0x430] sm:$0xff]
    %v164 = vld [vmem:[#allocation2 + $0x438] sm:$0xff]
    %v165 = vld [vmem:[#allocation2 + $0x440] sm:$0xff]
    %v166 = vld [vmem:[#allocation2 + $0x448] sm:$0xff]
    %v167 = vld [vmem:[#allocation2 + $0x450] sm:$0xff]
    %v168 = vld [vmem:[#allocation2 + $0x458] sm:$0xff]
    %v169 = vld [vmem:[#allocation2 + $0x460] sm:$0xff]
    %v170 = vld [vmem:[#allocation2 + $0x468] sm:$0xff]
    %v171 = vld [vmem:[#allocation2 + $0x470] sm:$0xff]
    %v172 = vld [vmem:[#allocation2 + $0x478] sm:$0xff]
    %v173 = vld [vmem:[#allocation2 + $0x480] sm:$0xff]
    %v174 = vld [vmem:[#allocation2 + $0x488] sm:$0xff]
    %v175 = vld [vmem:[#allocation2 + $0x490] sm:$0xff]
    %v176 = vld [vmem:[#allocation2 + $0x498] sm:$0xff]
    %v177 = vld [vmem:[#allocation2 + $0x4a0] sm:$0xff]
    %v178 = vld [vmem:[#allocation2 + $0x4a8] sm:$0xff]
    %v179 = vld [vmem:[#allocation2 + $0x4b0] sm:$0xff]
    %v180 = vld [vmem:[#allocation2 + $0x4b8] sm:$0xff]
    %v181 = vld [vmem:[#allocation2 + $0x4c0] sm:$0xff]
    %v182 = vld [vmem:[#allocation2 + $0x4c8] sm:$0xff]
    %v183 = vld [vmem:[#allocation2 + $0x4d0] sm:$0xff]
    %v184 = vld [vmem:[#allocation2 + $0x4d8] sm:$0xff]
    %v185 = vld [vmem:[#allocation2 + $0x4e0] sm:$0xff]
    %v186 = vld [vmem:[#allocation2 + $0x4e8] sm:$0xff]
    %v187 = vld [vmem:[#allocation2 + $0x4f0] sm:$0xff]
    %v188 = vld [vmem:[#allocation2 + $0x4f8] sm:$0xff]
    %v189 = vld [vmem:[#allocation2 + $0x500] sm:$0xff]
    %v190 = vld [vmem:[#allocation2 + $0x508] sm:$0xff]
    %v191 = vld [vmem:[#allocation2 + $0x510] sm:$0xff]
    %v192 = vld [vmem:[#allocation2 + $0x518] sm:$0xff]
    %v193 = vld [vmem:[#allocation2 + $0x520] sm:$0xff]
    %v194 = vld [vmem:[#allocation2 + $0x528] sm:$0xff]
    %v195 = vld [vmem:[#allocation2 + $0x530] sm:$0xff]
    %v196 = vld [vmem:[#allocation2 + $0x538] sm:$0xff]
    %v197 = vld [vmem:[#allocation2 + $0x540] sm:$0xff]
    %v198 = vld [vmem:[#allocation2 + $0x548] sm:$0xff]
    %v199 = vld [vmem:[#allocation2 + $0x550] sm:$0xff]
    %v200 = vld [vmem:[#allocation2 + $0x558] sm:$0xff]
    %v201 = vld [vmem:[#allocation2 + $0x560] sm:$0xff]
    %v202 = vld [vmem:[#allocation2 + $0x568] sm:$0xff]
    %v203 = vld [vmem:[#allocation2 + $0x570] sm:$0xff]
    %v204 = vld [vmem:[#allocation2 + $0x578] sm:$0xff]
    %v205 = vld [vmem:[#allocation2 + $0x580] sm:$0xff]
    %v206 = vld [vmem:[#allocation2 + $0x588] sm:$0xff]
    %v207 = vld [vmem:[#allocation2 + $0x590] sm:$0xff]
    %v208 = vld [vmem:[#allocation2 + $0x598] sm:$0xff]
    %v209 = vld [vmem:[#allocation2 + $0x5a0] sm:$0xff]
    %v210 = vld [vmem:[#allocation2 + $0x5a8] sm:$0xff]
    %v211 = vld [vmem:[#allocation2 + $0x5b0] sm:$0xff]
    %v212 = vld [vmem:[#allocation2 + $0x5b8] sm:$0xff]
    %v213 = vld [vmem:[#allocation2 + $0x5c0] sm:$0xff]
    %v214 = vld [vmem:[#allocation2 + $0x5c8] sm:$0xff]
    %v215 = vld [vmem:[#allocation2 + $0x5d0] sm:$0xff]
    %v216 = vld [vmem:[#allocation2 + $0x5d8] sm:$0xff]
    %v217 = vld [vmem:[#allocation2 + $0x5e0] sm:$0xff]
    %v218 = vld [vmem:[#allocation2 + $0x5e8] sm:$0xff]
    %v219 = vld [vmem:[#allocation2 + $0x5f0] sm:$0xff]
    %v220 = vld [vmem:[#allocation2 + $0x5f8] sm:$0xff]
    %v221 = vld [vmem:[#allocation2 + $0x600] sm:$0xff]
    %v222 = vld [vmem:[#allocation2 + $0x608] sm:$0xff]
    %v223 = vld [vmem:[#allocation2 + $0x610] sm:$0xff]
    %v224 = vld [vmem:[#allocation2 + $0x618] sm:$0xff]
    %v225 = vld [vmem:[#allocation2 + $0x620] sm:$0xff]
    %v226 = vld [vmem:[#allocation2 + $0x628] sm:$0xff]
    %v227 = vld [vmem:[#allocation2 + $0x630] sm:$0xff]
    %v228 = vld [vmem:[#allocation2 + $0x638] sm:$0xff]
    %v229 = vld [vmem:[#allocation2 + $0x640] sm:$0xff]
    %v230 = vld [vmem:[#allocation2 + $0x648] sm:$0xff]
    %v231 = vld [vmem:[#allocation2 + $0x650] sm:$0xff]
    %v232 = vld [vmem:[#allocation2 + $0x658] sm:$0xff]
    %v233 = vld [vmem:[#allocation2 + $0x660] sm:$0xff]
    %v234 = vld [vmem:[#allocation2 + $0x668] sm:$0xff]
    %v235 = vld [vmem:[#allocation2 + $0x670] sm:$0xff]
    %v236 = vld [vmem:[#allocation2 + $0x678] sm:$0xff]
    %v237 = vld [vmem:[#allocation2 + $0x680] sm:$0xff]
    %v238 = vld [vmem:[#allocation2 + $0x688] sm:$0xff]
    %v239 = vld [vmem:[#allocation2 + $0x690] sm:$0xff]
    %v240 = vld [vmem:[#allocation2 + $0x698] sm:$0xff]
    %v241 = vld [vmem:[#allocation2 + $0x6a0] sm:$0xff]
    %v242 = vld [vmem:[#allocation2 + $0x6a8] sm:$0xff]
    %v243 = vld [vmem:[#allocation2 + $0x6b0] sm:$0xff]
    %v244 = vld [vmem:[#allocation2 + $0x6b8] sm:$0xff]
    %v245 = vld [vmem:[#allocation2 + $0x6c0] sm:$0xff]
    %v246 = vld [vmem:[#allocation2 + $0x6c8] sm:$0xff]
    %v247 = vld [vmem:[#allocation2 + $0x6d0] sm:$0xff]
    %v248 = vld [vmem:[#allocation2 + $0x6d8] sm:$0xff]
    %v249 = vld [vmem:[#allocation2 + $0x6e0] sm:$0xff]
    %v250 = vld [vmem:[#allocation2 + $0x6e8] sm:$0xff]
    %v251 = vld [vmem:[#allocation2 + $0x6f0] sm:$0xff]
    %v252 = vld [vmem:[#allocation2 + $0x6f8] sm:$0xff]
    %v253 = vld [vmem:[#allocation2 + $0x700] sm:$0xff]
    %v254 = vld [vmem:[#allocation2 + $0x708] sm:$0xff]
    %v255 = vld [vmem:[#allocation2 + $0x710] sm:$0xff]
    %v256 = vld [vmem:[#allocation2 + $0x718] sm:$0xff]
    %v257 = vld [vmem:[#allocation2 + $0x720] sm:$0xff]
    %v258 = vld [vmem:[#allocation2 + $0x728] sm:$0xff]
    %v259 = vld [vmem:[#allocation2 + $0x730] sm:$0xff]
    %v260 = vld [vmem:[#allocation2 + $0x738] sm:$0xff]
    %v261 = vld [vmem:[#allocation2 + $0x740] sm:$0xff]
    %v262 = vld [vmem:[#allocation2 + $0x748] sm:$0xff]
    %v263 = vld [vmem:[#allocation2 + $0x750] sm:$0xff]
    %v264 = vld [vmem:[#allocation2 + $0x758] sm:$0xff]
    %v265 = vld [vmem:[#allocation2 + $0x760] sm:$0xff]
    %v266 = vld [vmem:[#allocation2 + $0x768] sm:$0xff]
    %v267 = vld [vmem:[#allocation2 + $0x770] sm:$0xff]
    %v268 = vld [vmem:[#allocation2 + $0x778] sm:$0xff]
    %v269 = vld [vmem:[#allocation2 + $0x780] sm:$0xff]
    %v270 = vld [vmem:[#allocation2 + $0x788] sm:$0xff]
    %v271 = vld [vmem:[#allocation2 + $0x790] sm:$0xff]
    %v272 = vld [vmem:[#allocation2 + $0x798] sm:$0xff]
    %v273 = vld [vmem:[#allocation2 + $0x7a0] sm:$0xff]
    %v274 = vld [vmem:[#allocation2 + $0x7a8] sm:$0xff]
    %v275 = vld [vmem:[#allocation2 + $0x7b0] sm:$0xff]
    %v276 = vld [vmem:[#allocation2 + $0x7b8] sm:$0xff]
    %v277 = vld [vmem:[#allocation2 + $0x7c0] sm:$0xff]
    %v278 = vld [vmem:[#allocation2 + $0x7c8] sm:$0xff]
    %v279 = vld [vmem:[#allocation2 + $0x7d0] sm:$0xff]
    %v280 = vld [vmem:[#allocation2 + $0x7d8] sm:$0xff]
    %v281 = vld [vmem:[#allocation2 + $0x7e0] sm:$0xff]
    %v282 = vld [vmem:[#allocation2 + $0x7e8] sm:$0xff]
    %v283 = vld [vmem:[#allocation2 + $0x7f0] sm:$0xff]
    %v284 = vld [vmem:[#allocation2 + $0x7f8] sm:$0xff]
    %v285 = vadd.f32 %v29, %v30
    %286 = vadd.xlane.f32.xlu0 %v285
    %v287 = vpop.xlane.xlu0 %286
    %v288 = vadd.f32 %v31, %v32
    %289 = vadd.xlane.f32.xlu0 %v288
    %v290 = vpop.xlane.xlu0 %289
    %v291 = vadd.f32 %v33, %v34
    %292 = vadd.xlane.f32.xlu0 %v291
    %v293 = vpop.xlane.xlu0 %292
    %v294 = vadd.f32 %v35, %v36
    %295 = vadd.xlane.f32.xlu0 %v294
    %v296 = vpop.xlane.xlu0 %295
    %v297 = vadd.f32 %v37, %v38
    %298 = vadd.xlane.f32.xlu0 %v297
    %v299 = vpop.xlane.xlu0 %298
    %v300 = vadd.f32 %v39, %v40
    %301 = vadd.xlane.f32.xlu0 %v300
    %v302 = vpop.xlane.xlu0 %301
    %v303 = vadd.f32 %v41, %v42
    %304 = vadd.xlane.f32.xlu0 %v303
    %v305 = vpop.xlane.xlu0 %304
    %v306 = vadd.f32 %v43, %v44
    %307 = vadd.xlane.f32.xlu0 %v306
    %v308 = vpop.xlane.xlu0 %307
    %v309 = vadd.f32 %v45, %v46
    %310 = vadd.xlane.f32.xlu0 %v309
    %v311 = vpop.xlane.xlu0 %310
    %v312 = vadd.f32 %v47, %v48
    %313 = vadd.xlane.f32.xlu0 %v312
    %v314 = vpop.xlane.xlu0 %313
    %v315 = vadd.f32 %v49, %v50
    %316 = vadd.xlane.f32.xlu0 %v315
    %v317 = vpop.xlane.xlu0 %316
    %v318 = vadd.f32 %v51, %v52
    %319 = vadd.xlane.f32.xlu0 %v318
    %v320 = vpop.xlane.xlu0 %319
    %v321 = vadd.f32 %v53, %v54
    %322 = vadd.xlane.f32.xlu0 %v321
    %v323 = vpop.xlane.xlu0 %322
    %v324 = vadd.f32 %v55, %v56
    %325 = vadd.xlane.f32.xlu0 %v324
    %v326 = vpop.xlane.xlu0 %325
    %v327 = vadd.f32 %v57, %v58
    %328 = vadd.xlane.f32.xlu0 %v327
    %v329 = vpop.xlane.xlu0 %328
    %v330 = vadd.f32 %v59, %v60
    %331 = vadd.xlane.f32.xlu0 %v330
    %v332 = vpop.xlane.xlu0 %331
    %v333 = vadd.f32 %v61, %v62
    %334 = vadd.xlane.f32.xlu0 %v333
    %v335 = vpop.xlane.xlu0 %334
    %v336 = vadd.f32 %v63, %v64
    %337 = vadd.xlane.f32.xlu0 %v336
    %v338 = vpop.xlane.xlu0 %337
    %v339 = vadd.f32 %v65, %v66
    %340 = vadd.xlane.f32.xlu0 %v339
    %v341 = vpop.xlane.xlu0 %340
    %v342 = vadd.f32 %v67, %v68
    %343 = vadd.xlane.f32.xlu0 %v342
    %v344 = vpop.xlane.xlu0 %343
    %v345 = vadd.f32 %v69, %v70
    %346 = vadd.xlane.f32.xlu0 %v345
    %v347 = vpop.xlane.xlu0 %346
    %v348 = vadd.f32 %v71, %v72
    %349 = vadd.xlane.f32.xlu0 %v348
    %v350 = vpop.xlane.xlu0 %349
    %v351 = vadd.f32 %v73, %v74
    %352 = vadd.xlane.f32.xlu0 %v351
    %v353 = vpop.xlane.xlu0 %352
    %v354 = vadd.f32 %v75, %v76
    %355 = vadd.xlane.f32.xlu0 %v354
    %v356 = vpop.xlane.xlu0 %355
    %v357 = vadd.f32 %v77, %v78
    %358 = vadd.xlane.f32.xlu0 %v357
    %v359 = vpop.xlane.xlu0 %358
    %v360 = vadd.f32 %v79, %v80
    %361 = vadd.xlane.f32.xlu0 %v360
    %v362 = vpop.xlane.xlu0 %361
    %v363 = vadd.f32 %v81, %v82
    %364 = vadd.xlane.f32.xlu0 %v363
    %v365 = vpop.xlane.xlu0 %364
    %v366 = vadd.f32 %v83, %v84
    %367 = vadd.xlane.f32.xlu0 %v366
    %v368 = vpop.xlane.xlu0 %367
    %v369 = vadd.f32 %v85, %v86
    %370 = vadd.xlane.f32.xlu0 %v369
    %v371 = vpop.xlane.xlu0 %370
    %v372 = vadd.f32 %v87, %v88
    %373 = vadd.xlane.f32.xlu0 %v372
    %v374 = vpop.xlane.xlu0 %373
    %v375 = vadd.f32 %v89, %v90
    %376 = vadd.xlane.f32.xlu0 %v375
    %v377 = vpop.xlane.xlu0 %376
    %v378 = vadd.f32 %v91, %v92
    %379 = vadd.xlane.f32.xlu0 %v378
    %v380 = vpop.xlane.xlu0 %379
    %v381 = vadd.f32 %v93, %v94
    %382 = vadd.xlane.f32.xlu0 %v381
    %v383 = vpop.xlane.xlu0 %382
    %v384 = vadd.f32 %v95, %v96
    %385 = vadd.xlane.f32.xlu0 %v384
    %v386 = vpop.xlane.xlu0 %385
    %v387 = vadd.f32 %v97, %v98
    %388 = vadd.xlane.f32.xlu0 %v387
    %v389 = vpop.xlane.xlu0 %388
    %v390 = vadd.f32 %v99, %v100
    %391 = vadd.xlane.f32.xlu0 %v390
    %v392 = vpop.xlane.xlu0 %391
    %v393 = vadd.f32 %v101, %v102
    %394 = vadd.xlane.f32.xlu0 %v393
    %v395 = vpop.xlane.xlu0 %394
    %v396 = vadd.f32 %v103, %v104
    %397 = vadd.xlane.f32.xlu0 %v396
    %v398 = vpop.xlane.xlu0 %397
    %v399 = vadd.f32 %v105, %v106
    %400 = vadd.xlane.f32.xlu0 %v399
    %v401 = vpop.xlane.xlu0 %400
    %v402 = vadd.f32 %v107, %v108
    %403 = vadd.xlane.f32.xlu0 %v402
    %v404 = vpop.xlane.xlu0 %403
    %v405 = vadd.f32 %v109, %v110
    %406 = vadd.xlane.f32.xlu0 %v405
    %v407 = vpop.xlane.xlu0 %406
    %v408 = vadd.f32 %v111, %v112
    %409 = vadd.xlane.f32.xlu0 %v408
    %v410 = vpop.xlane.xlu0 %409
    %v411 = vadd.f32 %v113, %v114
    %412 = vadd.xlane.f32.xlu0 %v411
    %v413 = vpop.xlane.xlu0 %412
    %v414 = vadd.f32 %v115, %v116
    %415 = vadd.xlane.f32.xlu0 %v414
    %v416 = vpop.xlane.xlu0 %415
    %v417 = vadd.f32 %v117, %v118
    %418 = vadd.xlane.f32.xlu0 %v417
    %v419 = vpop.xlane.xlu0 %418
    %v420 = vadd.f32 %v119, %v120
    %421 = vadd.xlane.f32.xlu0 %v420
    %v422 = vpop.xlane.xlu0 %421
    %v423 = vadd.f32 %v121, %v122
    %424 = vadd.xlane.f32.xlu0 %v423
    %v425 = vpop.xlane.xlu0 %424
    %v426 = vadd.f32 %v123, %v124
    %427 = vadd.xlane.f32.xlu0 %v426
    %v428 = vpop.xlane.xlu0 %427
    %v429 = vadd.f32 %v125, %v126
    %430 = vadd.xlane.f32.xlu0 %v429
    %v431 = vpop.xlane.xlu0 %430
    %v432 = vadd.f32 %v127, %v128
    %433 = vadd.xlane.f32.xlu0 %v432
    %v434 = vpop.xlane.xlu0 %433
    %v435 = vadd.f32 %v129, %v130
    %436 = vadd.xlane.f32.xlu0 %v435
    %v437 = vpop.xlane.xlu0 %436
    %v438 = vadd.f32 %v131, %v132
    %439 = vadd.xlane.f32.xlu0 %v438
    %v440 = vpop.xlane.xlu0 %439
    %v441 = vadd.f32 %v133, %v134
    %442 = vadd.xlane.f32.xlu0 %v441
    %v443 = vpop.xlane.xlu0 %442
    %v444 = vadd.f32 %v135, %v136
    %445 = vadd.xlane.f32.xlu0 %v444
    %v446 = vpop.xlane.xlu0 %445
    %v447 = vadd.f32 %v137, %v138
    %448 = vadd.xlane.f32.xlu0 %v447
    %v449 = vpop.xlane.xlu0 %448
    %v450 = vadd.f32 %v139, %v140
    %451 = vadd.xlane.f32.xlu0 %v450
    %v452 = vpop.xlane.xlu0 %451
    %v453 = vadd.f32 %v141, %v142
    %454 = vadd.xlane.f32.xlu0 %v453
    %v455 = vpop.xlane.xlu0 %454
    %v456 = vadd.f32 %v143, %v144
    %457 = vadd.xlane.f32.xlu0 %v456
    %v458 = vpop.xlane.xlu0 %457
    %v459 = vadd.f32 %v145, %v146
    %460 = vadd.xlane.f32.xlu0 %v459
    %v461 = vpop.xlane.xlu0 %460
    %v462 = vadd.f32 %v147, %v148
    %463 = vadd.xlane.f32.xlu0 %v462
    %v464 = vpop.xlane.xlu0 %463
    %v465 = vadd.f32 %v149, %v150
    %466 = vadd.xlane.f32.xlu0 %v465
    %v467 = vpop.xlane.xlu0 %466
    %v468 = vadd.f32 %v151, %v152
    %469 = vadd.xlane.f32.xlu0 %v468
    %v470 = vpop.xlane.xlu0 %469
    %v471 = vadd.f32 %v153, %v154
    %472 = vadd.xlane.f32.xlu0 %v471
    %v473 = vpop.xlane.xlu0 %472
    %v474 = vadd.f32 %v155, %v156
    %475 = vadd.xlane.f32.xlu0 %v474
    %v476 = vpop.xlane.xlu0 %475
    %v477 = vadd.f32 %v157, %v158
    %478 = vadd.xlane.f32.xlu0 %v477
    %v479 = vpop.xlane.xlu0 %478
    %v480 = vadd.f32 %v159, %v160
    %481 = vadd.xlane.f32.xlu0 %v480
    %v482 = vpop.xlane.xlu0 %481
    %v483 = vadd.f32 %v161, %v162
    %484 = vadd.xlane.f32.xlu0 %v483
    %v485 = vpop.xlane.xlu0 %484
    %v486 = vadd.f32 %v163, %v164
    %487 = vadd.xlane.f32.xlu0 %v486
    %v488 = vpop.xlane.xlu0 %487
    %v489 = vadd.f32 %v165, %v166
    %490 = vadd.xlane.f32.xlu0 %v489
    %v491 = vpop.xlane.xlu0 %490
    %v492 = vadd.f32 %v167, %v168
    %493 = vadd.xlane.f32.xlu0 %v492
    %v494 = vpop.xlane.xlu0 %493
    %v495 = vadd.f32 %v169, %v170
    %496 = vadd.xlane.f32.xlu0 %v495
    %v497 = vpop.xlane.xlu0 %496
    %v498 = vadd.f32 %v171, %v172
    %499 = vadd.xlane.f32.xlu0 %v498
    %v500 = vpop.xlane.xlu0 %499
    %v501 = vadd.f32 %v173, %v174
    %502 = vadd.xlane.f32.xlu0 %v501
    %v503 = vpop.xlane.xlu0 %502
    %v504 = vadd.f32 %v175, %v176
    %505 = vadd.xlane.f32.xlu0 %v504
    %v506 = vpop.xlane.xlu0 %505
    %v507 = vadd.f32 %v177, %v178
    %508 = vadd.xlane.f32.xlu0 %v507
    %v509 = vpop.xlane.xlu0 %508
    %v510 = vadd.f32 %v179, %v180
    %511 = vadd.xlane.f32.xlu0 %v510
    %v512 = vpop.xlane.xlu0 %511
    %v513 = vadd.f32 %v181, %v182
    %514 = vadd.xlane.f32.xlu0 %v513
    %v515 = vpop.xlane.xlu0 %514
    %v516 = vadd.f32 %v183, %v184
    %517 = vadd.xlane.f32.xlu0 %v516
    %v518 = vpop.xlane.xlu0 %517
    %v519 = vadd.f32 %v185, %v186
    %520 = vadd.xlane.f32.xlu0 %v519
    %v521 = vpop.xlane.xlu0 %520
    %v522 = vadd.f32 %v187, %v188
    %523 = vadd.xlane.f32.xlu0 %v522
    %v524 = vpop.xlane.xlu0 %523
    %v525 = vadd.f32 %v189, %v190
    %526 = vadd.xlane.f32.xlu0 %v525
    %v527 = vpop.xlane.xlu0 %526
    %v528 = vadd.f32 %v191, %v192
    %529 = vadd.xlane.f32.xlu0 %v528
    %v530 = vpop.xlane.xlu0 %529
    %v531 = vadd.f32 %v193, %v194
    %532 = vadd.xlane.f32.xlu0 %v531
    %v533 = vpop.xlane.xlu0 %532
    %v534 = vadd.f32 %v195, %v196
    %535 = vadd.xlane.f32.xlu0 %v534
    %v536 = vpop.xlane.xlu0 %535
    %v537 = vadd.f32 %v197, %v198
    %538 = vadd.xlane.f32.xlu0 %v537
    %v539 = vpop.xlane.xlu0 %538
    %v540 = vadd.f32 %v199, %v200
    %541 = vadd.xlane.f32.xlu0 %v540
    %v542 = vpop.xlane.xlu0 %541
    %v543 = vadd.f32 %v201, %v202
    %544 = vadd.xlane.f32.xlu0 %v543
    %v545 = vpop.xlane.xlu0 %544
    %v546 = vadd.f32 %v203, %v204
    %547 = vadd.xlane.f32.xlu0 %v546
    %v548 = vpop.xlane.xlu0 %547
    %v549 = vadd.f32 %v205, %v206
    %550 = vadd.xlane.f32.xlu0 %v549
    %v551 = vpop.xlane.xlu0 %550
    %v552 = vadd.f32 %v207, %v208
    %553 = vadd.xlane.f32.xlu0 %v552
    %v554 = vpop.xlane.xlu0 %553
    %v555 = vadd.f32 %v209, %v210
    %556 = vadd.xlane.f32.xlu0 %v555
    %v557 = vpop.xlane.xlu0 %556
    %v558 = vadd.f32 %v211, %v212
    %559 = vadd.xlane.f32.xlu0 %v558
    %v560 = vpop.xlane.xlu0 %559
    %v561 = vadd.f32 %v213, %v214
    %562 = vadd.xlane.f32.xlu0 %v561
    %v563 = vpop.xlane.xlu0 %562
    %v564 = vadd.f32 %v215, %v216
    %565 = vadd.xlane.f32.xlu0 %v564
    %v566 = vpop.xlane.xlu0 %565
    %v567 = vadd.f32 %v217, %v218
    %568 = vadd.xlane.f32.xlu0 %v567
    %v569 = vpop.xlane.xlu0 %568
    %v570 = vadd.f32 %v219, %v220
    %571 = vadd.xlane.f32.xlu0 %v570
    %v572 = vpop.xlane.xlu0 %571
    %v573 = vadd.f32 %v221, %v222
    %574 = vadd.xlane.f32.xlu0 %v573
    %v575 = vpop.xlane.xlu0 %574
    %v576 = vadd.f32 %v223, %v224
    %577 = vadd.xlane.f32.xlu0 %v576
    %v578 = vpop.xlane.xlu0 %577
    %v579 = vadd.f32 %v225, %v226
    %580 = vadd.xlane.f32.xlu0 %v579
    %v581 = vpop.xlane.xlu0 %580
    %v582 = vadd.f32 %v227, %v228
    %583 = vadd.xlane.f32.xlu0 %v582
    %v584 = vpop.xlane.xlu0 %583
    %v585 = vadd.f32 %v229, %v230
    %586 = vadd.xlane.f32.xlu0 %v585
    %v587 = vpop.xlane.xlu0 %586
    %v588 = vadd.f32 %v231, %v232
    %589 = vadd.xlane.f32.xlu0 %v588
    %v590 = vpop.xlane.xlu0 %589
    %v591 = vadd.f32 %v233, %v234
    %592 = vadd.xlane.f32.xlu0 %v591
    %v593 = vpop.xlane.xlu0 %592
    %v594 = vadd.f32 %v235, %v236
    %595 = vadd.xlane.f32.xlu0 %v594
    %v596 = vpop.xlane.xlu0 %595
    %v597 = vadd.f32 %v237, %v238
    %598 = vadd.xlane.f32.xlu0 %v597
    %v599 = vpop.xlane.xlu0 %598
    %v600 = vadd.f32 %v239, %v240
    %601 = vadd.xlane.f32.xlu0 %v600
    %v602 = vpop.xlane.xlu0 %601
    %v603 = vadd.f32 %v241, %v242
    %604 = vadd.xlane.f32.xlu0 %v603
    %v605 = vpop.xlane.xlu0 %604
    %v606 = vadd.f32 %v243, %v244
    %607 = vadd.xlane.f32.xlu0 %v606
    %v608 = vpop.xlane.xlu0 %607
    %v609 = vadd.f32 %v245, %v246
    %610 = vadd.xlane.f32.xlu0 %v609
    %v611 = vpop.xlane.xlu0 %610
    %v612 = vadd.f32 %v247, %v248
    %613 = vadd.xlane.f32.xlu0 %v612
    %v614 = vpop.xlane.xlu0 %613
    %v615 = vadd.f32 %v249, %v250
    %616 = vadd.xlane.f32.xlu0 %v615
    %v617 = vpop.xlane.xlu0 %616
    %v618 = vadd.f32 %v251, %v252
    %619 = vadd.xlane.f32.xlu0 %v618
    %v620 = vpop.xlane.xlu0 %619
    %v621 = vadd.f32 %v253, %v254
    %622 = vadd.xlane.f32.xlu0 %v621
    %v623 = vpop.xlane.xlu0 %622
    %v624 = vadd.f32 %v255, %v256
    %625 = vadd.xlane.f32.xlu0 %v624
    %v626 = vpop.xlane.xlu0 %625
    %v627 = vadd.f32 %v257, %v258
    %628 = vadd.xlane.f32.xlu0 %v627
    %v629 = vpop.xlane.xlu0 %628
    %v630 = vadd.f32 %v259, %v260
    %631 = vadd.xlane.f32.xlu0 %v630
    %v632 = vpop.xlane.xlu0 %631
    %v633 = vadd.f32 %v261, %v262
    %634 = vadd.xlane.f32.xlu0 %v633
    %v635 = vpop.xlane.xlu0 %634
    %v636 = vadd.f32 %v263, %v264
    %637 = vadd.xlane.f32.xlu0 %v636
    %v638 = vpop.xlane.xlu0 %637
    %v639 = vadd.f32 %v265, %v266
    %640 = vadd.xlane.f32.xlu0 %v639
    %v641 = vpop.xlane.xlu0 %640
    %v642 = vadd.f32 %v267, %v268
    %643 = vadd.xlane.f32.xlu0 %v642
    %v644 = vpop.xlane.xlu0 %643
    %v645 = vadd.f32 %v269, %v270
    %646 = vadd.xlane.f32.xlu0 %v645
    %v647 = vpop.xlane.xlu0 %646
    %v648 = vadd.f32 %v271, %v272
    %649 = vadd.xlane.f32.xlu0 %v648
    %v650 = vpop.xlane.xlu0 %649
    %v651 = vadd.f32 %v273, %v274
    %652 = vadd.xlane.f32.xlu0 %v651
    %v653 = vpop.xlane.xlu0 %652
    %v654 = vadd.f32 %v275, %v276
    %655 = vadd.xlane.f32.xlu0 %v654
    %v656 = vpop.xlane.xlu0 %655
    %v657 = vadd.f32 %v277, %v278
    %658 = vadd.xlane.f32.xlu0 %v657
    %v659 = vpop.xlane.xlu0 %658
    %v660 = vadd.f32 %v279, %v280
    %661 = vadd.xlane.f32.xlu0 %v660
    %v662 = vpop.xlane.xlu0 %661
    %v663 = vadd.f32 %v281, %v282
    %664 = vadd.xlane.f32.xlu0 %v663
    %v665 = vpop.xlane.xlu0 %664
    %v666 = vadd.f32 %v283, %v284
    %667 = vadd.xlane.f32.xlu0 %v666
    %v668 = vpop.xlane.xlu0 %667
    %v669 = vrcp.pop 256.0
    %v670 = vmul.f32 %v287, %v669
    %v671 = vmul.f32 %v290, %v669
    %v672 = vmul.f32 %v293, %v669
    %v673 = vmul.f32 %v296, %v669
    %v674 = vmul.f32 %v299, %v669
    %v675 = vmul.f32 %v302, %v669
    %v676 = vmul.f32 %v305, %v669
    %v677 = vmul.f32 %v308, %v669
    %v678 = vmul.f32 %v311, %v669
    %v679 = vmul.f32 %v314, %v669
    %v680 = vmul.f32 %v317, %v669
    %v681 = vmul.f32 %v320, %v669
    %v682 = vmul.f32 %v323, %v669
    %v683 = vmul.f32 %v326, %v669
    %v684 = vmul.f32 %v329, %v669
    %v685 = vmul.f32 %v332, %v669
    %v686 = vmul.f32 %v335, %v669
    %v687 = vmul.f32 %v338, %v669
    %v688 = vmul.f32 %v341, %v669
    %v689 = vmul.f32 %v344, %v669
    %v690 = vmul.f32 %v347, %v669
    %v691 = vmul.f32 %v350, %v669
    %v692 = vmul.f32 %v353, %v669
    %v693 = vmul.f32 %v356, %v669
    %v694 = vmul.f32 %v359, %v669
    %v695 = vmul.f32 %v362, %v669
    %v696 = vmul.f32 %v365, %v669
    %v697 = vmul.f32 %v368, %v669
    %v698 = vmul.f32 %v371, %v669
    %v699 = vmul.f32 %v374, %v669
    %v700 = vmul.f32 %v377, %v669
    %v701 = vmul.f32 %v380, %v669
    %v702 = vmul.f32 %v383, %v669
    %v703 = vmul.f32 %v386, %v669
    %v704 = vmul.f32 %v389, %v669
    %v705 = vmul.f32 %v392, %v669
    %v706 = vmul.f32 %v395, %v669
    %v707 = vmul.f32 %v398, %v669
    %v708 = vmul.f32 %v401, %v669
    %v709 = vmul.f32 %v404, %v669
    %v710 = vmul.f32 %v407, %v669
    %v711 = vmul.f32 %v410, %v669
    %v712 = vmul.f32 %v413, %v669
    %v713 = vmul.f32 %v416, %v669
    %v714 = vmul.f32 %v419, %v669
    %v715 = vmul.f32 %v422, %v669
    %v716 = vmul.f32 %v425, %v669
    %v717 = vmul.f32 %v428, %v669
    %v718 = vmul.f32 %v431, %v669
    %v719 = vmul.f32 %v434, %v669
    %v720 = vmul.f32 %v437, %v669
    %v721 = vmul.f32 %v440, %v669
    %v722 = vmul.f32 %v443, %v669
    %v723 = vmul.f32 %v446, %v669
    %v724 = vmul.f32 %v449, %v669
    %v725 = vmul.f32 %v452, %v669
    %v726 = vmul.f32 %v455, %v669
    %v727 = vmul.f32 %v458, %v669
    %v728 = vmul.f32 %v461, %v669
    %v729 = vmul.f32 %v464, %v669
    %v730 = vmul.f32 %v467, %v669
    %v731 = vmul.f32 %v470, %v669
    %v732 = vmul.f32 %v473, %v669
    %v733 = vmul.f32 %v476, %v669
    %v734 = vmul.f32 %v479, %v669
    %v735 = vmul.f32 %v482, %v669
    %v736 = vmul.f32 %v485, %v669
    %v737 = vmul.f32 %v488, %v669
    %v738 = vmul.f32 %v491, %v669
    %v739 = vmul.f32 %v494, %v669
    %v740 = vmul.f32 %v497, %v669
    %v741 = vmul.f32 %v500, %v669
    %v742 = vmul.f32 %v503, %v669
    %v743 = vmul.f32 %v506, %v669
    %v744 = vmul.f32 %v509, %v669
    %v745 = vmul.f32 %v512, %v669
    %v746 = vmul.f32 %v515, %v669
    %v747 = vmul.f32 %v518, %v669
    %v748 = vmul.f32 %v521, %v669
    %v749 = vmul.f32 %v524, %v669
    %v750 = vmul.f32 %v527, %v669
    %v751 = vmul.f32 %v530, %v669
    %v752 = vmul.f32 %v533, %v669
    %v753 = vmul.f32 %v536, %v669
    %v754 = vmul.f32 %v539, %v669
    %v755 = vmul.f32 %v542, %v669
    %v756 = vmul.f32 %v545, %v669
    %v757 = vmul.f32 %v548, %v669
    %v758 = vmul.f32 %v551, %v669
    %v759 = vmul.f32 %v554, %v669
    %v760 = vmul.f32 %v557, %v669
    %v761 = vmul.f32 %v560, %v669
    %v762 = vmul.f32 %v563, %v669
    %v763 = vmul.f32 %v566, %v669
    %v764 = vmul.f32 %v569, %v669
    %v765 = vmul.f32 %v572, %v669
    %v766 = vmul.f32 %v575, %v669
    %v767 = vmul.f32 %v578, %v669
    %v768 = vmul.f32 %v581, %v669
    %v769 = vmul.f32 %v584, %v669
    %v770 = vmul.f32 %v587, %v669
    %v771 = vmul.f32 %v590, %v669
    %v772 = vmul.f32 %v593, %v669
    %v773 = vmul.f32 %v596, %v669
    %v774 = vmul.f32 %v599, %v669
    %v775 = vmul.f32 %v602, %v669
    %v776 = vmul.f32 %v605, %v669
    %v777 = vmul.f32 %v608, %v669
    %v778 = vmul.f32 %v611, %v669
    %v779 = vmul.f32 %v614, %v669
    %v780 = vmul.f32 %v617, %v669
    %v781 = vmul.f32 %v620, %v669
    %v782 = vmul.f32 %v623, %v669
    %v783 = vmul.f32 %v626, %v669
    %v784 = vmul.f32 %v629, %v669
    %v785 = vmul.f32 %v632, %v669
    %v786 = vmul.f32 %v635, %v669
    %v787 = vmul.f32 %v638, %v669
    %v788 = vmul.f32 %v641, %v669
    %v789 = vmul.f32 %v644, %v669
    %v790 = vmul.f32 %v647, %v669
    %v791 = vmul.f32 %v650, %v669
    %v792 = vmul.f32 %v653, %v669
    %v793 = vmul.f32 %v656, %v669
    %v794 = vmul.f32 %v659, %v669
    %v795 = vmul.f32 %v662, %v669
    %v796 = vmul.f32 %v665, %v669
    %v797 = vmul.f32 %v668, %v669
    %v798 = vsub.f32 %v29, %v670
    %v799 = vsub.f32 %v30, %v670
    %v800 = vsub.f32 %v31, %v671
    %v801 = vsub.f32 %v32, %v671
    %v802 = vsub.f32 %v33, %v672
    %v803 = vsub.f32 %v34, %v672
    %v804 = vsub.f32 %v35, %v673
    %v805 = vsub.f32 %v36, %v673
    %v806 = vsub.f32 %v37, %v674
    %v807 = vsub.f32 %v38, %v674
    %v808 = vsub.f32 %v39, %v675
    %v809 = vsub.f32 %v40, %v675
    %v810 = vsub.f32 %v41, %v676
    %v811 = vsub.f32 %v42, %v676
    %v812 = vsub.f32 %v43, %v677
    %v813 = vsub.f32 %v44, %v677
    %v814 = vsub.f32 %v45, %v678
    %v815 = vsub.f32 %v46, %v678
    %v816 = vsub.f32 %v47, %v679
    %v817 = vsub.f32 %v48, %v679
    %v818 = vsub.f32 %v49, %v680
    %v819 = vsub.f32 %v50, %v680
    %v820 = vsub.f32 %v51, %v681
    %v821 = vsub.f32 %v52, %v681
    %v822 = vsub.f32 %v53, %v682
    %v823 = vsub.f32 %v54, %v682
    %v824 = vsub.f32 %v55, %v683
    %v825 = vsub.f32 %v56, %v683
    %v826 = vsub.f32 %v57, %v684
    %v827 = vsub.f32 %v58, %v684
    %v828 = vsub.f32 %v59, %v685
    %v829 = vsub.f32 %v60, %v685
    %v830 = vsub.f32 %v61, %v686
    %v831 = vsub.f32 %v62, %v686
    %v832 = vsub.f32 %v63, %v687
    %v833 = vsub.f32 %v64, %v687
    %v834 = vsub.f32 %v65, %v688
    %v835 = vsub.f32 %v66, %v688
    %v836 = vsub.f32 %v67, %v689
    %v837 = vsub.f32 %v68, %v689
    %v838 = vsub.f32 %v69, %v690
    %v839 = vsub.f32 %v70, %v690
    %v840 = vsub.f32 %v71, %v691
    %v841 = vsub.f32 %v72, %v691
    %v842 = vsub.f32 %v73, %v692
    %v843 = vsub.f32 %v74, %v692
    %v844 = vsub.f32 %v75, %v693
    %v845 = vsub.f32 %v76, %v693
    %v846 = vsub.f32 %v77, %v694
    %v847 = vsub.f32 %v78, %v694
    %v848 = vsub.f32 %v79, %v695
    %v849 = vsub.f32 %v80, %v695
    %v850 = vsub.f32 %v81, %v696
    %v851 = vsub.f32 %v82, %v696
    %v852 = vsub.f32 %v83, %v697
    %v853 = vsub.f32 %v84, %v697
    %v854 = vsub.f32 %v85, %v698
    %v855 = vsub.f32 %v86, %v698
    %v856 = vsub.f32 %v87, %v699
    %v857 = vsub.f32 %v88, %v699
    %v858 = vsub.f32 %v89, %v700
    %v859 = vsub.f32 %v90, %v700
    %v860 = vsub.f32 %v91, %v701
    %v861 = vsub.f32 %v92, %v701
    %v862 = vsub.f32 %v93, %v702
    %v863 = vsub.f32 %v94, %v702
    %v864 = vsub.f32 %v95, %v703
    %v865 = vsub.f32 %v96, %v703
    %v866 = vsub.f32 %v97, %v704
    %v867 = vsub.f32 %v98, %v704
    %v868 = vsub.f32 %v99, %v705
    %v869 = vsub.f32 %v100, %v705
    %v870 = vsub.f32 %v101, %v706
    %v871 = vsub.f32 %v102, %v706
    %v872 = vsub.f32 %v103, %v707
    %v873 = vsub.f32 %v104, %v707
    %v874 = vsub.f32 %v105, %v708
    %v875 = vsub.f32 %v106, %v708
    %v876 = vsub.f32 %v107, %v709
    %v877 = vsub.f32 %v108, %v709
    %v878 = vsub.f32 %v109, %v710
    %v879 = vsub.f32 %v110, %v710
    %v880 = vsub.f32 %v111, %v711
    %v881 = vsub.f32 %v112, %v711
    %v882 = vsub.f32 %v113, %v712
    %v883 = vsub.f32 %v114, %v712
    %v884 = vsub.f32 %v115, %v713
    %v885 = vsub.f32 %v116, %v713
    %v886 = vsub.f32 %v117, %v714
    %v887 = vsub.f32 %v118, %v714
    %v888 = vsub.f32 %v119, %v715
    %v889 = vsub.f32 %v120, %v715
    %v890 = vsub.f32 %v121, %v716
    %v891 = vsub.f32 %v122, %v716
    %v892 = vsub.f32 %v123, %v717
    %v893 = vsub.f32 %v124, %v717
    %v894 = vsub.f32 %v125, %v718
    %v895 = vsub.f32 %v126, %v718
    %v896 = vsub.f32 %v127, %v719
    %v897 = vsub.f32 %v128, %v719
    %v898 = vsub.f32 %v129, %v720
    %v899 = vsub.f32 %v130, %v720
    %v900 = vsub.f32 %v131, %v721
    %v901 = vsub.f32 %v132, %v721
    %v902 = vsub.f32 %v133, %v722
    %v903 = vsub.f32 %v134, %v722
    %v904 = vsub.f32 %v135, %v723
    %v905 = vsub.f32 %v136, %v723
    %v906 = vsub.f32 %v137, %v724
    %v907 = vsub.f32 %v138, %v724
    %v908 = vsub.f32 %v139, %v725
    %v909 = vsub.f32 %v140, %v725
    %v910 = vsub.f32 %v141, %v726
    %v911 = vsub.f32 %v142, %v726
    %v912 = vsub.f32 %v143, %v727
    %v913 = vsub.f32 %v144, %v727
    %v914 = vsub.f32 %v145, %v728
    %v915 = vsub.f32 %v146, %v728
    %v916 = vsub.f32 %v147, %v729
    %v917 = vsub.f32 %v148, %v729
    %v918 = vsub.f32 %v149, %v730
    %v919 = vsub.f32 %v150, %v730
    %v920 = vsub.f32 %v151, %v731
    %v921 = vsub.f32 %v152, %v731
    %v922 = vsub.f32 %v153, %v732
    %v923 = vsub.f32 %v154, %v732
    %v924 = vsub.f32 %v155, %v733
    %v925 = vsub.f32 %v156, %v733
    %v926 = vsub.f32 %v157, %v734
    %v927 = vsub.f32 %v158, %v734
    %v928 = vsub.f32 %v159, %v735
    %v929 = vsub.f32 %v160, %v735
    %v930 = vsub.f32 %v161, %v736
    %v931 = vsub.f32 %v162, %v736
    %v932 = vsub.f32 %v163, %v737
    %v933 = vsub.f32 %v164, %v737
    %v934 = vsub.f32 %v165, %v738
    %v935 = vsub.f32 %v166, %v738
    %v936 = vsub.f32 %v167, %v739
    %v937 = vsub.f32 %v168, %v739
    %v938 = vsub.f32 %v169, %v740
    %v939 = vsub.f32 %v170, %v740
    %v940 = vsub.f32 %v171, %v741
    %v941 = vsub.f32 %v172, %v741
    %v942 = vsub.f32 %v173, %v742
    %v943 = vsub.f32 %v174, %v742
    %v944 = vsub.f32 %v175, %v743
    %v945 = vsub.f32 %v176, %v743
    %v946 = vsub.f32 %v177, %v744
    %v947 = vsub.f32 %v178, %v744
    %v948 = vsub.f32 %v179, %v745
    %v949 = vsub.f32 %v180, %v745
    %v950 = vsub.f32 %v181, %v746
    %v951 = vsub.f32 %v182, %v746
    %v952 = vsub.f32 %v183, %v747
    %v953 = vsub.f32 %v184, %v747
    %v954 = vsub.f32 %v185, %v748
    %v955 = vsub.f32 %v186, %v748
    %v956 = vsub.f32 %v187, %v749
    %v957 = vsub.f32 %v188, %v749
    %v958 = vsub.f32 %v189, %v750
    %v959 = vsub.f32 %v190, %v750
    %v960 = vsub.f32 %v191, %v751
    %v961 = vsub.f32 %v192, %v751
    %v962 = vsub.f32 %v193, %v752
    %v963 = vsub.f32 %v194, %v752
    %v964 = vsub.f32 %v195, %v753
    %v965 = vsub.f32 %v196, %v753
    %v966 = vsub.f32 %v197, %v754
    %v967 = vsub.f32 %v198, %v754
    %v968 = vsub.f32 %v199, %v755
    %v969 = vsub.f32 %v200, %v755
    %v970 = vsub.f32 %v201, %v756
    %v971 = vsub.f32 %v202, %v756
    %v972 = vsub.f32 %v203, %v757
    %v973 = vsub.f32 %v204, %v757
    %v974 = vsub.f32 %v205, %v758
    %v975 = vsub.f32 %v206, %v758
    %v976 = vsub.f32 %v207, %v759
    %v977 = vsub.f32 %v208, %v759
    %v978 = vsub.f32 %v209, %v760
    %v979 = vsub.f32 %v210, %v760
    %v980 = vsub.f32 %v211, %v761
    %v981 = vsub.f32 %v212, %v761
    %v982 = vsub.f32 %v213, %v762
    %v983 = vsub.f32 %v214, %v762
    %v984 = vsub.f32 %v215, %v763
    %v985 = vsub.f32 %v216, %v763
    %v986 = vsub.f32 %v217, %v764
    %v987 = vsub.f32 %v218, %v764
    %v988 = vsub.f32 %v219, %v765
    %v989 = vsub.f32 %v220, %v765
    %v990 = vsub.f32 %v221, %v766
    %v991 = vsub.f32 %v222, %v766
    %v992 = vsub.f32 %v223, %v767
    %v993 = vsub.f32 %v224, %v767
    %v994 = vsub.f32 %v225, %v768
    %v995 = vsub.f32 %v226, %v768
    %v996 = vsub.f32 %v227, %v769
    %v997 = vsub.f32 %v228, %v769
    %v998 = vsub.f32 %v229, %v770
    %v999 = vsub.f32 %v230, %v770
    %v1000 = vsub.f32 %v231, %v771
    %v1001 = vsub.f32 %v232, %v771
    %v1002 = vsub.f32 %v233, %v772
    %v1003 = vsub.f32 %v234, %v772
    %v1004 = vsub.f32 %v235, %v773
    %v1005 = vsub.f32 %v236, %v773
    %v1006 = vsub.f32 %v237, %v774
    %v1007 = vsub.f32 %v238, %v774
    %v1008 = vsub.f32 %v239, %v775
    %v1009 = vsub.f32 %v240, %v775
    %v1010 = vsub.f32 %v241, %v776
    %v1011 = vsub.f32 %v242, %v776
    %v1012 = vsub.f32 %v243, %v777
    %v1013 = vsub.f32 %v244, %v777
    %v1014 = vsub.f32 %v245, %v778
    %v1015 = vsub.f32 %v246, %v778
    %v1016 = vsub.f32 %v247, %v779
    %v1017 = vsub.f32 %v248, %v779
    %v1018 = vsub.f32 %v249, %v780
    %v1019 = vsub.f32 %v250, %v780
    %v1020 = vsub.f32 %v251, %v781
    %v1021 = vsub.f32 %v252, %v781
    %v1022 = vsub.f32 %v253, %v782
    %v1023 = vsub.f32 %v254, %v782
    %v1024 = vsub.f32 %v255, %v783
    %v1025 = vsub.f32 %v256, %v783
    %v1026 = vsub.f32 %v257, %v784
    %v1027 = vsub.f32 %v258, %v784
    %v1028 = vsub.f32 %v259, %v785
    %v1029 = vsub.f32 %v260, %v785
    %v1030 = vsub.f32 %v261, %v786
    %v1031 = vsub.f32 %v262, %v786
    %v1032 = vsub.f32 %v263, %v787
    %v1033 = vsub.f32 %v264, %v787
    %v1034 = vsub.f32 %v265, %v788
    %v1035 = vsub.f32 %v266, %v788
    %v1036 = vsub.f32 %v267, %v789
    %v1037 = vsub.f32 %v268, %v789
    %v1038 = vsub.f32 %v269, %v790
    %v1039 = vsub.f32 %v270, %v790
    %v1040 = vsub.f32 %v271, %v791
    %v1041 = vsub.f32 %v272, %v791
    %v1042 = vsub.f32 %v273, %v792
    %v1043 = vsub.f32 %v274, %v792
    %v1044 = vsub.f32 %v275, %v793
    %v1045 = vsub.f32 %v276, %v793
    %v1046 = vsub.f32 %v277, %v794
    %v1047 = vsub.f32 %v278, %v794
    %v1048 = vsub.f32 %v279, %v795
    %v1049 = vsub.f32 %v280, %v795
    %v1050 = vsub.f32 %v281, %v796
    %v1051 = vsub.f32 %v282, %v796
    %v1052 = vsub.f32 %v283, %v797
    %v1053 = vsub.f32 %v284, %v797
    %v1054 = vmul.f32 %v798, %v798
    %v1055 = vmul.f32 %v799, %v799
    %v1056 = vmul.f32 %v800, %v800
    %v1057 = vmul.f32 %v801, %v801
    %v1058 = vmul.f32 %v802, %v802
    %v1059 = vmul.f32 %v803, %v803
    %v1060 = vmul.f32 %v804, %v804
    %v1061 = vmul.f32 %v805, %v805
    %v1062 = vmul.f32 %v806, %v806
    %v1063 = vmul.f32 %v807, %v807
    %v1064 = vmul.f32 %v808, %v808
    %v1065 = vmul.f32 %v809, %v809
    %v1066 = vmul.f32 %v810, %v810
    %v1067 = vmul.f32 %v811, %v811
    %v1068 = vmul.f32 %v812, %v812
    %v1069 = vmul.f32 %v813, %v813
    %v1070 = vmul.f32 %v814, %v814
    %v1071 = vmul.f32 %v815, %v815
    %v1072 = vmul.f32 %v816, %v816
    %v1073 = vmul.f32 %v817, %v817
    %v1074 = vmul.f32 %v818, %v818
    %v1075 = vmul.f32 %v819, %v819
    %v1076 = vmul.f32 %v820, %v820
    %v1077 = vmul.f32 %v821, %v821
    %v1078 = vmul.f32 %v822, %v822
    %v1079 = vmul.f32 %v823, %v823
    %v1080 = vmul.f32 %v824, %v824
    %v1081 = vmul.f32 %v825, %v825
    %v1082 = vmul.f32 %v826, %v826
    %v1083 = vmul.f32 %v827, %v827
    %v1084 = vmul.f32 %v828, %v828
    %v1085 = vmul.f32 %v829, %v829
    %v1086 = vmul.f32 %v830, %v830
    %v1087 = vmul.f32 %v831, %v831
    %v1088 = vmul.f32 %v832, %v832
    %v1089 = vmul.f32 %v833, %v833
    %v1090 = vmul.f32 %v834, %v834
    %v1091 = vmul.f32 %v835, %v835
    %v1092 = vmul.f32 %v836, %v836
    %v1093 = vmul.f32 %v837, %v837
    %v1094 = vmul.f32 %v838, %v838
    %v1095 = vmul.f32 %v839, %v839
    %v1096 = vmul.f32 %v840, %v840
    %v1097 = vmul.f32 %v841, %v841
    %v1098 = vmul.f32 %v842, %v842
    %v1099 = vmul.f32 %v843, %v843
    %v1100 = vmul.f32 %v844, %v844
    %v1101 = vmul.f32 %v845, %v845
    %v1102 = vmul.f32 %v846, %v846
    %v1103 = vmul.f32 %v847, %v847
    %v1104 = vmul.f32 %v848, %v848
    %v1105 = vmul.f32 %v849, %v849
    %v1106 = vmul.f32 %v850, %v850
    %v1107 = vmul.f32 %v851, %v851
    %v1108 = vmul.f32 %v852, %v852
    %v1109 = vmul.f32 %v853, %v853
    %v1110 = vmul.f32 %v854, %v854
    %v1111 = vmul.f32 %v855, %v855
    %v1112 = vmul.f32 %v856, %v856
    %v1113 = vmul.f32 %v857, %v857
    %v1114 = vmul.f32 %v858, %v858
    %v1115 = vmul.f32 %v859, %v859
    %v1116 = vmul.f32 %v860, %v860
    %v1117 = vmul.f32 %v861, %v861
    %v1118 = vmul.f32 %v862, %v862
    %v1119 = vmul.f32 %v863, %v863
    %v1120 = vmul.f32 %v864, %v864
    %v1121 = vmul.f32 %v865, %v865
    %v1122 = vmul.f32 %v866, %v866
    %v1123 = vmul.f32 %v867, %v867
    %v1124 = vmul.f32 %v868, %v868
    %v1125 = vmul.f32 %v869, %v869
    %v1126 = vmul.f32 %v870, %v870
    %v1127 = vmul.f32 %v871, %v871
    %v1128 = vmul.f32 %v872, %v872
    %v1129 = vmul.f32 %v873, %v873
    %v1130 = vmul.f32 %v874, %v874
    %v1131 = vmul.f32 %v875, %v875
    %v1132 = vmul.f32 %v876, %v876
    %v1133 = vmul.f32 %v877, %v877
    %v1134 = vmul.f32 %v878, %v878
    %v1135 = vmul.f32 %v879, %v879
    %v1136 = vmul.f32 %v880, %v880
    %v1137 = vmul.f32 %v881, %v881
    %v1138 = vmul.f32 %v882, %v882
    %v1139 = vmul.f32 %v883, %v883
    %v1140 = vmul.f32 %v884, %v884
    %v1141 = vmul.f32 %v885, %v885
    %v1142 = vmul.f32 %v886, %v886
    %v1143 = vmul.f32 %v887, %v887
    %v1144 = vmul.f32 %v888, %v888
    %v1145 = vmul.f32 %v889, %v889
    %v1146 = vmul.f32 %v890, %v890
    %v1147 = vmul.f32 %v891, %v891
    %v1148 = vmul.f32 %v892, %v892
    %v1149 = vmul.f32 %v893, %v893
    %v1150 = vmul.f32 %v894, %v894
    %v1151 = vmul.f32 %v895, %v895
    %v1152 = vmul.f32 %v896, %v896
    %v1153 = vmul.f32 %v897, %v897
    %v1154 = vmul.f32 %v898, %v898
    %v1155 = vmul.f32 %v899, %v899
    %v1156 = vmul.f32 %v900, %v900
    %v1157 = vmul.f32 %v901, %v901
    %v1158 = vmul.f32 %v902, %v902
    %v1159 = vmul.f32 %v903, %v903
    %v1160 = vmul.f32 %v904, %v904
    %v1161 = vmul.f32 %v905, %v905
    %v1162 = vmul.f32 %v906, %v906
    %v1163 = vmul.f32 %v907, %v907
    %v1164 = vmul.f32 %v908, %v908
    %v1165 = vmul.f32 %v909, %v909
    %v1166 = vmul.f32 %v910, %v910
    %v1167 = vmul.f32 %v911, %v911
    %v1168 = vmul.f32 %v912, %v912
    %v1169 = vmul.f32 %v913, %v913
    %v1170 = vmul.f32 %v914, %v914
    %v1171 = vmul.f32 %v915, %v915
    %v1172 = vmul.f32 %v916, %v916
    %v1173 = vmul.f32 %v917, %v917
    %v1174 = vmul.f32 %v918, %v918
    %v1175 = vmul.f32 %v919, %v919
    %v1176 = vmul.f32 %v920, %v920
    %v1177 = vmul.f32 %v921, %v921
    %v1178 = vmul.f32 %v922, %v922
    %v1179 = vmul.f32 %v923, %v923
    %v1180 = vmul.f32 %v924, %v924
    %v1181 = vmul.f32 %v925, %v925
    %v1182 = vmul.f32 %v926, %v926
    %v1183 = vmul.f32 %v927, %v927
    %v1184 = vmul.f32 %v928, %v928
    %v1185 = vmul.f32 %v929, %v929
    %v1186 = vmul.f32 %v930, %v930
    %v1187 = vmul.f32 %v931, %v931
    %v1188 = vmul.f32 %v932, %v932
    %v1189 = vmul.f32 %v933, %v933
    %v1190 = vmul.f32 %v934, %v934
    %v1191 = vmul.f32 %v935, %v935
    %v1192 = vmul.f32 %v936, %v936
    %v1193 = vmul.f32 %v937, %v937
    %v1194 = vmul.f32 %v938, %v938
    %v1195 = vmul.f32 %v939, %v939
    %v1196 = vmul.f32 %v940, %v940
    %v1197 = vmul.f32 %v941, %v941
    %v1198 = vmul.f32 %v942, %v942
    %v1199 = vmul.f32 %v943, %v943
    %v1200 = vmul.f32 %v944, %v944
    %v1201 = vmul.f32 %v945, %v945
    %v1202 = vmul.f32 %v946, %v946
    %v1203 = vmul.f32 %v947, %v947
    %v1204 = vmul.f32 %v948, %v948
    %v1205 = vmul.f32 %v949, %v949
    %v1206 = vmul.f32 %v950, %v950
    %v1207 = vmul.f32 %v951, %v951
    %v1208 = vmul.f32 %v952, %v952
    %v1209 = vmul.f32 %v953, %v953
    %v1210 = vmul.f32 %v954, %v954
    %v1211 = vmul.f32 %v955, %v955
    %v1212 = vmul.f32 %v956, %v956
    %v1213 = vmul.f32 %v957, %v957
    %v1214 = vmul.f32 %v958, %v958
    %v1215 = vmul.f32 %v959, %v959
    %v1216 = vmul.f32 %v960, %v960
    %v1217 = vmul.f32 %v961, %v961
    %v1218 = vmul.f32 %v962, %v962
    %v1219 = vmul.f32 %v963, %v963
    %v1220 = vmul.f32 %v964, %v964
    %v1221 = vmul.f32 %v965, %v965
    %v1222 = vmul.f32 %v966, %v966
    %v1223 = vmul.f32 %v967, %v967
    %v1224 = vmul.f32 %v968, %v968
    %v1225 = vmul.f32 %v969, %v969
    %v1226 = vmul.f32 %v970, %v970
    %v1227 = vmul.f32 %v971, %v971
    %v1228 = vmul.f32 %v972, %v972
    %v1229 = vmul.f32 %v973, %v973
    %v1230 = vmul.f32 %v974, %v974
    %v1231 = vmul.f32 %v975, %v975
    %v1232 = vmul.f32 %v976, %v976
    %v1233 = vmul.f32 %v977, %v977
    %v1234 = vmul.f32 %v978, %v978
    %v1235 = vmul.f32 %v979, %v979
    %v1236 = vmul.f32 %v980, %v980
    %v1237 = vmul.f32 %v981, %v981
    %v1238 = vmul.f32 %v982, %v982
    %v1239 = vmul.f32 %v983, %v983
    %v1240 = vmul.f32 %v984, %v984
    %v1241 = vmul.f32 %v985, %v985
    %v1242 = vmul.f32 %v986, %v986
    %v1243 = vmul.f32 %v987, %v987
    %v1244 = vmul.f32 %v988, %v988
    %v1245 = vmul.f32 %v989, %v989
    %v1246 = vmul.f32 %v990, %v990
    %v1247 = vmul.f32 %v991, %v991
    %v1248 = vmul.f32 %v992, %v992
    %v1249 = vmul.f32 %v993, %v993
    %v1250 = vmul.f32 %v994, %v994
    %v1251 = vmul.f32 %v995, %v995
    %v1252 = vmul.f32 %v996, %v996
    %v1253 = vmul.f32 %v997, %v997
    %v1254 = vmul.f32 %v998, %v998
    %v1255 = vmul.f32 %v999, %v999
    %v1256 = vmul.f32 %v1000, %v1000
    %v1257 = vmul.f32 %v1001, %v1001
    %v1258 = vmul.f32 %v1002, %v1002
    %v1259 = vmul.f32 %v1003, %v1003
    %v1260 = vmul.f32 %v1004, %v1004
    %v1261 = vmul.f32 %v1005, %v1005
    %v1262 = vmul.f32 %v1006, %v1006
    %v1263 = vmul.f32 %v1007, %v1007
    %v1264 = vmul.f32 %v1008, %v1008
    %v1265 = vmul.f32 %v1009, %v1009
    %v1266 = vmul.f32 %v1010, %v1010
    %v1267 = vmul.f32 %v1011, %v1011
    %v1268 = vmul.f32 %v1012, %v1012
    %v1269 = vmul.f32 %v1013, %v1013
    %v1270 = vmul.f32 %v1014, %v1014
    %v1271 = vmul.f32 %v1015, %v1015
    %v1272 = vmul.f32 %v1016, %v1016
    %v1273 = vmul.f32 %v1017, %v1017
    %v1274 = vmul.f32 %v1018, %v1018
    %v1275 = vmul.f32 %v1019, %v1019
    %v1276 = vmul.f32 %v1020, %v1020
    %v1277 = vmul.f32 %v1021, %v1021
    %v1278 = vmul.f32 %v1022, %v1022
    %v1279 = vmul.f32 %v1023, %v1023
    %v1280 = vmul.f32 %v1024, %v1024
    %v1281 = vmul.f32 %v1025, %v1025
    %v1282 = vmul.f32 %v1026, %v1026
    %v1283 = vmul.f32 %v1027, %v1027
    %v1284 = vmul.f32 %v1028, %v1028
    %v1285 = vmul.f32 %v1029, %v1029
    %v1286 = vmul.f32 %v1030, %v1030
    %v1287 = vmul.f32 %v1031, %v1031
    %v1288 = vmul.f32 %v1032, %v1032
    %v1289 = vmul.f32 %v1033, %v1033
    %v1290 = vmul.f32 %v1034, %v1034
    %v1291 = vmul.f32 %v1035, %v1035
    %v1292 = vmul.f32 %v1036, %v1036
    %v1293 = vmul.f32 %v1037, %v1037
    %v1294 = vmul.f32 %v1038, %v1038
    %v1295 = vmul.f32 %v1039, %v1039
    %v1296 = vmul.f32 %v1040, %v1040
    %v1297 = vmul.f32 %v1041, %v1041
    %v1298 = vmul.f32 %v1042, %v1042
    %v1299 = vmul.f32 %v1043, %v1043
    %v1300 = vmul.f32 %v1044, %v1044
    %v1301 = vmul.f32 %v1045, %v1045
    %v1302 = vmul.f32 %v1046, %v1046
    %v1303 = vmul.f32 %v1047, %v1047
    %v1304 = vmul.f32 %v1048, %v1048
    %v1305 = vmul.f32 %v1049, %v1049
    %v1306 = vmul.f32 %v1050, %v1050
    %v1307 = vmul.f32 %v1051, %v1051
    %v1308 = vmul.f32 %v1052, %v1052
    %v1309 = vmul.f32 %v1053, %v1053
    %v1310 = vadd.f32 %v1054, %v1055
    %1311 = vadd.xlane.f32.xlu0 %v1310
    %v1312 = vpop.xlane.xlu0 %1311
    %v1313 = vadd.f32 %v1056, %v1057
    %1314 = vadd.xlane.f32.xlu0 %v1313
    %v1315 = vpop.xlane.xlu0 %1314
    %v1316 = vadd.f32 %v1058, %v1059
    %1317 = vadd.xlane.f32.xlu0 %v1316
    %v1318 = vpop.xlane.xlu0 %1317
    %v1319 = vadd.f32 %v1060, %v1061
    %1320 = vadd.xlane.f32.xlu0 %v1319
    %v1321 = vpop.xlane.xlu0 %1320
    %v1322 = vadd.f32 %v1062, %v1063
    %1323 = vadd.xlane.f32.xlu0 %v1322
    %v1324 = vpop.xlane.xlu0 %1323
    %v1325 = vadd.f32 %v1064, %v1065
    %1326 = vadd.xlane.f32.xlu0 %v1325
    %v1327 = vpop.xlane.xlu0 %1326
    %v1328 = vadd.f32 %v1066, %v1067
    %1329 = vadd.xlane.f32.xlu0 %v1328
    %v1330 = vpop.xlane.xlu0 %1329
    %v1331 = vadd.f32 %v1068, %v1069
    %1332 = vadd.xlane.f32.xlu0 %v1331
    %v1333 = vpop.xlane.xlu0 %1332
    %v1334 = vadd.f32 %v1070, %v1071
    %1335 = vadd.xlane.f32.xlu0 %v1334
    %v1336 = vpop.xlane.xlu0 %1335
    %v1337 = vadd.f32 %v1072, %v1073
    %1338 = vadd.xlane.f32.xlu0 %v1337
    %v1339 = vpop.xlane.xlu0 %1338
    %v1340 = vadd.f32 %v1074, %v1075
    %1341 = vadd.xlane.f32.xlu0 %v1340
    %v1342 = vpop.xlane.xlu0 %1341
    %v1343 = vadd.f32 %v1076, %v1077
    %1344 = vadd.xlane.f32.xlu0 %v1343
    %v1345 = vpop.xlane.xlu0 %1344
    %v1346 = vadd.f32 %v1078, %v1079
    %1347 = vadd.xlane.f32.xlu0 %v1346
    %v1348 = vpop.xlane.xlu0 %1347
    %v1349 = vadd.f32 %v1080, %v1081
    %1350 = vadd.xlane.f32.xlu0 %v1349
    %v1351 = vpop.xlane.xlu0 %1350
    %v1352 = vadd.f32 %v1082, %v1083
    %1353 = vadd.xlane.f32.xlu0 %v1352
    %v1354 = vpop.xlane.xlu0 %1353
    %v1355 = vadd.f32 %v1084, %v1085
    %1356 = vadd.xlane.f32.xlu0 %v1355
    %v1357 = vpop.xlane.xlu0 %1356
    %v1358 = vadd.f32 %v1086, %v1087
    %1359 = vadd.xlane.f32.xlu0 %v1358
    %v1360 = vpop.xlane.xlu0 %1359
    %v1361 = vadd.f32 %v1088, %v1089
    %1362 = vadd.xlane.f32.xlu0 %v1361
    %v1363 = vpop.xlane.xlu0 %1362
    %v1364 = vadd.f32 %v1090, %v1091
    %1365 = vadd.xlane.f32.xlu0 %v1364
    %v1366 = vpop.xlane.xlu0 %1365
    %v1367 = vadd.f32 %v1092, %v1093
    %1368 = vadd.xlane.f32.xlu0 %v1367
    %v1369 = vpop.xlane.xlu0 %1368
    %v1370 = vadd.f32 %v1094, %v1095
    %1371 = vadd.xlane.f32.xlu0 %v1370
    %v1372 = vpop.xlane.xlu0 %1371
    %v1373 = vadd.f32 %v1096, %v1097
    %1374 = vadd.xlane.f32.xlu0 %v1373
    %v1375 = vpop.xlane.xlu0 %1374
    %v1376 = vadd.f32 %v1098, %v1099
    %1377 = vadd.xlane.f32.xlu0 %v1376
    %v1378 = vpop.xlane.xlu0 %1377
    %v1379 = vadd.f32 %v1100, %v1101
    %1380 = vadd.xlane.f32.xlu0 %v1379
    %v1381 = vpop.xlane.xlu0 %1380
    %v1382 = vadd.f32 %v1102, %v1103
    %1383 = vadd.xlane.f32.xlu0 %v1382
    %v1384 = vpop.xlane.xlu0 %1383
    %v1385 = vadd.f32 %v1104, %v1105
    %1386 = vadd.xlane.f32.xlu0 %v1385
    %v1387 = vpop.xlane.xlu0 %1386
    %v1388 = vadd.f32 %v1106, %v1107
    %1389 = vadd.xlane.f32.xlu0 %v1388
    %v1390 = vpop.xlane.xlu0 %1389
    %v1391 = vadd.f32 %v1108, %v1109
    %1392 = vadd.xlane.f32.xlu0 %v1391
    %v1393 = vpop.xlane.xlu0 %1392
    %v1394 = vadd.f32 %v1110, %v1111
    %1395 = vadd.xlane.f32.xlu0 %v1394
    %v1396 = vpop.xlane.xlu0 %1395
    %v1397 = vadd.f32 %v1112, %v1113
    %1398 = vadd.xlane.f32.xlu0 %v1397
    %v1399 = vpop.xlane.xlu0 %1398
    %v1400 = vadd.f32 %v1114, %v1115
    %1401 = vadd.xlane.f32.xlu0 %v1400
    %v1402 = vpop.xlane.xlu0 %1401
    %v1403 = vadd.f32 %v1116, %v1117
    %1404 = vadd.xlane.f32.xlu0 %v1403
    %v1405 = vpop.xlane.xlu0 %1404
    %v1406 = vadd.f32 %v1118, %v1119
    %1407 = vadd.xlane.f32.xlu0 %v1406
    %v1408 = vpop.xlane.xlu0 %1407
    %v1409 = vadd.f32 %v1120, %v1121
    %1410 = vadd.xlane.f32.xlu0 %v1409
    %v1411 = vpop.xlane.xlu0 %1410
    %v1412 = vadd.f32 %v1122, %v1123
    %1413 = vadd.xlane.f32.xlu0 %v1412
    %v1414 = vpop.xlane.xlu0 %1413
    %v1415 = vadd.f32 %v1124, %v1125
    %1416 = vadd.xlane.f32.xlu0 %v1415
    %v1417 = vpop.xlane.xlu0 %1416
    %v1418 = vadd.f32 %v1126, %v1127
    %1419 = vadd.xlane.f32.xlu0 %v1418
    %v1420 = vpop.xlane.xlu0 %1419
    %v1421 = vadd.f32 %v1128, %v1129
    %1422 = vadd.xlane.f32.xlu0 %v1421
    %v1423 = vpop.xlane.xlu0 %1422
    %v1424 = vadd.f32 %v1130, %v1131
    %1425 = vadd.xlane.f32.xlu0 %v1424
    %v1426 = vpop.xlane.xlu0 %1425
    %v1427 = vadd.f32 %v1132, %v1133
    %1428 = vadd.xlane.f32.xlu0 %v1427
    %v1429 = vpop.xlane.xlu0 %1428
    %v1430 = vadd.f32 %v1134, %v1135
    %1431 = vadd.xlane.f32.xlu0 %v1430
    %v1432 = vpop.xlane.xlu0 %1431
    %v1433 = vadd.f32 %v1136, %v1137
    %1434 = vadd.xlane.f32.xlu0 %v1433
    %v1435 = vpop.xlane.xlu0 %1434
    %v1436 = vadd.f32 %v1138, %v1139
    %1437 = vadd.xlane.f32.xlu0 %v1436
    %v1438 = vpop.xlane.xlu0 %1437
    %v1439 = vadd.f32 %v1140, %v1141
    %1440 = vadd.xlane.f32.xlu0 %v1439
    %v1441 = vpop.xlane.xlu0 %1440
    %v1442 = vadd.f32 %v1142, %v1143
    %1443 = vadd.xlane.f32.xlu0 %v1442
    %v1444 = vpop.xlane.xlu0 %1443
    %v1445 = vadd.f32 %v1144, %v1145
    %1446 = vadd.xlane.f32.xlu0 %v1445
    %v1447 = vpop.xlane.xlu0 %1446
    %v1448 = vadd.f32 %v1146, %v1147
    %1449 = vadd.xlane.f32.xlu0 %v1448
    %v1450 = vpop.xlane.xlu0 %1449
    %v1451 = vadd.f32 %v1148, %v1149
    %1452 = vadd.xlane.f32.xlu0 %v1451
    %v1453 = vpop.xlane.xlu0 %1452
    %v1454 = vadd.f32 %v1150, %v1151
    %1455 = vadd.xlane.f32.xlu0 %v1454
    %v1456 = vpop.xlane.xlu0 %1455
    %v1457 = vadd.f32 %v1152, %v1153
    %1458 = vadd.xlane.f32.xlu0 %v1457
    %v1459 = vpop.xlane.xlu0 %1458
    %v1460 = vadd.f32 %v1154, %v1155
    %1461 = vadd.xlane.f32.xlu0 %v1460
    %v1462 = vpop.xlane.xlu0 %1461
    %v1463 = vadd.f32 %v1156, %v1157
    %1464 = vadd.xlane.f32.xlu0 %v1463
    %v1465 = vpop.xlane.xlu0 %1464
    %v1466 = vadd.f32 %v1158, %v1159
    %1467 = vadd.xlane.f32.xlu0 %v1466
    %v1468 = vpop.xlane.xlu0 %1467
    %v1469 = vadd.f32 %v1160, %v1161
    %1470 = vadd.xlane.f32.xlu0 %v1469
    %v1471 = vpop.xlane.xlu0 %1470
    %v1472 = vadd.f32 %v1162, %v1163
    %1473 = vadd.xlane.f32.xlu0 %v1472
    %v1474 = vpop.xlane.xlu0 %1473
    %v1475 = vadd.f32 %v1164, %v1165
    %1476 = vadd.xlane.f32.xlu0 %v1475
    %v1477 = vpop.xlane.xlu0 %1476
    %v1478 = vadd.f32 %v1166, %v1167
    %1479 = vadd.xlane.f32.xlu0 %v1478
    %v1480 = vpop.xlane.xlu0 %1479
    %v1481 = vadd.f32 %v1168, %v1169
    %1482 = vadd.xlane.f32.xlu0 %v1481
    %v1483 = vpop.xlane.xlu0 %1482
    %v1484 = vadd.f32 %v1170, %v1171
    %1485 = vadd.xlane.f32.xlu0 %v1484
    %v1486 = vpop.xlane.xlu0 %1485
    %v1487 = vadd.f32 %v1172, %v1173
    %1488 = vadd.xlane.f32.xlu0 %v1487
    %v1489 = vpop.xlane.xlu0 %1488
    %v1490 = vadd.f32 %v1174, %v1175
    %1491 = vadd.xlane.f32.xlu0 %v1490
    %v1492 = vpop.xlane.xlu0 %1491
    %v1493 = vadd.f32 %v1176, %v1177
    %1494 = vadd.xlane.f32.xlu0 %v1493
    %v1495 = vpop.xlane.xlu0 %1494
    %v1496 = vadd.f32 %v1178, %v1179
    %1497 = vadd.xlane.f32.xlu0 %v1496
    %v1498 = vpop.xlane.xlu0 %1497
    %v1499 = vadd.f32 %v1180, %v1181
    %1500 = vadd.xlane.f32.xlu0 %v1499
    %v1501 = vpop.xlane.xlu0 %1500
    %v1502 = vadd.f32 %v1182, %v1183
    %1503 = vadd.xlane.f32.xlu0 %v1502
    %v1504 = vpop.xlane.xlu0 %1503
    %v1505 = vadd.f32 %v1184, %v1185
    %1506 = vadd.xlane.f32.xlu0 %v1505
    %v1507 = vpop.xlane.xlu0 %1506
    %v1508 = vadd.f32 %v1186, %v1187
    %1509 = vadd.xlane.f32.xlu0 %v1508
    %v1510 = vpop.xlane.xlu0 %1509
    %v1511 = vadd.f32 %v1188, %v1189
    %1512 = vadd.xlane.f32.xlu0 %v1511
    %v1513 = vpop.xlane.xlu0 %1512
    %v1514 = vadd.f32 %v1190, %v1191
    %1515 = vadd.xlane.f32.xlu0 %v1514
    %v1516 = vpop.xlane.xlu0 %1515
    %v1517 = vadd.f32 %v1192, %v1193
    %1518 = vadd.xlane.f32.xlu0 %v1517
    %v1519 = vpop.xlane.xlu0 %1518
    %v1520 = vadd.f32 %v1194, %v1195
    %1521 = vadd.xlane.f32.xlu0 %v1520
    %v1522 = vpop.xlane.xlu0 %1521
    %v1523 = vadd.f32 %v1196, %v1197
    %1524 = vadd.xlane.f32.xlu0 %v1523
    %v1525 = vpop.xlane.xlu0 %1524
    %v1526 = vadd.f32 %v1198, %v1199
    %1527 = vadd.xlane.f32.xlu0 %v1526
    %v1528 = vpop.xlane.xlu0 %1527
    %v1529 = vadd.f32 %v1200, %v1201
    %1530 = vadd.xlane.f32.xlu0 %v1529
    %v1531 = vpop.xlane.xlu0 %1530
    %v1532 = vadd.f32 %v1202, %v1203
    %1533 = vadd.xlane.f32.xlu0 %v1532
    %v1534 = vpop.xlane.xlu0 %1533
    %v1535 = vadd.f32 %v1204, %v1205
    %1536 = vadd.xlane.f32.xlu0 %v1535
    %v1537 = vpop.xlane.xlu0 %1536
    %v1538 = vadd.f32 %v1206, %v1207
    %1539 = vadd.xlane.f32.xlu0 %v1538
    %v1540 = vpop.xlane.xlu0 %1539
    %v1541 = vadd.f32 %v1208, %v1209
    %1542 = vadd.xlane.f32.xlu0 %v1541
    %v1543 = vpop.xlane.xlu0 %1542
    %v1544 = vadd.f32 %v1210, %v1211
    %1545 = vadd.xlane.f32.xlu0 %v1544
    %v1546 = vpop.xlane.xlu0 %1545
    %v1547 = vadd.f32 %v1212, %v1213
    %1548 = vadd.xlane.f32.xlu0 %v1547
    %v1549 = vpop.xlane.xlu0 %1548
    %v1550 = vadd.f32 %v1214, %v1215
    %1551 = vadd.xlane.f32.xlu0 %v1550
    %v1552 = vpop.xlane.xlu0 %1551
    %v1553 = vadd.f32 %v1216, %v1217
    %1554 = vadd.xlane.f32.xlu0 %v1553
    %v1555 = vpop.xlane.xlu0 %1554
    %v1556 = vadd.f32 %v1218, %v1219
    %1557 = vadd.xlane.f32.xlu0 %v1556
    %v1558 = vpop.xlane.xlu0 %1557
    %v1559 = vadd.f32 %v1220, %v1221
    %1560 = vadd.xlane.f32.xlu0 %v1559
    %v1561 = vpop.xlane.xlu0 %1560
    %v1562 = vadd.f32 %v1222, %v1223
    %1563 = vadd.xlane.f32.xlu0 %v1562
    %v1564 = vpop.xlane.xlu0 %1563
    %v1565 = vadd.f32 %v1224, %v1225
    %1566 = vadd.xlane.f32.xlu0 %v1565
    %v1567 = vpop.xlane.xlu0 %1566
    %v1568 = vadd.f32 %v1226, %v1227
    %1569 = vadd.xlane.f32.xlu0 %v1568
    %v1570 = vpop.xlane.xlu0 %1569
    %v1571 = vadd.f32 %v1228, %v1229
    %1572 = vadd.xlane.f32.xlu0 %v1571
    %v1573 = vpop.xlane.xlu0 %1572
    %v1574 = vadd.f32 %v1230, %v1231
    %1575 = vadd.xlane.f32.xlu0 %v1574
    %v1576 = vpop.xlane.xlu0 %1575
    %v1577 = vadd.f32 %v1232, %v1233
    %1578 = vadd.xlane.f32.xlu0 %v1577
    %v1579 = vpop.xlane.xlu0 %1578
    %v1580 = vadd.f32 %v1234, %v1235
    %1581 = vadd.xlane.f32.xlu0 %v1580
    %v1582 = vpop.xlane.xlu0 %1581
    %v1583 = vadd.f32 %v1236, %v1237
    %1584 = vadd.xlane.f32.xlu0 %v1583
    %v1585 = vpop.xlane.xlu0 %1584
    %v1586 = vadd.f32 %v1238, %v1239
    %1587 = vadd.xlane.f32.xlu0 %v1586
    %v1588 = vpop.xlane.xlu0 %1587
    %v1589 = vadd.f32 %v1240, %v1241
    %1590 = vadd.xlane.f32.xlu0 %v1589
    %v1591 = vpop.xlane.xlu0 %1590
    %v1592 = vadd.f32 %v1242, %v1243
    %1593 = vadd.xlane.f32.xlu0 %v1592
    %v1594 = vpop.xlane.xlu0 %1593
    %v1595 = vadd.f32 %v1244, %v1245
    %1596 = vadd.xlane.f32.xlu0 %v1595
    %v1597 = vpop.xlane.xlu0 %1596
    %v1598 = vadd.f32 %v1246, %v1247
    %1599 = vadd.xlane.f32.xlu0 %v1598
    %v1600 = vpop.xlane.xlu0 %1599
    %v1601 = vadd.f32 %v1248, %v1249
    %1602 = vadd.xlane.f32.xlu0 %v1601
    %v1603 = vpop.xlane.xlu0 %1602
    %v1604 = vadd.f32 %v1250, %v1251
    %1605 = vadd.xlane.f32.xlu0 %v1604
    %v1606 = vpop.xlane.xlu0 %1605
    %v1607 = vadd.f32 %v1252, %v1253
    %1608 = vadd.xlane.f32.xlu0 %v1607
    %v1609 = vpop.xlane.xlu0 %1608
    %v1610 = vadd.f32 %v1254, %v1255
    %1611 = vadd.xlane.f32.xlu0 %v1610
    %v1612 = vpop.xlane.xlu0 %1611
    %v1613 = vadd.f32 %v1256, %v1257
    %1614 = vadd.xlane.f32.xlu0 %v1613
    %v1615 = vpop.xlane.xlu0 %1614
    %v1616 = vadd.f32 %v1258, %v1259
    %1617 = vadd.xlane.f32.xlu0 %v1616
    %v1618 = vpop.xlane.xlu0 %1617
    %v1619 = vadd.f32 %v1260, %v1261
    %1620 = vadd.xlane.f32.xlu0 %v1619
    %v1621 = vpop.xlane.xlu0 %1620
    %v1622 = vadd.f32 %v1262, %v1263
    %1623 = vadd.xlane.f32.xlu0 %v1622
    %v1624 = vpop.xlane.xlu0 %1623
    %v1625 = vadd.f32 %v1264, %v1265
    %1626 = vadd.xlane.f32.xlu0 %v1625
    %v1627 = vpop.xlane.xlu0 %1626
    %v1628 = vadd.f32 %v1266, %v1267
    %1629 = vadd.xlane.f32.xlu0 %v1628
    %v1630 = vpop.xlane.xlu0 %1629
    %v1631 = vadd.f32 %v1268, %v1269
    %1632 = vadd.xlane.f32.xlu0 %v1631
    %v1633 = vpop.xlane.xlu0 %1632
    %v1634 = vadd.f32 %v1270, %v1271
    %1635 = vadd.xlane.f32.xlu0 %v1634
    %v1636 = vpop.xlane.xlu0 %1635
    %v1637 = vadd.f32 %v1272, %v1273
    %1638 = vadd.xlane.f32.xlu0 %v1637
    %v1639 = vpop.xlane.xlu0 %1638
    %v1640 = vadd.f32 %v1274, %v1275
    %1641 = vadd.xlane.f32.xlu0 %v1640
    %v1642 = vpop.xlane.xlu0 %1641
    %v1643 = vadd.f32 %v1276, %v1277
    %1644 = vadd.xlane.f32.xlu0 %v1643
    %v1645 = vpop.xlane.xlu0 %1644
    %v1646 = vadd.f32 %v1278, %v1279
    %1647 = vadd.xlane.f32.xlu0 %v1646
    %v1648 = vpop.xlane.xlu0 %1647
    %v1649 = vadd.f32 %v1280, %v1281
    %1650 = vadd.xlane.f32.xlu0 %v1649
    %v1651 = vpop.xlane.xlu0 %1650
    %v1652 = vadd.f32 %v1282, %v1283
    %1653 = vadd.xlane.f32.xlu0 %v1652
    %v1654 = vpop.xlane.xlu0 %1653
    %v1655 = vadd.f32 %v1284, %v1285
    %1656 = vadd.xlane.f32.xlu0 %v1655
    %v1657 = vpop.xlane.xlu0 %1656
    %v1658 = vadd.f32 %v1286, %v1287
    %1659 = vadd.xlane.f32.xlu0 %v1658
    %v1660 = vpop.xlane.xlu0 %1659
    %v1661 = vadd.f32 %v1288, %v1289
    %1662 = vadd.xlane.f32.xlu0 %v1661
    %v1663 = vpop.xlane.xlu0 %1662
    %v1664 = vadd.f32 %v1290, %v1291
    %1665 = vadd.xlane.f32.xlu0 %v1664
    %v1666 = vpop.xlane.xlu0 %1665
    %v1667 = vadd.f32 %v1292, %v1293
    %1668 = vadd.xlane.f32.xlu0 %v1667
    %v1669 = vpop.xlane.xlu0 %1668
    %v1670 = vadd.f32 %v1294, %v1295
    %1671 = vadd.xlane.f32.xlu0 %v1670
    %v1672 = vpop.xlane.xlu0 %1671
    %v1673 = vadd.f32 %v1296, %v1297
    %1674 = vadd.xlane.f32.xlu0 %v1673
    %v1675 = vpop.xlane.xlu0 %1674
    %v1676 = vadd.f32 %v1298, %v1299
    %1677 = vadd.xlane.f32.xlu0 %v1676
    %v1678 = vpop.xlane.xlu0 %1677
    %v1679 = vadd.f32 %v1300, %v1301
    %1680 = vadd.xlane.f32.xlu0 %v1679
    %v1681 = vpop.xlane.xlu0 %1680
    %v1682 = vadd.f32 %v1302, %v1303
    %1683 = vadd.xlane.f32.xlu0 %v1682
    %v1684 = vpop.xlane.xlu0 %1683
    %v1685 = vadd.f32 %v1304, %v1305
    %1686 = vadd.xlane.f32.xlu0 %v1685
    %v1687 = vpop.xlane.xlu0 %1686
    %v1688 = vadd.f32 %v1306, %v1307
    %1689 = vadd.xlane.f32.xlu0 %v1688
    %v1690 = vpop.xlane.xlu0 %1689
    %v1691 = vadd.f32 %v1308, %v1309
    %1692 = vadd.xlane.f32.xlu0 %v1691
    %v1693 = vpop.xlane.xlu0 %1692
    %v1694 = vmul.f32 %v1312, 0.003921569
    %v1695 = vmul.f32 %v1315, 0.003921569
    %v1696 = vmul.f32 %v1318, 0.003921569
    %v1697 = vmul.f32 %v1321, 0.003921569
    %v1698 = vmul.f32 %v1324, 0.003921569
    %v1699 = vmul.f32 %v1327, 0.003921569
    %v1700 = vmul.f32 %v1330, 0.003921569
    %v1701 = vmul.f32 %v1333, 0.003921569
    %v1702 = vmul.f32 %v1336, 0.003921569
    %v1703 = vmul.f32 %v1339, 0.003921569
    %v1704 = vmul.f32 %v1342, 0.003921569
    %v1705 = vmul.f32 %v1345, 0.003921569
    %v1706 = vmul.f32 %v1348, 0.003921569
    %v1707 = vmul.f32 %v1351, 0.003921569
    %v1708 = vmul.f32 %v1354, 0.003921569
    %v1709 = vmul.f32 %v1357, 0.003921569
    %v1710 = vmul.f32 %v1360, 0.003921569
    %v1711 = vmul.f32 %v1363, 0.003921569
    %v1712 = vmul.f32 %v1366, 0.003921569
    %v1713 = vmul.f32 %v1369, 0.003921569
    %v1714 = vmul.f32 %v1372, 0.003921569
    %v1715 = vmul.f32 %v1375, 0.003921569
    %v1716 = vmul.f32 %v1378, 0.003921569
    %v1717 = vmul.f32 %v1381, 0.003921569
    %v1718 = vmul.f32 %v1384, 0.003921569
    %v1719 = vmul.f32 %v1387, 0.003921569
    %v1720 = vmul.f32 %v1390, 0.003921569
    %v1721 = vmul.f32 %v1393, 0.003921569
    %v1722 = vmul.f32 %v1396, 0.003921569
    %v1723 = vmul.f32 %v1399, 0.003921569
    %v1724 = vmul.f32 %v1402, 0.003921569
    %v1725 = vmul.f32 %v1405, 0.003921569
    %v1726 = vmul.f32 %v1408, 0.003921569
    %v1727 = vmul.f32 %v1411, 0.003921569
    %v1728 = vmul.f32 %v1414, 0.003921569
    %v1729 = vmul.f32 %v1417, 0.003921569
    %v1730 = vmul.f32 %v1420, 0.003921569
    %v1731 = vmul.f32 %v1423, 0.003921569
    %v1732 = vmul.f32 %v1426, 0.003921569
    %v1733 = vmul.f32 %v1429, 0.003921569
    %v1734 = vmul.f32 %v1432, 0.003921569
    %v1735 = vmul.f32 %v1435, 0.003921569
    %v1736 = vmul.f32 %v1438, 0.003921569
    %v1737 = vmul.f32 %v1441, 0.003921569
    %v1738 = vmul.f32 %v1444, 0.003921569
    %v1739 = vmul.f32 %v1447, 0.003921569
    %v1740 = vmul.f32 %v1450, 0.003921569
    %v1741 = vmul.f32 %v1453, 0.003921569
    %v1742 = vmul.f32 %v1456, 0.003921569
    %v1743 = vmul.f32 %v1459, 0.003921569
    %v1744 = vmul.f32 %v1462, 0.003921569
    %v1745 = vmul.f32 %v1465, 0.003921569
    %v1746 = vmul.f32 %v1468, 0.003921569
    %v1747 = vmul.f32 %v1471, 0.003921569
    %v1748 = vmul.f32 %v1474, 0.003921569
    %v1749 = vmul.f32 %v1477, 0.003921569
    %v1750 = vmul.f32 %v1480, 0.003921569
    %v1751 = vmul.f32 %v1483, 0.003921569
    %v1752 = vmul.f32 %v1486, 0.003921569
    %v1753 = vmul.f32 %v1489, 0.003921569
    %v1754 = vmul.f32 %v1492, 0.003921569
    %v1755 = vmul.f32 %v1495, 0.003921569
    %v1756 = vmul.f32 %v1498, 0.003921569
    %v1757 = vmul.f32 %v1501, 0.003921569
    %v1758 = vmul.f32 %v1504, 0.003921569
    %v1759 = vmul.f32 %v1507, 0.003921569
    %v1760 = vmul.f32 %v1510, 0.003921569
    %v1761 = vmul.f32 %v1513, 0.003921569
    %v1762 = vmul.f32 %v1516, 0.003921569
    %v1763 = vmul.f32 %v1519, 0.003921569
    %v1764 = vmul.f32 %v1522, 0.003921569
    %v1765 = vmul.f32 %v1525, 0.003921569
    %v1766 = vmul.f32 %v1528, 0.003921569
    %v1767 = vmul.f32 %v1531, 0.003921569
    %v1768 = vmul.f32 %v1534, 0.003921569
    %v1769 = vmul.f32 %v1537, 0.003921569
    %v1770 = vmul.f32 %v1540, 0.003921569
    %v1771 = vmul.f32 %v1543, 0.003921569
    %v1772 = vmul.f32 %v1546, 0.003921569
    %v1773 = vmul.f32 %v1549, 0.003921569
    %v1774 = vmul.f32 %v1552, 0.003921569
    %v1775 = vmul.f32 %v1555, 0.003921569
    %v1776 = vmul.f32 %v1558, 0.003921569
    %v1777 = vmul.f32 %v1561, 0.003921569
    %v1778 = vmul.f32 %v1564, 0.003921569
    %v1779 = vmul.f32 %v1567, 0.003921569
    %v1780 = vmul.f32 %v1570, 0.003921569
    %v1781 = vmul.f32 %v1573, 0.003921569
    %v1782 = vmul.f32 %v1576, 0.003921569
    %v1783 = vmul.f32 %v1579, 0.003921569
    %v1784 = vmul.f32 %v1582, 0.003921569
    %v1785 = vmul.f32 %v1585, 0.003921569
    %v1786 = vmul.f32 %v1588, 0.003921569
    %v1787 = vmul.f32 %v1591, 0.003921569
    %v1788 = vmul.f32 %v1594, 0.003921569
    %v1789 = vmul.f32 %v1597, 0.003921569
    %v1790 = vmul.f32 %v1600, 0.003921569
    %v1791 = vmul.f32 %v1603, 0.003921569
    %v1792 = vmul.f32 %v1606, 0.003921569
    %v1793 = vmul.f32 %v1609, 0.003921569
    %v1794 = vmul.f32 %v1612, 0.003921569
    %v1795 = vmul.f32 %v1615, 0.003921569
    %v1796 = vmul.f32 %v1618, 0.003921569
    %v1797 = vmul.f32 %v1621, 0.003921569
    %v1798 = vmul.f32 %v1624, 0.003921569
    %v1799 = vmul.f32 %v1627, 0.003921569
    %v1800 = vmul.f32 %v1630, 0.003921569
    %v1801 = vmul.f32 %v1633, 0.003921569
    %v1802 = vmul.f32 %v1636, 0.003921569
    %v1803 = vmul.f32 %v1639, 0.003921569
    %v1804 = vmul.f32 %v1642, 0.003921569
    %v1805 = vmul.f32 %v1645, 0.003921569
    %v1806 = vmul.f32 %v1648, 0.003921569
    %v1807 = vmul.f32 %v1651, 0.003921569
    %v1808 = vmul.f32 %v1654, 0.003921569
    %v1809 = vmul.f32 %v1657, 0.003921569
    %v1810 = vmul.f32 %v1660, 0.003921569
    %v1811 = vmul.f32 %v1663, 0.003921569
    %v1812 = vmul.f32 %v1666, 0.003921569
    %v1813 = vmul.f32 %v1669, 0.003921569
    %v1814 = vmul.f32 %v1672, 0.003921569
    %v1815 = vmul.f32 %v1675, 0.003921569
    %v1816 = vmul.f32 %v1678, 0.003921569
    %v1817 = vmul.f32 %v1681, 0.003921569
    %v1818 = vmul.f32 %v1684, 0.003921569
    %v1819 = vmul.f32 %v1687, 0.003921569
    %v1820 = vmul.f32 %v1690, 0.003921569
    %v1821 = vmul.f32 %v1693, 0.003921569
    %v1822 = vrsqrt.pop %v1694
    %v1823 = vmul.f32 %v1694, %v1822
    %vm1824 = vcmp.eq.f32.partialorder %v1694, inf
    %v1825 = vsel %vm1824, %v1694, %v1823
    %vm1826 = vcmp.eq.f32.partialorder %v1694, 0.0
    %v1827 = vand.u32 %v1694, 2147483648
    %v1828 = vsel %vm1826, %v1827, %v1825
    %v1829 = vrsqrt.pop %v1695
    %v1830 = vmul.f32 %v1695, %v1829
    %vm1831 = vcmp.eq.f32.partialorder %v1695, inf
    %v1832 = vsel %vm1831, %v1695, %v1830
    %vm1833 = vcmp.eq.f32.partialorder %v1695, 0.0
    %v1834 = vand.u32 %v1695, 2147483648
    %v1835 = vsel %vm1833, %v1834, %v1832
    %v1836 = vrsqrt.pop %v1696
    %v1837 = vmul.f32 %v1696, %v1836
    %vm1838 = vcmp.eq.f32.partialorder %v1696, inf
    %v1839 = vsel %vm1838, %v1696, %v1837
    %vm1840 = vcmp.eq.f32.partialorder %v1696, 0.0
    %v1841 = vand.u32 %v1696, 2147483648
    %v1842 = vsel %vm1840, %v1841, %v1839
    %v1843 = vrsqrt.pop %v1697
    %v1844 = vmul.f32 %v1697, %v1843
    %vm1845 = vcmp.eq.f32.partialorder %v1697, inf
    %v1846 = vsel %vm1845, %v1697, %v1844
    %vm1847 = vcmp.eq.f32.partialorder %v1697, 0.0
    %v1848 = vand.u32 %v1697, 2147483648
    %v1849 = vsel %vm1847, %v1848, %v1846
    %v1850 = vrsqrt.pop %v1698
    %v1851 = vmul.f32 %v1698, %v1850
    %vm1852 = vcmp.eq.f32.partialorder %v1698, inf
    %v1853 = vsel %vm1852, %v1698, %v1851
    %vm1854 = vcmp.eq.f32.partialorder %v1698, 0.0
    %v1855 = vand.u32 %v1698, 2147483648
    %v1856 = vsel %vm1854, %v1855, %v1853
    %v1857 = vrsqrt.pop %v1699
    %v1858 = vmul.f32 %v1699, %v1857
    %vm1859 = vcmp.eq.f32.partialorder %v1699, inf
    %v1860 = vsel %vm1859, %v1699, %v1858
    %vm1861 = vcmp.eq.f32.partialorder %v1699, 0.0
    %v1862 = vand.u32 %v1699, 2147483648
    %v1863 = vsel %vm1861, %v1862, %v1860
    %v1864 = vrsqrt.pop %v1700
    %v1865 = vmul.f32 %v1700, %v1864
    %vm1866 = vcmp.eq.f32.partialorder %v1700, inf
    %v1867 = vsel %vm1866, %v1700, %v1865
    %vm1868 = vcmp.eq.f32.partialorder %v1700, 0.0
    %v1869 = vand.u32 %v1700, 2147483648
    %v1870 = vsel %vm1868, %v1869, %v1867
    %v1871 = vrsqrt.pop %v1701
    %v1872 = vmul.f32 %v1701, %v1871
    %vm1873 = vcmp.eq.f32.partialorder %v1701, inf
    %v1874 = vsel %vm1873, %v1701, %v1872
    %vm1875 = vcmp.eq.f32.partialorder %v1701, 0.0
    %v1876 = vand.u32 %v1701, 2147483648
    %v1877 = vsel %vm1875, %v1876, %v1874
    %v1878 = vrsqrt.pop %v1702
    %v1879 = vmul.f32 %v1702, %v1878
    %vm1880 = vcmp.eq.f32.partialorder %v1702, inf
    %v1881 = vsel %vm1880, %v1702, %v1879
    %vm1882 = vcmp.eq.f32.partialorder %v1702, 0.0
    %v1883 = vand.u32 %v1702, 2147483648
    %v1884 = vsel %vm1882, %v1883, %v1881
    %v1885 = vrsqrt.pop %v1703
    %v1886 = vmul.f32 %v1703, %v1885
    %vm1887 = vcmp.eq.f32.partialorder %v1703, inf
    %v1888 = vsel %vm1887, %v1703, %v1886
    %vm1889 = vcmp.eq.f32.partialorder %v1703, 0.0
    %v1890 = vand.u32 %v1703, 2147483648
    %v1891 = vsel %vm1889, %v1890, %v1888
    %v1892 = vrsqrt.pop %v1704
    %v1893 = vmul.f32 %v1704, %v1892
    %vm1894 = vcmp.eq.f32.partialorder %v1704, inf
    %v1895 = vsel %vm1894, %v1704, %v1893
    %vm1896 = vcmp.eq.f32.partialorder %v1704, 0.0
    %v1897 = vand.u32 %v1704, 2147483648
    %v1898 = vsel %vm1896, %v1897, %v1895
    %v1899 = vrsqrt.pop %v1705
    %v1900 = vmul.f32 %v1705, %v1899
    %vm1901 = vcmp.eq.f32.partialorder %v1705, inf
    %v1902 = vsel %vm1901, %v1705, %v1900
    %vm1903 = vcmp.eq.f32.partialorder %v1705, 0.0
    %v1904 = vand.u32 %v1705, 2147483648
    %v1905 = vsel %vm1903, %v1904, %v1902
    %v1906 = vrsqrt.pop %v1706
    %v1907 = vmul.f32 %v1706, %v1906
    %vm1908 = vcmp.eq.f32.partialorder %v1706, inf
    %v1909 = vsel %vm1908, %v1706, %v1907
    %vm1910 = vcmp.eq.f32.partialorder %v1706, 0.0
    %v1911 = vand.u32 %v1706, 2147483648
    %v1912 = vsel %vm1910, %v1911, %v1909
    %v1913 = vrsqrt.pop %v1707
    %v1914 = vmul.f32 %v1707, %v1913
    %vm1915 = vcmp.eq.f32.partialorder %v1707, inf
    %v1916 = vsel %vm1915, %v1707, %v1914
    %vm1917 = vcmp.eq.f32.partialorder %v1707, 0.0
    %v1918 = vand.u32 %v1707, 2147483648
    %v1919 = vsel %vm1917, %v1918, %v1916
    %v1920 = vrsqrt.pop %v1708
    %v1921 = vmul.f32 %v1708, %v1920
    %vm1922 = vcmp.eq.f32.partialorder %v1708, inf
    %v1923 = vsel %vm1922, %v1708, %v1921
    %vm1924 = vcmp.eq.f32.partialorder %v1708, 0.0
    %v1925 = vand.u32 %v1708, 2147483648
    %v1926 = vsel %vm1924, %v1925, %v1923
    %v1927 = vrsqrt.pop %v1709
    %v1928 = vmul.f32 %v1709, %v1927
    %vm1929 = vcmp.eq.f32.partialorder %v1709, inf
    %v1930 = vsel %vm1929, %v1709, %v1928
    %vm1931 = vcmp.eq.f32.partialorder %v1709, 0.0
    %v1932 = vand.u32 %v1709, 2147483648
    %v1933 = vsel %vm1931, %v1932, %v1930
    %v1934 = vrsqrt.pop %v1710
    %v1935 = vmul.f32 %v1710, %v1934
    %vm1936 = vcmp.eq.f32.partialorder %v1710, inf
    %v1937 = vsel %vm1936, %v1710, %v1935
    %vm1938 = vcmp.eq.f32.partialorder %v1710, 0.0
    %v1939 = vand.u32 %v1710, 2147483648
    %v1940 = vsel %vm1938, %v1939, %v1937
    %v1941 = vrsqrt.pop %v1711
    %v1942 = vmul.f32 %v1711, %v1941
    %vm1943 = vcmp.eq.f32.partialorder %v1711, inf
    %v1944 = vsel %vm1943, %v1711, %v1942
    %vm1945 = vcmp.eq.f32.partialorder %v1711, 0.0
    %v1946 = vand.u32 %v1711, 2147483648
    %v1947 = vsel %vm1945, %v1946, %v1944
    %v1948 = vrsqrt.pop %v1712
    %v1949 = vmul.f32 %v1712, %v1948
    %vm1950 = vcmp.eq.f32.partialorder %v1712, inf
    %v1951 = vsel %vm1950, %v1712, %v1949
    %vm1952 = vcmp.eq.f32.partialorder %v1712, 0.0
    %v1953 = vand.u32 %v1712, 2147483648
    %v1954 = vsel %vm1952, %v1953, %v1951
    %v1955 = vrsqrt.pop %v1713
    %v1956 = vmul.f32 %v1713, %v1955
    %vm1957 = vcmp.eq.f32.partialorder %v1713, inf
    %v1958 = vsel %vm1957, %v1713, %v1956
    %vm1959 = vcmp.eq.f32.partialorder %v1713, 0.0
    %v1960 = vand.u32 %v1713, 2147483648
    %v1961 = vsel %vm1959, %v1960, %v1958
    %v1962 = vrsqrt.pop %v1714
    %v1963 = vmul.f32 %v1714, %v1962
    %vm1964 = vcmp.eq.f32.partialorder %v1714, inf
    %v1965 = vsel %vm1964, %v1714, %v1963
    %vm1966 = vcmp.eq.f32.partialorder %v1714, 0.0
    %v1967 = vand.u32 %v1714, 2147483648
    %v1968 = vsel %vm1966, %v1967, %v1965
    %v1969 = vrsqrt.pop %v1715
    %v1970 = vmul.f32 %v1715, %v1969
    %vm1971 = vcmp.eq.f32.partialorder %v1715, inf
    %v1972 = vsel %vm1971, %v1715, %v1970
    %vm1973 = vcmp.eq.f32.partialorder %v1715, 0.0
    %v1974 = vand.u32 %v1715, 2147483648
    %v1975 = vsel %vm1973, %v1974, %v1972
    %v1976 = vrsqrt.pop %v1716
    %v1977 = vmul.f32 %v1716, %v1976
    %vm1978 = vcmp.eq.f32.partialorder %v1716, inf
    %v1979 = vsel %vm1978, %v1716, %v1977
    %vm1980 = vcmp.eq.f32.partialorder %v1716, 0.0
    %v1981 = vand.u32 %v1716, 2147483648
    %v1982 = vsel %vm1980, %v1981, %v1979
    %v1983 = vrsqrt.pop %v1717
    %v1984 = vmul.f32 %v1717, %v1983
    %vm1985 = vcmp.eq.f32.partialorder %v1717, inf
    %v1986 = vsel %vm1985, %v1717, %v1984
    %vm1987 = vcmp.eq.f32.partialorder %v1717, 0.0
    %v1988 = vand.u32 %v1717, 2147483648
    %v1989 = vsel %vm1987, %v1988, %v1986
    %v1990 = vrsqrt.pop %v1718
    %v1991 = vmul.f32 %v1718, %v1990
    %vm1992 = vcmp.eq.f32.partialorder %v1718, inf
    %v1993 = vsel %vm1992, %v1718, %v1991
    %vm1994 = vcmp.eq.f32.partialorder %v1718, 0.0
    %v1995 = vand.u32 %v1718, 2147483648
    %v1996 = vsel %vm1994, %v1995, %v1993
    %v1997 = vrsqrt.pop %v1719
    %v1998 = vmul.f32 %v1719, %v1997
    %vm1999 = vcmp.eq.f32.partialorder %v1719, inf
    %v2000 = vsel %vm1999, %v1719, %v1998
    %vm2001 = vcmp.eq.f32.partialorder %v1719, 0.0
    %v2002 = vand.u32 %v1719, 2147483648
    %v2003 = vsel %vm2001, %v2002, %v2000
    %v2004 = vrsqrt.pop %v1720
    %v2005 = vmul.f32 %v1720, %v2004
    %vm2006 = vcmp.eq.f32.partialorder %v1720, inf
    %v2007 = vsel %vm2006, %v1720, %v2005
    %vm2008 = vcmp.eq.f32.partialorder %v1720, 0.0
    %v2009 = vand.u32 %v1720, 2147483648
    %v2010 = vsel %vm2008, %v2009, %v2007
    %v2011 = vrsqrt.pop %v1721
    %v2012 = vmul.f32 %v1721, %v2011
    %vm2013 = vcmp.eq.f32.partialorder %v1721, inf
    %v2014 = vsel %vm2013, %v1721, %v2012
    %vm2015 = vcmp.eq.f32.partialorder %v1721, 0.0
    %v2016 = vand.u32 %v1721, 2147483648
    %v2017 = vsel %vm2015, %v2016, %v2014
    %v2018 = vrsqrt.pop %v1722
    %v2019 = vmul.f32 %v1722, %v2018
    %vm2020 = vcmp.eq.f32.partialorder %v1722, inf
    %v2021 = vsel %vm2020, %v1722, %v2019
    %vm2022 = vcmp.eq.f32.partialorder %v1722, 0.0
    %v2023 = vand.u32 %v1722, 2147483648
    %v2024 = vsel %vm2022, %v2023, %v2021
    %v2025 = vrsqrt.pop %v1723
    %v2026 = vmul.f32 %v1723, %v2025
    %vm2027 = vcmp.eq.f32.partialorder %v1723, inf
    %v2028 = vsel %vm2027, %v1723, %v2026
    %vm2029 = vcmp.eq.f32.partialorder %v1723, 0.0
    %v2030 = vand.u32 %v1723, 2147483648
    %v2031 = vsel %vm2029, %v2030, %v2028
    %v2032 = vrsqrt.pop %v1724
    %v2033 = vmul.f32 %v1724, %v2032
    %vm2034 = vcmp.eq.f32.partialorder %v1724, inf
    %v2035 = vsel %vm2034, %v1724, %v2033
    %vm2036 = vcmp.eq.f32.partialorder %v1724, 0.0
    %v2037 = vand.u32 %v1724, 2147483648
    %v2038 = vsel %vm2036, %v2037, %v2035
    %v2039 = vrsqrt.pop %v1725
    %v2040 = vmul.f32 %v1725, %v2039
    %vm2041 = vcmp.eq.f32.partialorder %v1725, inf
    %v2042 = vsel %vm2041, %v1725, %v2040
    %vm2043 = vcmp.eq.f32.partialorder %v1725, 0.0
    %v2044 = vand.u32 %v1725, 2147483648
    %v2045 = vsel %vm2043, %v2044, %v2042
    %v2046 = vrsqrt.pop %v1726
    %v2047 = vmul.f32 %v1726, %v2046
    %vm2048 = vcmp.eq.f32.partialorder %v1726, inf
    %v2049 = vsel %vm2048, %v1726, %v2047
    %vm2050 = vcmp.eq.f32.partialorder %v1726, 0.0
    %v2051 = vand.u32 %v1726, 2147483648
    %v2052 = vsel %vm2050, %v2051, %v2049
    %v2053 = vrsqrt.pop %v1727
    %v2054 = vmul.f32 %v1727, %v2053
    %vm2055 = vcmp.eq.f32.partialorder %v1727, inf
    %v2056 = vsel %vm2055, %v1727, %v2054
    %vm2057 = vcmp.eq.f32.partialorder %v1727, 0.0
    %v2058 = vand.u32 %v1727, 2147483648
    %v2059 = vsel %vm2057, %v2058, %v2056
    %v2060 = vrsqrt.pop %v1728
    %v2061 = vmul.f32 %v1728, %v2060
    %vm2062 = vcmp.eq.f32.partialorder %v1728, inf
    %v2063 = vsel %vm2062, %v1728, %v2061
    %vm2064 = vcmp.eq.f32.partialorder %v1728, 0.0
    %v2065 = vand.u32 %v1728, 2147483648
    %v2066 = vsel %vm2064, %v2065, %v2063
    %v2067 = vrsqrt.pop %v1729
    %v2068 = vmul.f32 %v1729, %v2067
    %vm2069 = vcmp.eq.f32.partialorder %v1729, inf
    %v2070 = vsel %vm2069, %v1729, %v2068
    %vm2071 = vcmp.eq.f32.partialorder %v1729, 0.0
    %v2072 = vand.u32 %v1729, 2147483648
    %v2073 = vsel %vm2071, %v2072, %v2070
    %v2074 = vrsqrt.pop %v1730
    %v2075 = vmul.f32 %v1730, %v2074
    %vm2076 = vcmp.eq.f32.partialorder %v1730, inf
    %v2077 = vsel %vm2076, %v1730, %v2075
    %vm2078 = vcmp.eq.f32.partialorder %v1730, 0.0
    %v2079 = vand.u32 %v1730, 2147483648
    %v2080 = vsel %vm2078, %v2079, %v2077
    %v2081 = vrsqrt.pop %v1731
    %v2082 = vmul.f32 %v1731, %v2081
    %vm2083 = vcmp.eq.f32.partialorder %v1731, inf
    %v2084 = vsel %vm2083, %v1731, %v2082
    %vm2085 = vcmp.eq.f32.partialorder %v1731, 0.0
    %v2086 = vand.u32 %v1731, 2147483648
    %v2087 = vsel %vm2085, %v2086, %v2084
    %v2088 = vrsqrt.pop %v1732
    %v2089 = vmul.f32 %v1732, %v2088
    %vm2090 = vcmp.eq.f32.partialorder %v1732, inf
    %v2091 = vsel %vm2090, %v1732, %v2089
    %vm2092 = vcmp.eq.f32.partialorder %v1732, 0.0
    %v2093 = vand.u32 %v1732, 2147483648
    %v2094 = vsel %vm2092, %v2093, %v2091
    %v2095 = vrsqrt.pop %v1733
    %v2096 = vmul.f32 %v1733, %v2095
    %vm2097 = vcmp.eq.f32.partialorder %v1733, inf
    %v2098 = vsel %vm2097, %v1733, %v2096
    %vm2099 = vcmp.eq.f32.partialorder %v1733, 0.0
    %v2100 = vand.u32 %v1733, 2147483648
    %v2101 = vsel %vm2099, %v2100, %v2098
    %v2102 = vrsqrt.pop %v1734
    %v2103 = vmul.f32 %v1734, %v2102
    %vm2104 = vcmp.eq.f32.partialorder %v1734, inf
    %v2105 = vsel %vm2104, %v1734, %v2103
    %vm2106 = vcmp.eq.f32.partialorder %v1734, 0.0
    %v2107 = vand.u32 %v1734, 2147483648
    %v2108 = vsel %vm2106, %v2107, %v2105
    %v2109 = vrsqrt.pop %v1735
    %v2110 = vmul.f32 %v1735, %v2109
    %vm2111 = vcmp.eq.f32.partialorder %v1735, inf
    %v2112 = vsel %vm2111, %v1735, %v2110
    %vm2113 = vcmp.eq.f32.partialorder %v1735, 0.0
    %v2114 = vand.u32 %v1735, 2147483648
    %v2115 = vsel %vm2113, %v2114, %v2112
    %v2116 = vrsqrt.pop %v1736
    %v2117 = vmul.f32 %v1736, %v2116
    %vm2118 = vcmp.eq.f32.partialorder %v1736, inf
    %v2119 = vsel %vm2118, %v1736, %v2117
    %vm2120 = vcmp.eq.f32.partialorder %v1736, 0.0
    %v2121 = vand.u32 %v1736, 2147483648
    %v2122 = vsel %vm2120, %v2121, %v2119
    %v2123 = vrsqrt.pop %v1737
    %v2124 = vmul.f32 %v1737, %v2123
    %vm2125 = vcmp.eq.f32.partialorder %v1737, inf
    %v2126 = vsel %vm2125, %v1737, %v2124
    %vm2127 = vcmp.eq.f32.partialorder %v1737, 0.0
    %v2128 = vand.u32 %v1737, 2147483648
    %v2129 = vsel %vm2127, %v2128, %v2126
    %v2130 = vrsqrt.pop %v1738
    %v2131 = vmul.f32 %v1738, %v2130
    %vm2132 = vcmp.eq.f32.partialorder %v1738, inf
    %v2133 = vsel %vm2132, %v1738, %v2131
    %vm2134 = vcmp.eq.f32.partialorder %v1738, 0.0
    %v2135 = vand.u32 %v1738, 2147483648
    %v2136 = vsel %vm2134, %v2135, %v2133
    %v2137 = vrsqrt.pop %v1739
    %v2138 = vmul.f32 %v1739, %v2137
    %vm2139 = vcmp.eq.f32.partialorder %v1739, inf
    %v2140 = vsel %vm2139, %v1739, %v2138
    %vm2141 = vcmp.eq.f32.partialorder %v1739, 0.0
    %v2142 = vand.u32 %v1739, 2147483648
    %v2143 = vsel %vm2141, %v2142, %v2140
    %v2144 = vrsqrt.pop %v1740
    %v2145 = vmul.f32 %v1740, %v2144
    %vm2146 = vcmp.eq.f32.partialorder %v1740, inf
    %v2147 = vsel %vm2146, %v1740, %v2145
    %vm2148 = vcmp.eq.f32.partialorder %v1740, 0.0
    %v2149 = vand.u32 %v1740, 2147483648
    %v2150 = vsel %vm2148, %v2149, %v2147
    %v2151 = vrsqrt.pop %v1741
    %v2152 = vmul.f32 %v1741, %v2151
    %vm2153 = vcmp.eq.f32.partialorder %v1741, inf
    %v2154 = vsel %vm2153, %v1741, %v2152
    %vm2155 = vcmp.eq.f32.partialorder %v1741, 0.0
    %v2156 = vand.u32 %v1741, 2147483648
    %v2157 = vsel %vm2155, %v2156, %v2154
    %v2158 = vrsqrt.pop %v1742
    %v2159 = vmul.f32 %v1742, %v2158
    %vm2160 = vcmp.eq.f32.partialorder %v1742, inf
    %v2161 = vsel %vm2160, %v1742, %v2159
    %vm2162 = vcmp.eq.f32.partialorder %v1742, 0.0
    %v2163 = vand.u32 %v1742, 2147483648
    %v2164 = vsel %vm2162, %v2163, %v2161
    %v2165 = vrsqrt.pop %v1743
    %v2166 = vmul.f32 %v1743, %v2165
    %vm2167 = vcmp.eq.f32.partialorder %v1743, inf
    %v2168 = vsel %vm2167, %v1743, %v2166
    %vm2169 = vcmp.eq.f32.partialorder %v1743, 0.0
    %v2170 = vand.u32 %v1743, 2147483648
    %v2171 = vsel %vm2169, %v2170, %v2168
    %v2172 = vrsqrt.pop %v1744
    %v2173 = vmul.f32 %v1744, %v2172
    %vm2174 = vcmp.eq.f32.partialorder %v1744, inf
    %v2175 = vsel %vm2174, %v1744, %v2173
    %vm2176 = vcmp.eq.f32.partialorder %v1744, 0.0
    %v2177 = vand.u32 %v1744, 2147483648
    %v2178 = vsel %vm2176, %v2177, %v2175
    %v2179 = vrsqrt.pop %v1745
    %v2180 = vmul.f32 %v1745, %v2179
    %vm2181 = vcmp.eq.f32.partialorder %v1745, inf
    %v2182 = vsel %vm2181, %v1745, %v2180
    %vm2183 = vcmp.eq.f32.partialorder %v1745, 0.0
    %v2184 = vand.u32 %v1745, 2147483648
    %v2185 = vsel %vm2183, %v2184, %v2182
    %v2186 = vrsqrt.pop %v1746
    %v2187 = vmul.f32 %v1746, %v2186
    %vm2188 = vcmp.eq.f32.partialorder %v1746, inf
    %v2189 = vsel %vm2188, %v1746, %v2187
    %vm2190 = vcmp.eq.f32.partialorder %v1746, 0.0
    %v2191 = vand.u32 %v1746, 2147483648
    %v2192 = vsel %vm2190, %v2191, %v2189
    %v2193 = vrsqrt.pop %v1747
    %v2194 = vmul.f32 %v1747, %v2193
    %vm2195 = vcmp.eq.f32.partialorder %v1747, inf
    %v2196 = vsel %vm2195, %v1747, %v2194
    %vm2197 = vcmp.eq.f32.partialorder %v1747, 0.0
    %v2198 = vand.u32 %v1747, 2147483648
    %v2199 = vsel %vm2197, %v2198, %v2196
    %v2200 = vrsqrt.pop %v1748
    %v2201 = vmul.f32 %v1748, %v2200
    %vm2202 = vcmp.eq.f32.partialorder %v1748, inf
    %v2203 = vsel %vm2202, %v1748, %v2201
    %vm2204 = vcmp.eq.f32.partialorder %v1748, 0.0
    %v2205 = vand.u32 %v1748, 2147483648
    %v2206 = vsel %vm2204, %v2205, %v2203
    %v2207 = vrsqrt.pop %v1749
    %v2208 = vmul.f32 %v1749, %v2207
    %vm2209 = vcmp.eq.f32.partialorder %v1749, inf
    %v2210 = vsel %vm2209, %v1749, %v2208
    %vm2211 = vcmp.eq.f32.partialorder %v1749, 0.0
    %v2212 = vand.u32 %v1749, 2147483648
    %v2213 = vsel %vm2211, %v2212, %v2210
    %v2214 = vrsqrt.pop %v1750
    %v2215 = vmul.f32 %v1750, %v2214
    %vm2216 = vcmp.eq.f32.partialorder %v1750, inf
    %v2217 = vsel %vm2216, %v1750, %v2215
    %vm2218 = vcmp.eq.f32.partialorder %v1750, 0.0
    %v2219 = vand.u32 %v1750, 2147483648
    %v2220 = vsel %vm2218, %v2219, %v2217
    %v2221 = vrsqrt.pop %v1751
    %v2222 = vmul.f32 %v1751, %v2221
    %vm2223 = vcmp.eq.f32.partialorder %v1751, inf
    %v2224 = vsel %vm2223, %v1751, %v2222
    %vm2225 = vcmp.eq.f32.partialorder %v1751, 0.0
    %v2226 = vand.u32 %v1751, 2147483648
    %v2227 = vsel %vm2225, %v2226, %v2224
    %v2228 = vrsqrt.pop %v1752
    %v2229 = vmul.f32 %v1752, %v2228
    %vm2230 = vcmp.eq.f32.partialorder %v1752, inf
    %v2231 = vsel %vm2230, %v1752, %v2229
    %vm2232 = vcmp.eq.f32.partialorder %v1752, 0.0
    %v2233 = vand.u32 %v1752, 2147483648
    %v2234 = vsel %vm2232, %v2233, %v2231
    %v2235 = vrsqrt.pop %v1753
    %v2236 = vmul.f32 %v1753, %v2235
    %vm2237 = vcmp.eq.f32.partialorder %v1753, inf
    %v2238 = vsel %vm2237, %v1753, %v2236
    %vm2239 = vcmp.eq.f32.partialorder %v1753, 0.0
    %v2240 = vand.u32 %v1753, 2147483648
    %v2241 = vsel %vm2239, %v2240, %v2238
    %v2242 = vrsqrt.pop %v1754
    %v2243 = vmul.f32 %v1754, %v2242
    %vm2244 = vcmp.eq.f32.partialorder %v1754, inf
    %v2245 = vsel %vm2244, %v1754, %v2243
    %vm2246 = vcmp.eq.f32.partialorder %v1754, 0.0
    %v2247 = vand.u32 %v1754, 2147483648
    %v2248 = vsel %vm2246, %v2247, %v2245
    %v2249 = vrsqrt.pop %v1755
    %v2250 = vmul.f32 %v1755, %v2249
    %vm2251 = vcmp.eq.f32.partialorder %v1755, inf
    %v2252 = vsel %vm2251, %v1755, %v2250
    %vm2253 = vcmp.eq.f32.partialorder %v1755, 0.0
    %v2254 = vand.u32 %v1755, 2147483648
    %v2255 = vsel %vm2253, %v2254, %v2252
    %v2256 = vrsqrt.pop %v1756
    %v2257 = vmul.f32 %v1756, %v2256
    %vm2258 = vcmp.eq.f32.partialorder %v1756, inf
    %v2259 = vsel %vm2258, %v1756, %v2257
    %vm2260 = vcmp.eq.f32.partialorder %v1756, 0.0
    %v2261 = vand.u32 %v1756, 2147483648
    %v2262 = vsel %vm2260, %v2261, %v2259
    %v2263 = vrsqrt.pop %v1757
    %v2264 = vmul.f32 %v1757, %v2263
    %vm2265 = vcmp.eq.f32.partialorder %v1757, inf
    %v2266 = vsel %vm2265, %v1757, %v2264
    %vm2267 = vcmp.eq.f32.partialorder %v1757, 0.0
    %v2268 = vand.u32 %v1757, 2147483648
    %v2269 = vsel %vm2267, %v2268, %v2266
    %v2270 = vrsqrt.pop %v1758
    %v2271 = vmul.f32 %v1758, %v2270
    %vm2272 = vcmp.eq.f32.partialorder %v1758, inf
    %v2273 = vsel %vm2272, %v1758, %v2271
    %vm2274 = vcmp.eq.f32.partialorder %v1758, 0.0
    %v2275 = vand.u32 %v1758, 2147483648
    %v2276 = vsel %vm2274, %v2275, %v2273
    %v2277 = vrsqrt.pop %v1759
    %v2278 = vmul.f32 %v1759, %v2277
    %vm2279 = vcmp.eq.f32.partialorder %v1759, inf
    %v2280 = vsel %vm2279, %v1759, %v2278
    %vm2281 = vcmp.eq.f32.partialorder %v1759, 0.0
    %v2282 = vand.u32 %v1759, 2147483648
    %v2283 = vsel %vm2281, %v2282, %v2280
    %v2284 = vrsqrt.pop %v1760
    %v2285 = vmul.f32 %v1760, %v2284
    %vm2286 = vcmp.eq.f32.partialorder %v1760, inf
    %v2287 = vsel %vm2286, %v1760, %v2285
    %vm2288 = vcmp.eq.f32.partialorder %v1760, 0.0
    %v2289 = vand.u32 %v1760, 2147483648
    %v2290 = vsel %vm2288, %v2289, %v2287
    %v2291 = vrsqrt.pop %v1761
    %v2292 = vmul.f32 %v1761, %v2291
    %vm2293 = vcmp.eq.f32.partialorder %v1761, inf
    %v2294 = vsel %vm2293, %v1761, %v2292
    %vm2295 = vcmp.eq.f32.partialorder %v1761, 0.0
    %v2296 = vand.u32 %v1761, 2147483648
    %v2297 = vsel %vm2295, %v2296, %v2294
    %v2298 = vrsqrt.pop %v1762
    %v2299 = vmul.f32 %v1762, %v2298
    %vm2300 = vcmp.eq.f32.partialorder %v1762, inf
    %v2301 = vsel %vm2300, %v1762, %v2299
    %vm2302 = vcmp.eq.f32.partialorder %v1762, 0.0
    %v2303 = vand.u32 %v1762, 2147483648
    %v2304 = vsel %vm2302, %v2303, %v2301
    %v2305 = vrsqrt.pop %v1763
    %v2306 = vmul.f32 %v1763, %v2305
    %vm2307 = vcmp.eq.f32.partialorder %v1763, inf
    %v2308 = vsel %vm2307, %v1763, %v2306
    %vm2309 = vcmp.eq.f32.partialorder %v1763, 0.0
    %v2310 = vand.u32 %v1763, 2147483648
    %v2311 = vsel %vm2309, %v2310, %v2308
    %v2312 = vrsqrt.pop %v1764
    %v2313 = vmul.f32 %v1764, %v2312
    %vm2314 = vcmp.eq.f32.partialorder %v1764, inf
    %v2315 = vsel %vm2314, %v1764, %v2313
    %vm2316 = vcmp.eq.f32.partialorder %v1764, 0.0
    %v2317 = vand.u32 %v1764, 2147483648
    %v2318 = vsel %vm2316, %v2317, %v2315
    %v2319 = vrsqrt.pop %v1765
    %v2320 = vmul.f32 %v1765, %v2319
    %vm2321 = vcmp.eq.f32.partialorder %v1765, inf
    %v2322 = vsel %vm2321, %v1765, %v2320
    %vm2323 = vcmp.eq.f32.partialorder %v1765, 0.0
    %v2324 = vand.u32 %v1765, 2147483648
    %v2325 = vsel %vm2323, %v2324, %v2322
    %v2326 = vrsqrt.pop %v1766
    %v2327 = vmul.f32 %v1766, %v2326
    %vm2328 = vcmp.eq.f32.partialorder %v1766, inf
    %v2329 = vsel %vm2328, %v1766, %v2327
    %vm2330 = vcmp.eq.f32.partialorder %v1766, 0.0
    %v2331 = vand.u32 %v1766, 2147483648
    %v2332 = vsel %vm2330, %v2331, %v2329
    %v2333 = vrsqrt.pop %v1767
    %v2334 = vmul.f32 %v1767, %v2333
    %vm2335 = vcmp.eq.f32.partialorder %v1767, inf
    %v2336 = vsel %vm2335, %v1767, %v2334
    %vm2337 = vcmp.eq.f32.partialorder %v1767, 0.0
    %v2338 = vand.u32 %v1767, 2147483648
    %v2339 = vsel %vm2337, %v2338, %v2336
    %v2340 = vrsqrt.pop %v1768
    %v2341 = vmul.f32 %v1768, %v2340
    %vm2342 = vcmp.eq.f32.partialorder %v1768, inf
    %v2343 = vsel %vm2342, %v1768, %v2341
    %vm2344 = vcmp.eq.f32.partialorder %v1768, 0.0
    %v2345 = vand.u32 %v1768, 2147483648
    %v2346 = vsel %vm2344, %v2345, %v2343
    %v2347 = vrsqrt.pop %v1769
    %v2348 = vmul.f32 %v1769, %v2347
    %vm2349 = vcmp.eq.f32.partialorder %v1769, inf
    %v2350 = vsel %vm2349, %v1769, %v2348
    %vm2351 = vcmp.eq.f32.partialorder %v1769, 0.0
    %v2352 = vand.u32 %v1769, 2147483648
    %v2353 = vsel %vm2351, %v2352, %v2350
    %v2354 = vrsqrt.pop %v1770
    %v2355 = vmul.f32 %v1770, %v2354
    %vm2356 = vcmp.eq.f32.partialorder %v1770, inf
    %v2357 = vsel %vm2356, %v1770, %v2355
    %vm2358 = vcmp.eq.f32.partialorder %v1770, 0.0
    %v2359 = vand.u32 %v1770, 2147483648
    %v2360 = vsel %vm2358, %v2359, %v2357
    %v2361 = vrsqrt.pop %v1771
    %v2362 = vmul.f32 %v1771, %v2361
    %vm2363 = vcmp.eq.f32.partialorder %v1771, inf
    %v2364 = vsel %vm2363, %v1771, %v2362
    %vm2365 = vcmp.eq.f32.partialorder %v1771, 0.0
    %v2366 = vand.u32 %v1771, 2147483648
    %v2367 = vsel %vm2365, %v2366, %v2364
    %v2368 = vrsqrt.pop %v1772
    %v2369 = vmul.f32 %v1772, %v2368
    %vm2370 = vcmp.eq.f32.partialorder %v1772, inf
    %v2371 = vsel %vm2370, %v1772, %v2369
    %vm2372 = vcmp.eq.f32.partialorder %v1772, 0.0
    %v2373 = vand.u32 %v1772, 2147483648
    %v2374 = vsel %vm2372, %v2373, %v2371
    %v2375 = vrsqrt.pop %v1773
    %v2376 = vmul.f32 %v1773, %v2375
    %vm2377 = vcmp.eq.f32.partialorder %v1773, inf
    %v2378 = vsel %vm2377, %v1773, %v2376
    %vm2379 = vcmp.eq.f32.partialorder %v1773, 0.0
    %v2380 = vand.u32 %v1773, 2147483648
    %v2381 = vsel %vm2379, %v2380, %v2378
    %v2382 = vrsqrt.pop %v1774
    %v2383 = vmul.f32 %v1774, %v2382
    %vm2384 = vcmp.eq.f32.partialorder %v1774, inf
    %v2385 = vsel %vm2384, %v1774, %v2383
    %vm2386 = vcmp.eq.f32.partialorder %v1774, 0.0
    %v2387 = vand.u32 %v1774, 2147483648
    %v2388 = vsel %vm2386, %v2387, %v2385
    %v2389 = vrsqrt.pop %v1775
    %v2390 = vmul.f32 %v1775, %v2389
    %vm2391 = vcmp.eq.f32.partialorder %v1775, inf
    %v2392 = vsel %vm2391, %v1775, %v2390
    %vm2393 = vcmp.eq.f32.partialorder %v1775, 0.0
    %v2394 = vand.u32 %v1775, 2147483648
    %v2395 = vsel %vm2393, %v2394, %v2392
    %v2396 = vrsqrt.pop %v1776
    %v2397 = vmul.f32 %v1776, %v2396
    %vm2398 = vcmp.eq.f32.partialorder %v1776, inf
    %v2399 = vsel %vm2398, %v1776, %v2397
    %vm2400 = vcmp.eq.f32.partialorder %v1776, 0.0
    %v2401 = vand.u32 %v1776, 2147483648
    %v2402 = vsel %vm2400, %v2401, %v2399
    %v2403 = vrsqrt.pop %v1777
    %v2404 = vmul.f32 %v1777, %v2403
    %vm2405 = vcmp.eq.f32.partialorder %v1777, inf
    %v2406 = vsel %vm2405, %v1777, %v2404
    %vm2407 = vcmp.eq.f32.partialorder %v1777, 0.0
    %v2408 = vand.u32 %v1777, 2147483648
    %v2409 = vsel %vm2407, %v2408, %v2406
    %v2410 = vrsqrt.pop %v1778
    %v2411 = vmul.f32 %v1778, %v2410
    %vm2412 = vcmp.eq.f32.partialorder %v1778, inf
    %v2413 = vsel %vm2412, %v1778, %v2411
    %vm2414 = vcmp.eq.f32.partialorder %v1778, 0.0
    %v2415 = vand.u32 %v1778, 2147483648
    %v2416 = vsel %vm2414, %v2415, %v2413
    %v2417 = vrsqrt.pop %v1779
    %v2418 = vmul.f32 %v1779, %v2417
    %vm2419 = vcmp.eq.f32.partialorder %v1779, inf
    %v2420 = vsel %vm2419, %v1779, %v2418
    %vm2421 = vcmp.eq.f32.partialorder %v1779, 0.0
    %v2422 = vand.u32 %v1779, 2147483648
    %v2423 = vsel %vm2421, %v2422, %v2420
    %v2424 = vrsqrt.pop %v1780
    %v2425 = vmul.f32 %v1780, %v2424
    %vm2426 = vcmp.eq.f32.partialorder %v1780, inf
    %v2427 = vsel %vm2426, %v1780, %v2425
    %vm2428 = vcmp.eq.f32.partialorder %v1780, 0.0
    %v2429 = vand.u32 %v1780, 2147483648
    %v2430 = vsel %vm2428, %v2429, %v2427
    %v2431 = vrsqrt.pop %v1781
    %v2432 = vmul.f32 %v1781, %v2431
    %vm2433 = vcmp.eq.f32.partialorder %v1781, inf
    %v2434 = vsel %vm2433, %v1781, %v2432
    %vm2435 = vcmp.eq.f32.partialorder %v1781, 0.0
    %v2436 = vand.u32 %v1781, 2147483648
    %v2437 = vsel %vm2435, %v2436, %v2434
    %v2438 = vrsqrt.pop %v1782
    %v2439 = vmul.f32 %v1782, %v2438
    %vm2440 = vcmp.eq.f32.partialorder %v1782, inf
    %v2441 = vsel %vm2440, %v1782, %v2439
    %vm2442 = vcmp.eq.f32.partialorder %v1782, 0.0
    %v2443 = vand.u32 %v1782, 2147483648
    %v2444 = vsel %vm2442, %v2443, %v2441
    %v2445 = vrsqrt.pop %v1783
    %v2446 = vmul.f32 %v1783, %v2445
    %vm2447 = vcmp.eq.f32.partialorder %v1783, inf
    %v2448 = vsel %vm2447, %v1783, %v2446
    %vm2449 = vcmp.eq.f32.partialorder %v1783, 0.0
    %v2450 = vand.u32 %v1783, 2147483648
    %v2451 = vsel %vm2449, %v2450, %v2448
    %v2452 = vrsqrt.pop %v1784
    %v2453 = vmul.f32 %v1784, %v2452
    %vm2454 = vcmp.eq.f32.partialorder %v1784, inf
    %v2455 = vsel %vm2454, %v1784, %v2453
    %vm2456 = vcmp.eq.f32.partialorder %v1784, 0.0
    %v2457 = vand.u32 %v1784, 2147483648
    %v2458 = vsel %vm2456, %v2457, %v2455
    %v2459 = vrsqrt.pop %v1785
    %v2460 = vmul.f32 %v1785, %v2459
    %vm2461 = vcmp.eq.f32.partialorder %v1785, inf
    %v2462 = vsel %vm2461, %v1785, %v2460
    %vm2463 = vcmp.eq.f32.partialorder %v1785, 0.0
    %v2464 = vand.u32 %v1785, 2147483648
    %v2465 = vsel %vm2463, %v2464, %v2462
    %v2466 = vrsqrt.pop %v1786
    %v2467 = vmul.f32 %v1786, %v2466
    %vm2468 = vcmp.eq.f32.partialorder %v1786, inf
    %v2469 = vsel %vm2468, %v1786, %v2467
    %vm2470 = vcmp.eq.f32.partialorder %v1786, 0.0
    %v2471 = vand.u32 %v1786, 2147483648
    %v2472 = vsel %vm2470, %v2471, %v2469
    %v2473 = vrsqrt.pop %v1787
    %v2474 = vmul.f32 %v1787, %v2473
    %vm2475 = vcmp.eq.f32.partialorder %v1787, inf
    %v2476 = vsel %vm2475, %v1787, %v2474
    %vm2477 = vcmp.eq.f32.partialorder %v1787, 0.0
    %v2478 = vand.u32 %v1787, 2147483648
    %v2479 = vsel %vm2477, %v2478, %v2476
    %v2480 = vrsqrt.pop %v1788
    %v2481 = vmul.f32 %v1788, %v2480
    %vm2482 = vcmp.eq.f32.partialorder %v1788, inf
    %v2483 = vsel %vm2482, %v1788, %v2481
    %vm2484 = vcmp.eq.f32.partialorder %v1788, 0.0
    %v2485 = vand.u32 %v1788, 2147483648
    %v2486 = vsel %vm2484, %v2485, %v2483
    %v2487 = vrsqrt.pop %v1789
    %v2488 = vmul.f32 %v1789, %v2487
    %vm2489 = vcmp.eq.f32.partialorder %v1789, inf
    %v2490 = vsel %vm2489, %v1789, %v2488
    %vm2491 = vcmp.eq.f32.partialorder %v1789, 0.0
    %v2492 = vand.u32 %v1789, 2147483648
    %v2493 = vsel %vm2491, %v2492, %v2490
    %v2494 = vrsqrt.pop %v1790
    %v2495 = vmul.f32 %v1790, %v2494
    %vm2496 = vcmp.eq.f32.partialorder %v1790, inf
    %v2497 = vsel %vm2496, %v1790, %v2495
    %vm2498 = vcmp.eq.f32.partialorder %v1790, 0.0
    %v2499 = vand.u32 %v1790, 2147483648
    %v2500 = vsel %vm2498, %v2499, %v2497
    %v2501 = vrsqrt.pop %v1791
    %v2502 = vmul.f32 %v1791, %v2501
    %vm2503 = vcmp.eq.f32.partialorder %v1791, inf
    %v2504 = vsel %vm2503, %v1791, %v2502
    %vm2505 = vcmp.eq.f32.partialorder %v1791, 0.0
    %v2506 = vand.u32 %v1791, 2147483648
    %v2507 = vsel %vm2505, %v2506, %v2504
    %v2508 = vrsqrt.pop %v1792
    %v2509 = vmul.f32 %v1792, %v2508
    %vm2510 = vcmp.eq.f32.partialorder %v1792, inf
    %v2511 = vsel %vm2510, %v1792, %v2509
    %vm2512 = vcmp.eq.f32.partialorder %v1792, 0.0
    %v2513 = vand.u32 %v1792, 2147483648
    %v2514 = vsel %vm2512, %v2513, %v2511
    %v2515 = vrsqrt.pop %v1793
    %v2516 = vmul.f32 %v1793, %v2515
    %vm2517 = vcmp.eq.f32.partialorder %v1793, inf
    %v2518 = vsel %vm2517, %v1793, %v2516
    %vm2519 = vcmp.eq.f32.partialorder %v1793, 0.0
    %v2520 = vand.u32 %v1793, 2147483648
    %v2521 = vsel %vm2519, %v2520, %v2518
    %v2522 = vrsqrt.pop %v1794
    %v2523 = vmul.f32 %v1794, %v2522
    %vm2524 = vcmp.eq.f32.partialorder %v1794, inf
    %v2525 = vsel %vm2524, %v1794, %v2523
    %vm2526 = vcmp.eq.f32.partialorder %v1794, 0.0
    %v2527 = vand.u32 %v1794, 2147483648
    %v2528 = vsel %vm2526, %v2527, %v2525
    %v2529 = vrsqrt.pop %v1795
    %v2530 = vmul.f32 %v1795, %v2529
    %vm2531 = vcmp.eq.f32.partialorder %v1795, inf
    %v2532 = vsel %vm2531, %v1795, %v2530
    %vm2533 = vcmp.eq.f32.partialorder %v1795, 0.0
    %v2534 = vand.u32 %v1795, 2147483648
    %v2535 = vsel %vm2533, %v2534, %v2532
    %v2536 = vrsqrt.pop %v1796
    %v2537 = vmul.f32 %v1796, %v2536
    %vm2538 = vcmp.eq.f32.partialorder %v1796, inf
    %v2539 = vsel %vm2538, %v1796, %v2537
    %vm2540 = vcmp.eq.f32.partialorder %v1796, 0.0
    %v2541 = vand.u32 %v1796, 2147483648
    %v2542 = vsel %vm2540, %v2541, %v2539
    %v2543 = vrsqrt.pop %v1797
    %v2544 = vmul.f32 %v1797, %v2543
    %vm2545 = vcmp.eq.f32.partialorder %v1797, inf
    %v2546 = vsel %vm2545, %v1797, %v2544
    %vm2547 = vcmp.eq.f32.partialorder %v1797, 0.0
    %v2548 = vand.u32 %v1797, 2147483648
    %v2549 = vsel %vm2547, %v2548, %v2546
    %v2550 = vrsqrt.pop %v1798
    %v2551 = vmul.f32 %v1798, %v2550
    %vm2552 = vcmp.eq.f32.partialorder %v1798, inf
    %v2553 = vsel %vm2552, %v1798, %v2551
    %vm2554 = vcmp.eq.f32.partialorder %v1798, 0.0
    %v2555 = vand.u32 %v1798, 2147483648
    %v2556 = vsel %vm2554, %v2555, %v2553
    %v2557 = vrsqrt.pop %v1799
    %v2558 = vmul.f32 %v1799, %v2557
    %vm2559 = vcmp.eq.f32.partialorder %v1799, inf
    %v2560 = vsel %vm2559, %v1799, %v2558
    %vm2561 = vcmp.eq.f32.partialorder %v1799, 0.0
    %v2562 = vand.u32 %v1799, 2147483648
    %v2563 = vsel %vm2561, %v2562, %v2560
    %v2564 = vrsqrt.pop %v1800
    %v2565 = vmul.f32 %v1800, %v2564
    %vm2566 = vcmp.eq.f32.partialorder %v1800, inf
    %v2567 = vsel %vm2566, %v1800, %v2565
    %vm2568 = vcmp.eq.f32.partialorder %v1800, 0.0
    %v2569 = vand.u32 %v1800, 2147483648
    %v2570 = vsel %vm2568, %v2569, %v2567
    %v2571 = vrsqrt.pop %v1801
    %v2572 = vmul.f32 %v1801, %v2571
    %vm2573 = vcmp.eq.f32.partialorder %v1801, inf
    %v2574 = vsel %vm2573, %v1801, %v2572
    %vm2575 = vcmp.eq.f32.partialorder %v1801, 0.0
    %v2576 = vand.u32 %v1801, 2147483648
    %v2577 = vsel %vm2575, %v2576, %v2574
    %v2578 = vrsqrt.pop %v1802
    %v2579 = vmul.f32 %v1802, %v2578
    %vm2580 = vcmp.eq.f32.partialorder %v1802, inf
    %v2581 = vsel %vm2580, %v1802, %v2579
    %vm2582 = vcmp.eq.f32.partialorder %v1802, 0.0
    %v2583 = vand.u32 %v1802, 2147483648
    %v2584 = vsel %vm2582, %v2583, %v2581
    %v2585 = vrsqrt.pop %v1803
    %v2586 = vmul.f32 %v1803, %v2585
    %vm2587 = vcmp.eq.f32.partialorder %v1803, inf
    %v2588 = vsel %vm2587, %v1803, %v2586
    %vm2589 = vcmp.eq.f32.partialorder %v1803, 0.0
    %v2590 = vand.u32 %v1803, 2147483648
    %v2591 = vsel %vm2589, %v2590, %v2588
    %v2592 = vrsqrt.pop %v1804
    %v2593 = vmul.f32 %v1804, %v2592
    %vm2594 = vcmp.eq.f32.partialorder %v1804, inf
    %v2595 = vsel %vm2594, %v1804, %v2593
    %vm2596 = vcmp.eq.f32.partialorder %v1804, 0.0
    %v2597 = vand.u32 %v1804, 2147483648
    %v2598 = vsel %vm2596, %v2597, %v2595
    %v2599 = vrsqrt.pop %v1805
    %v2600 = vmul.f32 %v1805, %v2599
    %vm2601 = vcmp.eq.f32.partialorder %v1805, inf
    %v2602 = vsel %vm2601, %v1805, %v2600
    %vm2603 = vcmp.eq.f32.partialorder %v1805, 0.0
    %v2604 = vand.u32 %v1805, 2147483648
    %v2605 = vsel %vm2603, %v2604, %v2602
    %v2606 = vrsqrt.pop %v1806
    %v2607 = vmul.f32 %v1806, %v2606
    %vm2608 = vcmp.eq.f32.partialorder %v1806, inf
    %v2609 = vsel %vm2608, %v1806, %v2607
    %vm2610 = vcmp.eq.f32.partialorder %v1806, 0.0
    %v2611 = vand.u32 %v1806, 2147483648
    %v2612 = vsel %vm2610, %v2611, %v2609
    %v2613 = vrsqrt.pop %v1807
    %v2614 = vmul.f32 %v1807, %v2613
    %vm2615 = vcmp.eq.f32.partialorder %v1807, inf
    %v2616 = vsel %vm2615, %v1807, %v2614
    %vm2617 = vcmp.eq.f32.partialorder %v1807, 0.0
    %v2618 = vand.u32 %v1807, 2147483648
    %v2619 = vsel %vm2617, %v2618, %v2616
    %v2620 = vrsqrt.pop %v1808
    %v2621 = vmul.f32 %v1808, %v2620
    %vm2622 = vcmp.eq.f32.partialorder %v1808, inf
    %v2623 = vsel %vm2622, %v1808, %v2621
    %vm2624 = vcmp.eq.f32.partialorder %v1808, 0.0
    %v2625 = vand.u32 %v1808, 2147483648
    %v2626 = vsel %vm2624, %v2625, %v2623
    %v2627 = vrsqrt.pop %v1809
    %v2628 = vmul.f32 %v1809, %v2627
    %vm2629 = vcmp.eq.f32.partialorder %v1809, inf
    %v2630 = vsel %vm2629, %v1809, %v2628
    %vm2631 = vcmp.eq.f32.partialorder %v1809, 0.0
    %v2632 = vand.u32 %v1809, 2147483648
    %v2633 = vsel %vm2631, %v2632, %v2630
    %v2634 = vrsqrt.pop %v1810
    %v2635 = vmul.f32 %v1810, %v2634
    %vm2636 = vcmp.eq.f32.partialorder %v1810, inf
    %v2637 = vsel %vm2636, %v1810, %v2635
    %vm2638 = vcmp.eq.f32.partialorder %v1810, 0.0
    %v2639 = vand.u32 %v1810, 2147483648
    %v2640 = vsel %vm2638, %v2639, %v2637
    %v2641 = vrsqrt.pop %v1811
    %v2642 = vmul.f32 %v1811, %v2641
    %vm2643 = vcmp.eq.f32.partialorder %v1811, inf
    %v2644 = vsel %vm2643, %v1811, %v2642
    %vm2645 = vcmp.eq.f32.partialorder %v1811, 0.0
    %v2646 = vand.u32 %v1811, 2147483648
    %v2647 = vsel %vm2645, %v2646, %v2644
    %v2648 = vrsqrt.pop %v1812
    %v2649 = vmul.f32 %v1812, %v2648
    %vm2650 = vcmp.eq.f32.partialorder %v1812, inf
    %v2651 = vsel %vm2650, %v1812, %v2649
    %vm2652 = vcmp.eq.f32.partialorder %v1812, 0.0
    %v2653 = vand.u32 %v1812, 2147483648
    %v2654 = vsel %vm2652, %v2653, %v2651
    %v2655 = vrsqrt.pop %v1813
    %v2656 = vmul.f32 %v1813, %v2655
    %vm2657 = vcmp.eq.f32.partialorder %v1813, inf
    %v2658 = vsel %vm2657, %v1813, %v2656
    %vm2659 = vcmp.eq.f32.partialorder %v1813, 0.0
    %v2660 = vand.u32 %v1813, 2147483648
    %v2661 = vsel %vm2659, %v2660, %v2658
    %v2662 = vrsqrt.pop %v1814
    %v2663 = vmul.f32 %v1814, %v2662
    %vm2664 = vcmp.eq.f32.partialorder %v1814, inf
    %v2665 = vsel %vm2664, %v1814, %v2663
    %vm2666 = vcmp.eq.f32.partialorder %v1814, 0.0
    %v2667 = vand.u32 %v1814, 2147483648
    %v2668 = vsel %vm2666, %v2667, %v2665
    %v2669 = vrsqrt.pop %v1815
    %v2670 = vmul.f32 %v1815, %v2669
    %vm2671 = vcmp.eq.f32.partialorder %v1815, inf
    %v2672 = vsel %vm2671, %v1815, %v2670
    %vm2673 = vcmp.eq.f32.partialorder %v1815, 0.0
    %v2674 = vand.u32 %v1815, 2147483648
    %v2675 = vsel %vm2673, %v2674, %v2672
    %v2676 = vrsqrt.pop %v1816
    %v2677 = vmul.f32 %v1816, %v2676
    %vm2678 = vcmp.eq.f32.partialorder %v1816, inf
    %v2679 = vsel %vm2678, %v1816, %v2677
    %vm2680 = vcmp.eq.f32.partialorder %v1816, 0.0
    %v2681 = vand.u32 %v1816, 2147483648
    %v2682 = vsel %vm2680, %v2681, %v2679
    %v2683 = vrsqrt.pop %v1817
    %v2684 = vmul.f32 %v1817, %v2683
    %vm2685 = vcmp.eq.f32.partialorder %v1817, inf
    %v2686 = vsel %vm2685, %v1817, %v2684
    %vm2687 = vcmp.eq.f32.partialorder %v1817, 0.0
    %v2688 = vand.u32 %v1817, 2147483648
    %v2689 = vsel %vm2687, %v2688, %v2686
    %v2690 = vrsqrt.pop %v1818
    %v2691 = vmul.f32 %v1818, %v2690
    %vm2692 = vcmp.eq.f32.partialorder %v1818, inf
    %v2693 = vsel %vm2692, %v1818, %v2691
    %vm2694 = vcmp.eq.f32.partialorder %v1818, 0.0
    %v2695 = vand.u32 %v1818, 2147483648
    %v2696 = vsel %vm2694, %v2695, %v2693
    %v2697 = vrsqrt.pop %v1819
    %v2698 = vmul.f32 %v1819, %v2697
    %vm2699 = vcmp.eq.f32.partialorder %v1819, inf
    %v2700 = vsel %vm2699, %v1819, %v2698
    %vm2701 = vcmp.eq.f32.partialorder %v1819, 0.0
    %v2702 = vand.u32 %v1819, 2147483648
    %v2703 = vsel %vm2701, %v2702, %v2700
    %v2704 = vrsqrt.pop %v1820
    %v2705 = vmul.f32 %v1820, %v2704
    %vm2706 = vcmp.eq.f32.partialorder %v1820, inf
    %v2707 = vsel %vm2706, %v1820, %v2705
    %vm2708 = vcmp.eq.f32.partialorder %v1820, 0.0
    %v2709 = vand.u32 %v1820, 2147483648
    %v2710 = vsel %vm2708, %v2709, %v2707
    %v2711 = vrsqrt.pop %v1821
    %v2712 = vmul.f32 %v1821, %v2711
    %vm2713 = vcmp.eq.f32.partialorder %v1821, inf
    %v2714 = vsel %vm2713, %v1821, %v2712
    %vm2715 = vcmp.eq.f32.partialorder %v1821, 0.0
    %v2716 = vand.u32 %v1821, 2147483648
    %v2717 = vsel %vm2715, %v2716, %v2714
    %v2718 = vadd.f32 %v1828, 1e-06
    %v2719 = vadd.f32 %v1835, 1e-06
    %v2720 = vadd.f32 %v1842, 1e-06
    %v2721 = vadd.f32 %v1849, 1e-06
    %v2722 = vadd.f32 %v1856, 1e-06
    %v2723 = vadd.f32 %v1863, 1e-06
    %v2724 = vadd.f32 %v1870, 1e-06
    %v2725 = vadd.f32 %v1877, 1e-06
    %v2726 = vadd.f32 %v1884, 1e-06
    %v2727 = vadd.f32 %v1891, 1e-06
    %v2728 = vadd.f32 %v1898, 1e-06
    %v2729 = vadd.f32 %v1905, 1e-06
    %v2730 = vadd.f32 %v1912, 1e-06
    %v2731 = vadd.f32 %v1919, 1e-06
    %v2732 = vadd.f32 %v1926, 1e-06
    %v2733 = vadd.f32 %v1933, 1e-06
    %v2734 = vadd.f32 %v1940, 1e-06
    %v2735 = vadd.f32 %v1947, 1e-06
    %v2736 = vadd.f32 %v1954, 1e-06
    %v2737 = vadd.f32 %v1961, 1e-06
    %v2738 = vadd.f32 %v1968, 1e-06
    %v2739 = vadd.f32 %v1975, 1e-06
    %v2740 = vadd.f32 %v1982, 1e-06
    %v2741 = vadd.f32 %v1989, 1e-06
    %v2742 = vadd.f32 %v1996, 1e-06
    %v2743 = vadd.f32 %v2003, 1e-06
    %v2744 = vadd.f32 %v2010, 1e-06
    %v2745 = vadd.f32 %v2017, 1e-06
    %v2746 = vadd.f32 %v2024, 1e-06
    %v2747 = vadd.f32 %v2031, 1e-06
    %v2748 = vadd.f32 %v2038, 1e-06
    %v2749 = vadd.f32 %v2045, 1e-06
    %v2750 = vadd.f32 %v2052, 1e-06
    %v2751 = vadd.f32 %v2059, 1e-06
    %v2752 = vadd.f32 %v2066, 1e-06
    %v2753 = vadd.f32 %v2073, 1e-06
    %v2754 = vadd.f32 %v2080, 1e-06
    %v2755 = vadd.f32 %v2087, 1e-06
    %v2756 = vadd.f32 %v2094, 1e-06
    %v2757 = vadd.f32 %v2101, 1e-06
    %v2758 = vadd.f32 %v2108, 1e-06
    %v2759 = vadd.f32 %v2115, 1e-06
    %v2760 = vadd.f32 %v2122, 1e-06
    %v2761 = vadd.f32 %v2129, 1e-06
    %v2762 = vadd.f32 %v2136, 1e-06
    %v2763 = vadd.f32 %v2143, 1e-06
    %v2764 = vadd.f32 %v2150, 1e-06
    %v2765 = vadd.f32 %v2157, 1e-06
    %v2766 = vadd.f32 %v2164, 1e-06
    %v2767 = vadd.f32 %v2171, 1e-06
    %v2768 = vadd.f32 %v2178, 1e-06
    %v2769 = vadd.f32 %v2185, 1e-06
    %v2770 = vadd.f32 %v2192, 1e-06
    %v2771 = vadd.f32 %v2199, 1e-06
    %v2772 = vadd.f32 %v2206, 1e-06
    %v2773 = vadd.f32 %v2213, 1e-06
    %v2774 = vadd.f32 %v2220, 1e-06
    %v2775 = vadd.f32 %v2227, 1e-06
    %v2776 = vadd.f32 %v2234, 1e-06
    %v2777 = vadd.f32 %v2241, 1e-06
    %v2778 = vadd.f32 %v2248, 1e-06
    %v2779 = vadd.f32 %v2255, 1e-06
    %v2780 = vadd.f32 %v2262, 1e-06
    %v2781 = vadd.f32 %v2269, 1e-06
    %v2782 = vadd.f32 %v2276, 1e-06
    %v2783 = vadd.f32 %v2283, 1e-06
    %v2784 = vadd.f32 %v2290, 1e-06
    %v2785 = vadd.f32 %v2297, 1e-06
    %v2786 = vadd.f32 %v2304, 1e-06
    %v2787 = vadd.f32 %v2311, 1e-06
    %v2788 = vadd.f32 %v2318, 1e-06
    %v2789 = vadd.f32 %v2325, 1e-06
    %v2790 = vadd.f32 %v2332, 1e-06
    %v2791 = vadd.f32 %v2339, 1e-06
    %v2792 = vadd.f32 %v2346, 1e-06
    %v2793 = vadd.f32 %v2353, 1e-06
    %v2794 = vadd.f32 %v2360, 1e-06
    %v2795 = vadd.f32 %v2367, 1e-06
    %v2796 = vadd.f32 %v2374, 1e-06
    %v2797 = vadd.f32 %v2381, 1e-06
    %v2798 = vadd.f32 %v2388, 1e-06
    %v2799 = vadd.f32 %v2395, 1e-06
    %v2800 = vadd.f32 %v2402, 1e-06
    %v2801 = vadd.f32 %v2409, 1e-06
    %v2802 = vadd.f32 %v2416, 1e-06
    %v2803 = vadd.f32 %v2423, 1e-06
    %v2804 = vadd.f32 %v2430, 1e-06
    %v2805 = vadd.f32 %v2437, 1e-06
    %v2806 = vadd.f32 %v2444, 1e-06
    %v2807 = vadd.f32 %v2451, 1e-06
    %v2808 = vadd.f32 %v2458, 1e-06
    %v2809 = vadd.f32 %v2465, 1e-06
    %v2810 = vadd.f32 %v2472, 1e-06
    %v2811 = vadd.f32 %v2479, 1e-06
    %v2812 = vadd.f32 %v2486, 1e-06
    %v2813 = vadd.f32 %v2493, 1e-06
    %v2814 = vadd.f32 %v2500, 1e-06
    %v2815 = vadd.f32 %v2507, 1e-06
    %v2816 = vadd.f32 %v2514, 1e-06
    %v2817 = vadd.f32 %v2521, 1e-06
    %v2818 = vadd.f32 %v2528, 1e-06
    %v2819 = vadd.f32 %v2535, 1e-06
    %v2820 = vadd.f32 %v2542, 1e-06
    %v2821 = vadd.f32 %v2549, 1e-06
    %v2822 = vadd.f32 %v2556, 1e-06
    %v2823 = vadd.f32 %v2563, 1e-06
    %v2824 = vadd.f32 %v2570, 1e-06
    %v2825 = vadd.f32 %v2577, 1e-06
    %v2826 = vadd.f32 %v2584, 1e-06
    %v2827 = vadd.f32 %v2591, 1e-06
    %v2828 = vadd.f32 %v2598, 1e-06
    %v2829 = vadd.f32 %v2605, 1e-06
    %v2830 = vadd.f32 %v2612, 1e-06
    %v2831 = vadd.f32 %v2619, 1e-06
    %v2832 = vadd.f32 %v2626, 1e-06
    %v2833 = vadd.f32 %v2633, 1e-06
    %v2834 = vadd.f32 %v2640, 1e-06
    %v2835 = vadd.f32 %v2647, 1e-06
    %v2836 = vadd.f32 %v2654, 1e-06
    %v2837 = vadd.f32 %v2661, 1e-06
    %v2838 = vadd.f32 %v2668, 1e-06
    %v2839 = vadd.f32 %v2675, 1e-06
    %v2840 = vadd.f32 %v2682, 1e-06
    %v2841 = vadd.f32 %v2689, 1e-06
    %v2842 = vadd.f32 %v2696, 1e-06
    %v2843 = vadd.f32 %v2703, 1e-06
    %v2844 = vadd.f32 %v2710, 1e-06
    %v2845 = vadd.f32 %v2717, 1e-06
    %v2846 = vrcp.pop %v2718
    %v2847 = vrcp.pop %v2719
    %v2848 = vrcp.pop %v2720
    %v2849 = vrcp.pop %v2721
    %v2850 = vrcp.pop %v2722
    %v2851 = vrcp.pop %v2723
    %v2852 = vrcp.pop %v2724
    %v2853 = vrcp.pop %v2725
    %v2854 = vrcp.pop %v2726
    %v2855 = vrcp.pop %v2727
    %v2856 = vrcp.pop %v2728
    %v2857 = vrcp.pop %v2729
    %v2858 = vrcp.pop %v2730
    %v2859 = vrcp.pop %v2731
    %v2860 = vrcp.pop %v2732
    %v2861 = vrcp.pop %v2733
    %v2862 = vrcp.pop %v2734
    %v2863 = vrcp.pop %v2735
    %v2864 = vrcp.pop %v2736
    %v2865 = vrcp.pop %v2737
    %v2866 = vrcp.pop %v2738
    %v2867 = vrcp.pop %v2739
    %v2868 = vrcp.pop %v2740
    %v2869 = vrcp.pop %v2741
    %v2870 = vrcp.pop %v2742
    %v2871 = vrcp.pop %v2743
    %v2872 = vrcp.pop %v2744
    %v2873 = vrcp.pop %v2745
    %v2874 = vrcp.pop %v2746
    %v2875 = vrcp.pop %v2747
    %v2876 = vrcp.pop %v2748
    %v2877 = vrcp.pop %v2749
    %v2878 = vrcp.pop %v2750
    %v2879 = vrcp.pop %v2751
    %v2880 = vrcp.pop %v2752
    %v2881 = vrcp.pop %v2753
    %v2882 = vrcp.pop %v2754
    %v2883 = vrcp.pop %v2755
    %v2884 = vrcp.pop %v2756
    %v2885 = vrcp.pop %v2757
    %v2886 = vrcp.pop %v2758
    %v2887 = vrcp.pop %v2759
    %v2888 = vrcp.pop %v2760
    %v2889 = vrcp.pop %v2761
    %v2890 = vrcp.pop %v2762
    %v2891 = vrcp.pop %v2763
    %v2892 = vrcp.pop %v2764
    %v2893 = vrcp.pop %v2765
    %v2894 = vrcp.pop %v2766
    %v2895 = vrcp.pop %v2767
    %v2896 = vrcp.pop %v2768
    %v2897 = vrcp.pop %v2769
    %v2898 = vrcp.pop %v2770
    %v2899 = vrcp.pop %v2771
    %v2900 = vrcp.pop %v2772
    %v2901 = vrcp.pop %v2773
    %v2902 = vrcp.pop %v2774
    %v2903 = vrcp.pop %v2775
    %v2904 = vrcp.pop %v2776
    %v2905 = vrcp.pop %v2777
    %v2906 = vrcp.pop %v2778
    %v2907 = vrcp.pop %v2779
    %v2908 = vrcp.pop %v2780
    %v2909 = vrcp.pop %v2781
    %v2910 = vrcp.pop %v2782
    %v2911 = vrcp.pop %v2783
    %v2912 = vrcp.pop %v2784
    %v2913 = vrcp.pop %v2785
    %v2914 = vrcp.pop %v2786
    %v2915 = vrcp.pop %v2787
    %v2916 = vrcp.pop %v2788
    %v2917 = vrcp.pop %v2789
    %v2918 = vrcp.pop %v2790
    %v2919 = vrcp.pop %v2791
    %v2920 = vrcp.pop %v2792
    %v2921 = vrcp.pop %v2793
    %v2922 = vrcp.pop %v2794
    %v2923 = vrcp.pop %v2795
    %v2924 = vrcp.pop %v2796
    %v2925 = vrcp.pop %v2797
    %v2926 = vrcp.pop %v2798
    %v2927 = vrcp.pop %v2799
    %v2928 = vrcp.pop %v2800
    %v2929 = vrcp.pop %v2801
    %v2930 = vrcp.pop %v2802
    %v2931 = vrcp.pop %v2803
    %v2932 = vrcp.pop %v2804
    %v2933 = vrcp.pop %v2805
    %v2934 = vrcp.pop %v2806
    %v2935 = vrcp.pop %v2807
    %v2936 = vrcp.pop %v2808
    %v2937 = vrcp.pop %v2809
    %v2938 = vrcp.pop %v2810
    %v2939 = vrcp.pop %v2811
    %v2940 = vrcp.pop %v2812
    %v2941 = vrcp.pop %v2813
    %v2942 = vrcp.pop %v2814
    %v2943 = vrcp.pop %v2815
    %v2944 = vrcp.pop %v2816
    %v2945 = vrcp.pop %v2817
    %v2946 = vrcp.pop %v2818
    %v2947 = vrcp.pop %v2819
    %v2948 = vrcp.pop %v2820
    %v2949 = vrcp.pop %v2821
    %v2950 = vrcp.pop %v2822
    %v2951 = vrcp.pop %v2823
    %v2952 = vrcp.pop %v2824
    %v2953 = vrcp.pop %v2825
    %v2954 = vrcp.pop %v2826
    %v2955 = vrcp.pop %v2827
    %v2956 = vrcp.pop %v2828
    %v2957 = vrcp.pop %v2829
    %v2958 = vrcp.pop %v2830
    %v2959 = vrcp.pop %v2831
    %v2960 = vrcp.pop %v2832
    %v2961 = vrcp.pop %v2833
    %v2962 = vrcp.pop %v2834
    %v2963 = vrcp.pop %v2835
    %v2964 = vrcp.pop %v2836
    %v2965 = vrcp.pop %v2837
    %v2966 = vrcp.pop %v2838
    %v2967 = vrcp.pop %v2839
    %v2968 = vrcp.pop %v2840
    %v2969 = vrcp.pop %v2841
    %v2970 = vrcp.pop %v2842
    %v2971 = vrcp.pop %v2843
    %v2972 = vrcp.pop %v2844
    %v2973 = vrcp.pop %v2845
    %v2974 = vld [vmem:[%s1] sm:$0x3]
    %v2975 = vmul.f32 %v798, %v2846
    %v2976 = vmul.f32 %v799, %v2846
    %v2977 = vmul.f32 %v800, %v2847
    %v2978 = vmul.f32 %v801, %v2847
    %v2979 = vmul.f32 %v802, %v2848
    %v2980 = vmul.f32 %v803, %v2848
    %v2981 = vmul.f32 %v804, %v2849
    %v2982 = vmul.f32 %v805, %v2849
    %v2983 = vmul.f32 %v806, %v2850
    %v2984 = vmul.f32 %v807, %v2850
    %v2985 = vmul.f32 %v808, %v2851
    %v2986 = vmul.f32 %v809, %v2851
    %v2987 = vmul.f32 %v810, %v2852
    %v2988 = vmul.f32 %v811, %v2852
    %v2989 = vmul.f32 %v812, %v2853
    %v2990 = vmul.f32 %v813, %v2853
    %v2991 = vmul.f32 %v814, %v2854
    %v2992 = vmul.f32 %v815, %v2854
    %v2993 = vmul.f32 %v816, %v2855
    %v2994 = vmul.f32 %v817, %v2855
    %v2995 = vmul.f32 %v818, %v2856
    %v2996 = vmul.f32 %v819, %v2856
    %v2997 = vmul.f32 %v820, %v2857
    %v2998 = vmul.f32 %v821, %v2857
    %v2999 = vmul.f32 %v822, %v2858
    %v3000 = vmul.f32 %v823, %v2858
    %v3001 = vmul.f32 %v824, %v2859
    %v3002 = vmul.f32 %v825, %v2859
    %v3003 = vmul.f32 %v826, %v2860
    %v3004 = vmul.f32 %v827, %v2860
    %v3005 = vmul.f32 %v828, %v2861
    %v3006 = vmul.f32 %v829, %v2861
    %v3007 = vmul.f32 %v830, %v2862
    %v3008 = vmul.f32 %v831, %v2862
    %v3009 = vmul.f32 %v832, %v2863
    %v3010 = vmul.f32 %v833, %v2863
    %v3011 = vmul.f32 %v834, %v2864
    %v3012 = vmul.f32 %v835, %v2864
    %v3013 = vmul.f32 %v836, %v2865
    %v3014 = vmul.f32 %v837, %v2865
    %v3015 = vmul.f32 %v838, %v2866
    %v3016 = vmul.f32 %v839, %v2866
    %v3017 = vmul.f32 %v840, %v2867
    %v3018 = vmul.f32 %v841, %v2867
    %v3019 = vmul.f32 %v842, %v2868
    %v3020 = vmul.f32 %v843, %v2868
    %v3021 = vmul.f32 %v844, %v2869
    %v3022 = vmul.f32 %v845, %v2869
    %v3023 = vmul.f32 %v846, %v2870
    %v3024 = vmul.f32 %v847, %v2870
    %v3025 = vmul.f32 %v848, %v2871
    %v3026 = vmul.f32 %v849, %v2871
    %v3027 = vmul.f32 %v850, %v2872
    %v3028 = vmul.f32 %v851, %v2872
    %v3029 = vmul.f32 %v852, %v2873
    %v3030 = vmul.f32 %v853, %v2873
    %v3031 = vmul.f32 %v854, %v2874
    %v3032 = vmul.f32 %v855, %v2874
    %v3033 = vmul.f32 %v856, %v2875
    %v3034 = vmul.f32 %v857, %v2875
    %v3035 = vmul.f32 %v858, %v2876
    %v3036 = vmul.f32 %v859, %v2876
    %v3037 = vmul.f32 %v860, %v2877
    %v3038 = vmul.f32 %v861, %v2877
    %v3039 = vmul.f32 %v862, %v2878
    %v3040 = vmul.f32 %v863, %v2878
    %v3041 = vmul.f32 %v864, %v2879
    %v3042 = vmul.f32 %v865, %v2879
    %v3043 = vmul.f32 %v866, %v2880
    %v3044 = vmul.f32 %v867, %v2880
    %v3045 = vmul.f32 %v868, %v2881
    %v3046 = vmul.f32 %v869, %v2881
    %v3047 = vmul.f32 %v870, %v2882
    %v3048 = vmul.f32 %v871, %v2882
    %v3049 = vmul.f32 %v872, %v2883
    %v3050 = vmul.f32 %v873, %v2883
    %v3051 = vmul.f32 %v874, %v2884
    %v3052 = vmul.f32 %v875, %v2884
    %v3053 = vmul.f32 %v876, %v2885
    %v3054 = vmul.f32 %v877, %v2885
    %v3055 = vmul.f32 %v878, %v2886
    %v3056 = vmul.f32 %v879, %v2886
    %v3057 = vmul.f32 %v880, %v2887
    %v3058 = vmul.f32 %v881, %v2887
    %v3059 = vmul.f32 %v882, %v2888
    %v3060 = vmul.f32 %v883, %v2888
    %v3061 = vmul.f32 %v884, %v2889
    %v3062 = vmul.f32 %v885, %v2889
    %v3063 = vmul.f32 %v886, %v2890
    %v3064 = vmul.f32 %v887, %v2890
    %v3065 = vmul.f32 %v888, %v2891
    %v3066 = vmul.f32 %v889, %v2891
    %v3067 = vmul.f32 %v890, %v2892
    %v3068 = vmul.f32 %v891, %v2892
    %v3069 = vmul.f32 %v892, %v2893
    %v3070 = vmul.f32 %v893, %v2893
    %v3071 = vmul.f32 %v894, %v2894
    %v3072 = vmul.f32 %v895, %v2894
    %v3073 = vmul.f32 %v896, %v2895
    %v3074 = vmul.f32 %v897, %v2895
    %v3075 = vmul.f32 %v898, %v2896
    %v3076 = vmul.f32 %v899, %v2896
    %v3077 = vmul.f32 %v900, %v2897
    %v3078 = vmul.f32 %v901, %v2897
    %v3079 = vmul.f32 %v902, %v2898
    %v3080 = vmul.f32 %v903, %v2898
    %v3081 = vmul.f32 %v904, %v2899
    %v3082 = vmul.f32 %v905, %v2899
    %v3083 = vmul.f32 %v906, %v2900
    %v3084 = vmul.f32 %v907, %v2900
    %v3085 = vmul.f32 %v908, %v2901
    %v3086 = vmul.f32 %v909, %v2901
    %v3087 = vmul.f32 %v910, %v2902
    %v3088 = vmul.f32 %v911, %v2902
    %v3089 = vmul.f32 %v912, %v2903
    %v3090 = vmul.f32 %v913, %v2903
    %v3091 = vmul.f32 %v914, %v2904
    %v3092 = vmul.f32 %v915, %v2904
    %v3093 = vmul.f32 %v916, %v2905
    %v3094 = vmul.f32 %v917, %v2905
    %v3095 = vmul.f32 %v918, %v2906
    %v3096 = vmul.f32 %v919, %v2906
    %v3097 = vmul.f32 %v920, %v2907
    %v3098 = vmul.f32 %v921, %v2907
    %v3099 = vmul.f32 %v922, %v2908
    %v3100 = vmul.f32 %v923, %v2908
    %v3101 = vmul.f32 %v924, %v2909
    %v3102 = vmul.f32 %v925, %v2909
    %v3103 = vmul.f32 %v926, %v2910
    %v3104 = vmul.f32 %v927, %v2910
    %v3105 = vmul.f32 %v928, %v2911
    %v3106 = vmul.f32 %v929, %v2911
    %v3107 = vmul.f32 %v930, %v2912
    %v3108 = vmul.f32 %v931, %v2912
    %v3109 = vmul.f32 %v932, %v2913
    %v3110 = vmul.f32 %v933, %v2913
    %v3111 = vmul.f32 %v934, %v2914
    %v3112 = vmul.f32 %v935, %v2914
    %v3113 = vmul.f32 %v936, %v2915
    %v3114 = vmul.f32 %v937, %v2915
    %v3115 = vmul.f32 %v938, %v2916
    %v3116 = vmul.f32 %v939, %v2916
    %v3117 = vmul.f32 %v940, %v2917
    %v3118 = vmul.f32 %v941, %v2917
    %v3119 = vmul.f32 %v942, %v2918
    %v3120 = vmul.f32 %v943, %v2918
    %v3121 = vmul.f32 %v944, %v2919
    %v3122 = vmul.f32 %v945, %v2919
    %v3123 = vmul.f32 %v946, %v2920
    %v3124 = vmul.f32 %v947, %v2920
    %v3125 = vmul.f32 %v948, %v2921
    %v3126 = vmul.f32 %v949, %v2921
    %v3127 = vmul.f32 %v950, %v2922
    %v3128 = vmul.f32 %v951, %v2922
    %v3129 = vmul.f32 %v952, %v2923
    %v3130 = vmul.f32 %v953, %v2923
    %v3131 = vmul.f32 %v954, %v2924
    %v3132 = vmul.f32 %v955, %v2924
    %v3133 = vmul.f32 %v956, %v2925
    %v3134 = vmul.f32 %v957, %v2925
    %v3135 = vmul.f32 %v958, %v2926
    %v3136 = vmul.f32 %v959, %v2926
    %v3137 = vmul.f32 %v960, %v2927
    %v3138 = vmul.f32 %v961, %v2927
    %v3139 = vmul.f32 %v962, %v2928
    %v3140 = vmul.f32 %v963, %v2928
    %v3141 = vmul.f32 %v964, %v2929
    %v3142 = vmul.f32 %v965, %v2929
    %v3143 = vmul.f32 %v966, %v2930
    %v3144 = vmul.f32 %v967, %v2930
    %v3145 = vmul.f32 %v968, %v2931
    %v3146 = vmul.f32 %v969, %v2931
    %v3147 = vmul.f32 %v970, %v2932
    %v3148 = vmul.f32 %v971, %v2932
    %v3149 = vmul.f32 %v972, %v2933
    %v3150 = vmul.f32 %v973, %v2933
    %v3151 = vmul.f32 %v974, %v2934
    %v3152 = vmul.f32 %v975, %v2934
    %v3153 = vmul.f32 %v976, %v2935
    %v3154 = vmul.f32 %v977, %v2935
    %v3155 = vmul.f32 %v978, %v2936
    %v3156 = vmul.f32 %v979, %v2936
    %v3157 = vmul.f32 %v980, %v2937
    %v3158 = vmul.f32 %v981, %v2937
    %v3159 = vmul.f32 %v982, %v2938
    %v3160 = vmul.f32 %v983, %v2938
    %v3161 = vmul.f32 %v984, %v2939
    %v3162 = vmul.f32 %v985, %v2939
    %v3163 = vmul.f32 %v986, %v2940
    %v3164 = vmul.f32 %v987, %v2940
    %v3165 = vmul.f32 %v988, %v2941
    %v3166 = vmul.f32 %v989, %v2941
    %v3167 = vmul.f32 %v990, %v2942
    %v3168 = vmul.f32 %v991, %v2942
    %v3169 = vmul.f32 %v992, %v2943
    %v3170 = vmul.f32 %v993, %v2943
    %v3171 = vmul.f32 %v994, %v2944
    %v3172 = vmul.f32 %v995, %v2944
    %v3173 = vmul.f32 %v996, %v2945
    %v3174 = vmul.f32 %v997, %v2945
    %v3175 = vmul.f32 %v998, %v2946
    %v3176 = vmul.f32 %v999, %v2946
    %v3177 = vmul.f32 %v1000, %v2947
    %v3178 = vmul.f32 %v1001, %v2947
    %v3179 = vmul.f32 %v1002, %v2948
    %v3180 = vmul.f32 %v1003, %v2948
    %v3181 = vmul.f32 %v1004, %v2949
    %v3182 = vmul.f32 %v1005, %v2949
    %v3183 = vmul.f32 %v1006, %v2950
    %v3184 = vmul.f32 %v1007, %v2950
    %v3185 = vmul.f32 %v1008, %v2951
    %v3186 = vmul.f32 %v1009, %v2951
    %v3187 = vmul.f32 %v1010, %v2952
    %v3188 = vmul.f32 %v1011, %v2952
    %v3189 = vmul.f32 %v1012, %v2953
    %v3190 = vmul.f32 %v1013, %v2953
    %v3191 = vmul.f32 %v1014, %v2954
    %v3192 = vmul.f32 %v1015, %v2954
    %v3193 = vmul.f32 %v1016, %v2955
    %v3194 = vmul.f32 %v1017, %v2955
    %v3195 = vmul.f32 %v1018, %v2956
    %v3196 = vmul.f32 %v1019, %v2956
    %v3197 = vmul.f32 %v1020, %v2957
    %v3198 = vmul.f32 %v1021, %v2957
    %v3199 = vmul.f32 %v1022, %v2958
    %v3200 = vmul.f32 %v1023, %v2958
    %v3201 = vmul.f32 %v1024, %v2959
    %v3202 = vmul.f32 %v1025, %v2959
    %v3203 = vmul.f32 %v1026, %v2960
    %v3204 = vmul.f32 %v1027, %v2960
    %v3205 = vmul.f32 %v1028, %v2961
    %v3206 = vmul.f32 %v1029, %v2961
    %v3207 = vmul.f32 %v1030, %v2962
    %v3208 = vmul.f32 %v1031, %v2962
    %v3209 = vmul.f32 %v1032, %v2963
    %v3210 = vmul.f32 %v1033, %v2963
    %v3211 = vmul.f32 %v1034, %v2964
    %v3212 = vmul.f32 %v1035, %v2964
    %v3213 = vmul.f32 %v1036, %v2965
    %v3214 = vmul.f32 %v1037, %v2965
    %v3215 = vmul.f32 %v1038, %v2966
    %v3216 = vmul.f32 %v1039, %v2966
    %v3217 = vmul.f32 %v1040, %v2967
    %v3218 = vmul.f32 %v1041, %v2967
    %v3219 = vmul.f32 %v1042, %v2968
    %v3220 = vmul.f32 %v1043, %v2968
    %v3221 = vmul.f32 %v1044, %v2969
    %v3222 = vmul.f32 %v1045, %v2969
    %v3223 = vmul.f32 %v1046, %v2970
    %v3224 = vmul.f32 %v1047, %v2970
    %v3225 = vmul.f32 %v1048, %v2971
    %v3226 = vmul.f32 %v1049, %v2971
    %v3227 = vmul.f32 %v1050, %v2972
    %v3228 = vmul.f32 %v1051, %v2972
    %v3229 = vmul.f32 %v1052, %v2973
    %v3230 = vmul.f32 %v1053, %v2973
    %v3232 = vlaneseq
    %v3233 = vshrl.u32 %v3232, 7
    %v3234 = vsub.s32 0, %v3233
    %v3235 = vrot.slane %v2974, %v3234
    %v3236 = vlaneseq
    %v3237 = vshrl.u32 %v3236, 7
    %v3238 = vsub.s32 1, %v3237
    %v3239 = vrot.slane %v2974, %v3238
    %v3242 = vmul.f32 %v3235, %v2975
    %v3243 = vmul.f32 %v3239, %v2976
    %v3244 = vmul.f32 %v3235, %v2977
    %v3245 = vmul.f32 %v3239, %v2978
    %v3246 = vmul.f32 %v3235, %v2979
    %v3247 = vmul.f32 %v3239, %v2980
    %v3248 = vmul.f32 %v3235, %v2981
    %v3249 = vmul.f32 %v3239, %v2982
    %v3250 = vmul.f32 %v3235, %v2983
    %v3251 = vmul.f32 %v3239, %v2984
    %v3252 = vmul.f32 %v3235, %v2985
    %v3253 = vmul.f32 %v3239, %v2986
    %v3254 = vmul.f32 %v3235, %v2987
    %v3255 = vmul.f32 %v3239, %v2988
    %v3256 = vmul.f32 %v3235, %v2989
    %v3257 = vmul.f32 %v3239, %v2990
    %v3258 = vmul.f32 %v3235, %v2991
    %v3259 = vmul.f32 %v3239, %v2992
    %v3260 = vmul.f32 %v3235, %v2993
    %v3261 = vmul.f32 %v3239, %v2994
    %v3262 = vmul.f32 %v3235, %v2995
    %v3263 = vmul.f32 %v3239, %v2996
    %v3264 = vmul.f32 %v3235, %v2997
    %v3265 = vmul.f32 %v3239, %v2998
    %v3266 = vmul.f32 %v3235, %v2999
    %v3267 = vmul.f32 %v3239, %v3000
    %v3268 = vmul.f32 %v3235, %v3001
    %v3269 = vmul.f32 %v3239, %v3002
    %v3270 = vmul.f32 %v3235, %v3003
    %v3271 = vmul.f32 %v3239, %v3004
    %v3272 = vmul.f32 %v3235, %v3005
    %v3273 = vmul.f32 %v3239, %v3006
    %v3274 = vmul.f32 %v3235, %v3007
    %v3275 = vmul.f32 %v3239, %v3008
    %v3276 = vmul.f32 %v3235, %v3009
    %v3277 = vmul.f32 %v3239, %v3010
    %v3278 = vmul.f32 %v3235, %v3011
    %v3279 = vmul.f32 %v3239, %v3012
    %v3280 = vmul.f32 %v3235, %v3013
    %v3281 = vmul.f32 %v3239, %v3014
    %v3282 = vmul.f32 %v3235, %v3015
    %v3283 = vmul.f32 %v3239, %v3016
    %v3284 = vmul.f32 %v3235, %v3017
    %v3285 = vmul.f32 %v3239, %v3018
    %v3286 = vmul.f32 %v3235, %v3019
    %v3287 = vmul.f32 %v3239, %v3020
    %v3288 = vmul.f32 %v3235, %v3021
    %v3289 = vmul.f32 %v3239, %v3022
    %v3290 = vmul.f32 %v3235, %v3023
    %v3291 = vmul.f32 %v3239, %v3024
    %v3292 = vmul.f32 %v3235, %v3025
    %v3293 = vmul.f32 %v3239, %v3026
    %v3294 = vmul.f32 %v3235, %v3027
    %v3295 = vmul.f32 %v3239, %v3028
    %v3296 = vmul.f32 %v3235, %v3029
    %v3297 = vmul.f32 %v3239, %v3030
    %v3298 = vmul.f32 %v3235, %v3031
    %v3299 = vmul.f32 %v3239, %v3032
    %v3300 = vmul.f32 %v3235, %v3033
    %v3301 = vmul.f32 %v3239, %v3034
    %v3302 = vmul.f32 %v3235, %v3035
    %v3303 = vmul.f32 %v3239, %v3036
    %v3304 = vmul.f32 %v3235, %v3037
    %v3305 = vmul.f32 %v3239, %v3038
    %v3306 = vmul.f32 %v3235, %v3039
    %v3307 = vmul.f32 %v3239, %v3040
    %v3308 = vmul.f32 %v3235, %v3041
    %v3309 = vmul.f32 %v3239, %v3042
    %v3310 = vmul.f32 %v3235, %v3043
    %v3311 = vmul.f32 %v3239, %v3044
    %v3312 = vmul.f32 %v3235, %v3045
    %v3313 = vmul.f32 %v3239, %v3046
    %v3314 = vmul.f32 %v3235, %v3047
    %v3315 = vmul.f32 %v3239, %v3048
    %v3316 = vmul.f32 %v3235, %v3049
    %v3317 = vmul.f32 %v3239, %v3050
    %v3318 = vmul.f32 %v3235, %v3051
    %v3319 = vmul.f32 %v3239, %v3052
    %v3320 = vmul.f32 %v3235, %v3053
    %v3321 = vmul.f32 %v3239, %v3054
    %v3322 = vmul.f32 %v3235, %v3055
    %v3323 = vmul.f32 %v3239, %v3056
    %v3324 = vmul.f32 %v3235, %v3057
    %v3325 = vmul.f32 %v3239, %v3058
    %v3326 = vmul.f32 %v3235, %v3059
    %v3327 = vmul.f32 %v3239, %v3060
    %v3328 = vmul.f32 %v3235, %v3061
    %v3329 = vmul.f32 %v3239, %v3062
    %v3330 = vmul.f32 %v3235, %v3063
    %v3331 = vmul.f32 %v3239, %v3064
    %v3332 = vmul.f32 %v3235, %v3065
    %v3333 = vmul.f32 %v3239, %v3066
    %v3334 = vmul.f32 %v3235, %v3067
    %v3335 = vmul.f32 %v3239, %v3068
    %v3336 = vmul.f32 %v3235, %v3069
    %v3337 = vmul.f32 %v3239, %v3070
    %v3338 = vmul.f32 %v3235, %v3071
    %v3339 = vmul.f32 %v3239, %v3072
    %v3340 = vmul.f32 %v3235, %v3073
    %v3341 = vmul.f32 %v3239, %v3074
    %v3342 = vmul.f32 %v3235, %v3075
    %v3343 = vmul.f32 %v3239, %v3076
    %v3344 = vmul.f32 %v3235, %v3077
    %v3345 = vmul.f32 %v3239, %v3078
    %v3346 = vmul.f32 %v3235, %v3079
    %v3347 = vmul.f32 %v3239, %v3080
    %v3348 = vmul.f32 %v3235, %v3081
    %v3349 = vmul.f32 %v3239, %v3082
    %v3350 = vmul.f32 %v3235, %v3083
    %v3351 = vmul.f32 %v3239, %v3084
    %v3352 = vmul.f32 %v3235, %v3085
    %v3353 = vmul.f32 %v3239, %v3086
    %v3354 = vmul.f32 %v3235, %v3087
    %v3355 = vmul.f32 %v3239, %v3088
    %v3356 = vmul.f32 %v3235, %v3089
    %v3357 = vmul.f32 %v3239, %v3090
    %v3358 = vmul.f32 %v3235, %v3091
    %v3359 = vmul.f32 %v3239, %v3092
    %v3360 = vmul.f32 %v3235, %v3093
    %v3361 = vmul.f32 %v3239, %v3094
    %v3362 = vmul.f32 %v3235, %v3095
    %v3363 = vmul.f32 %v3239, %v3096
    %v3364 = vmul.f32 %v3235, %v3097
    %v3365 = vmul.f32 %v3239, %v3098
    %v3366 = vmul.f32 %v3235, %v3099
    %v3367 = vmul.f32 %v3239, %v3100
    %v3368 = vmul.f32 %v3235, %v3101
    %v3369 = vmul.f32 %v3239, %v3102
    %v3370 = vmul.f32 %v3235, %v3103
    %v3371 = vmul.f32 %v3239, %v3104
    %v3372 = vmul.f32 %v3235, %v3105
    %v3373 = vmul.f32 %v3239, %v3106
    %v3374 = vmul.f32 %v3235, %v3107
    %v3375 = vmul.f32 %v3239, %v3108
    %v3376 = vmul.f32 %v3235, %v3109
    %v3377 = vmul.f32 %v3239, %v3110
    %v3378 = vmul.f32 %v3235, %v3111
    %v3379 = vmul.f32 %v3239, %v3112
    %v3380 = vmul.f32 %v3235, %v3113
    %v3381 = vmul.f32 %v3239, %v3114
    %v3382 = vmul.f32 %v3235, %v3115
    %v3383 = vmul.f32 %v3239, %v3116
    %v3384 = vmul.f32 %v3235, %v3117
    %v3385 = vmul.f32 %v3239, %v3118
    %v3386 = vmul.f32 %v3235, %v3119
    %v3387 = vmul.f32 %v3239, %v3120
    %v3388 = vmul.f32 %v3235, %v3121
    %v3389 = vmul.f32 %v3239, %v3122
    %v3390 = vmul.f32 %v3235, %v3123
    %v3391 = vmul.f32 %v3239, %v3124
    %v3392 = vmul.f32 %v3235, %v3125
    %v3393 = vmul.f32 %v3239, %v3126
    %v3394 = vmul.f32 %v3235, %v3127
    %v3395 = vmul.f32 %v3239, %v3128
    %v3396 = vmul.f32 %v3235, %v3129
    %v3397 = vmul.f32 %v3239, %v3130
    %v3398 = vmul.f32 %v3235, %v3131
    %v3399 = vmul.f32 %v3239, %v3132
    %v3400 = vmul.f32 %v3235, %v3133
    %v3401 = vmul.f32 %v3239, %v3134
    %v3402 = vmul.f32 %v3235, %v3135
    %v3403 = vmul.f32 %v3239, %v3136
    %v3404 = vmul.f32 %v3235, %v3137
    %v3405 = vmul.f32 %v3239, %v3138
    %v3406 = vmul.f32 %v3235, %v3139
    %v3407 = vmul.f32 %v3239, %v3140
    %v3408 = vmul.f32 %v3235, %v3141
    %v3409 = vmul.f32 %v3239, %v3142
    %v3410 = vmul.f32 %v3235, %v3143
    %v3411 = vmul.f32 %v3239, %v3144
    %v3412 = vmul.f32 %v3235, %v3145
    %v3413 = vmul.f32 %v3239, %v3146
    %v3414 = vmul.f32 %v3235, %v3147
    %v3415 = vmul.f32 %v3239, %v3148
    %v3416 = vmul.f32 %v3235, %v3149
    %v3417 = vmul.f32 %v3239, %v3150
    %v3418 = vmul.f32 %v3235, %v3151
    %v3419 = vmul.f32 %v3239, %v3152
    %v3420 = vmul.f32 %v3235, %v3153
    %v3421 = vmul.f32 %v3239, %v3154
    %v3422 = vmul.f32 %v3235, %v3155
    %v3423 = vmul.f32 %v3239, %v3156
    %v3424 = vmul.f32 %v3235, %v3157
    %v3425 = vmul.f32 %v3239, %v3158
    %v3426 = vmul.f32 %v3235, %v3159
    %v3427 = vmul.f32 %v3239, %v3160
    %v3428 = vmul.f32 %v3235, %v3161
    %v3429 = vmul.f32 %v3239, %v3162
    %v3430 = vmul.f32 %v3235, %v3163
    %v3431 = vmul.f32 %v3239, %v3164
    %v3432 = vmul.f32 %v3235, %v3165
    %v3433 = vmul.f32 %v3239, %v3166
    %v3434 = vmul.f32 %v3235, %v3167
    %v3435 = vmul.f32 %v3239, %v3168
    %v3436 = vmul.f32 %v3235, %v3169
    %v3437 = vmul.f32 %v3239, %v3170
    %v3438 = vmul.f32 %v3235, %v3171
    %v3439 = vmul.f32 %v3239, %v3172
    %v3440 = vmul.f32 %v3235, %v3173
    %v3441 = vmul.f32 %v3239, %v3174
    %v3442 = vmul.f32 %v3235, %v3175
    %v3443 = vmul.f32 %v3239, %v3176
    %v3444 = vmul.f32 %v3235, %v3177
    %v3445 = vmul.f32 %v3239, %v3178
    %v3446 = vmul.f32 %v3235, %v3179
    %v3447 = vmul.f32 %v3239, %v3180
    %v3448 = vmul.f32 %v3235, %v3181
    %v3449 = vmul.f32 %v3239, %v3182
    %v3450 = vmul.f32 %v3235, %v3183
    %v3451 = vmul.f32 %v3239, %v3184
    %v3452 = vmul.f32 %v3235, %v3185
    %v3453 = vmul.f32 %v3239, %v3186
    %v3454 = vmul.f32 %v3235, %v3187
    %v3455 = vmul.f32 %v3239, %v3188
    %v3456 = vmul.f32 %v3235, %v3189
    %v3457 = vmul.f32 %v3239, %v3190
    %v3458 = vmul.f32 %v3235, %v3191
    %v3459 = vmul.f32 %v3239, %v3192
    %v3460 = vmul.f32 %v3235, %v3193
    %v3461 = vmul.f32 %v3239, %v3194
    %v3462 = vmul.f32 %v3235, %v3195
    %v3463 = vmul.f32 %v3239, %v3196
    %v3464 = vmul.f32 %v3235, %v3197
    %v3465 = vmul.f32 %v3239, %v3198
    %v3466 = vmul.f32 %v3235, %v3199
    %v3467 = vmul.f32 %v3239, %v3200
    %v3468 = vmul.f32 %v3235, %v3201
    %v3469 = vmul.f32 %v3239, %v3202
    %v3470 = vmul.f32 %v3235, %v3203
    %v3471 = vmul.f32 %v3239, %v3204
    %v3472 = vmul.f32 %v3235, %v3205
    %v3473 = vmul.f32 %v3239, %v3206
    %v3474 = vmul.f32 %v3235, %v3207
    %v3475 = vmul.f32 %v3239, %v3208
    %v3476 = vmul.f32 %v3235, %v3209
    %v3477 = vmul.f32 %v3239, %v3210
    %v3478 = vmul.f32 %v3235, %v3211
    %v3479 = vmul.f32 %v3239, %v3212
    %v3480 = vmul.f32 %v3235, %v3213
    %v3481 = vmul.f32 %v3239, %v3214
    %v3482 = vmul.f32 %v3235, %v3215
    %v3483 = vmul.f32 %v3239, %v3216
    %v3484 = vmul.f32 %v3235, %v3217
    %v3485 = vmul.f32 %v3239, %v3218
    %v3486 = vmul.f32 %v3235, %v3219
    %v3487 = vmul.f32 %v3239, %v3220
    %v3488 = vmul.f32 %v3235, %v3221
    %v3489 = vmul.f32 %v3239, %v3222
    %v3490 = vmul.f32 %v3235, %v3223
    %v3491 = vmul.f32 %v3239, %v3224
    %v3492 = vmul.f32 %v3235, %v3225
    %v3493 = vmul.f32 %v3239, %v3226
    %v3494 = vmul.f32 %v3235, %v3227
    %v3495 = vmul.f32 %v3239, %v3228
    %v3496 = vmul.f32 %v3235, %v3229
    %v3497 = vmul.f32 %v3239, %v3230
    %v3498 = vld [vmem:[%s2] sm:$0x3]
    %v3500 = vlaneseq
    %v3501 = vshrl.u32 %v3500, 7
    %v3502 = vsub.s32 0, %v3501
    %v3503 = vrot.slane %v3498, %v3502
    %v3504 = vlaneseq
    %v3505 = vshrl.u32 %v3504, 7
    %v3506 = vsub.s32 1, %v3505
    %v3507 = vrot.slane %v3498, %v3506
    %v3510 = vadd.f32 %v3242, %v3503
    %v3511 = vadd.f32 %v3243, %v3507
    %v3512 = vadd.f32 %v3244, %v3503
    %v3513 = vadd.f32 %v3245, %v3507
    %v3514 = vadd.f32 %v3246, %v3503
    %v3515 = vadd.f32 %v3247, %v3507
    %v3516 = vadd.f32 %v3248, %v3503
    %v3517 = vadd.f32 %v3249, %v3507
    %v3518 = vadd.f32 %v3250, %v3503
    %v3519 = vadd.f32 %v3251, %v3507
    %v3520 = vadd.f32 %v3252, %v3503
    %v3521 = vadd.f32 %v3253, %v3507
    %v3522 = vadd.f32 %v3254, %v3503
    %v3523 = vadd.f32 %v3255, %v3507
    %v3524 = vadd.f32 %v3256, %v3503
    %v3525 = vadd.f32 %v3257, %v3507
    %v3526 = vadd.f32 %v3258, %v3503
    %v3527 = vadd.f32 %v3259, %v3507
    %v3528 = vadd.f32 %v3260, %v3503
    %v3529 = vadd.f32 %v3261, %v3507
    %v3530 = vadd.f32 %v3262, %v3503
    %v3531 = vadd.f32 %v3263, %v3507
    %v3532 = vadd.f32 %v3264, %v3503
    %v3533 = vadd.f32 %v3265, %v3507
    %v3534 = vadd.f32 %v3266, %v3503
    %v3535 = vadd.f32 %v3267, %v3507
    %v3536 = vadd.f32 %v3268, %v3503
    %v3537 = vadd.f32 %v3269, %v3507
    %v3538 = vadd.f32 %v3270, %v3503
    %v3539 = vadd.f32 %v3271, %v3507
    %v3540 = vadd.f32 %v3272, %v3503
    %v3541 = vadd.f32 %v3273, %v3507
    %v3542 = vadd.f32 %v3274, %v3503
    %v3543 = vadd.f32 %v3275, %v3507
    %v3544 = vadd.f32 %v3276, %v3503
    %v3545 = vadd.f32 %v3277, %v3507
    %v3546 = vadd.f32 %v3278, %v3503
    %v3547 = vadd.f32 %v3279, %v3507
    %v3548 = vadd.f32 %v3280, %v3503
    %v3549 = vadd.f32 %v3281, %v3507
    %v3550 = vadd.f32 %v3282, %v3503
    %v3551 = vadd.f32 %v3283, %v3507
    %v3552 = vadd.f32 %v3284, %v3503
    %v3553 = vadd.f32 %v3285, %v3507
    %v3554 = vadd.f32 %v3286, %v3503
    %v3555 = vadd.f32 %v3287, %v3507
    %v3556 = vadd.f32 %v3288, %v3503
    %v3557 = vadd.f32 %v3289, %v3507
    %v3558 = vadd.f32 %v3290, %v3503
    %v3559 = vadd.f32 %v3291, %v3507
    %v3560 = vadd.f32 %v3292, %v3503
    %v3561 = vadd.f32 %v3293, %v3507
    %v3562 = vadd.f32 %v3294, %v3503
    %v3563 = vadd.f32 %v3295, %v3507
    %v3564 = vadd.f32 %v3296, %v3503
    %v3565 = vadd.f32 %v3297, %v3507
    %v3566 = vadd.f32 %v3298, %v3503
    %v3567 = vadd.f32 %v3299, %v3507
    %v3568 = vadd.f32 %v3300, %v3503
    %v3569 = vadd.f32 %v3301, %v3507
    %v3570 = vadd.f32 %v3302, %v3503
    %v3571 = vadd.f32 %v3303, %v3507
    %v3572 = vadd.f32 %v3304, %v3503
    %v3573 = vadd.f32 %v3305, %v3507
    %v3574 = vadd.f32 %v3306, %v3503
    %v3575 = vadd.f32 %v3307, %v3507
    %v3576 = vadd.f32 %v3308, %v3503
    %v3577 = vadd.f32 %v3309, %v3507
    %v3578 = vadd.f32 %v3310, %v3503
    %v3579 = vadd.f32 %v3311, %v3507
    %v3580 = vadd.f32 %v3312, %v3503
    %v3581 = vadd.f32 %v3313, %v3507
    %v3582 = vadd.f32 %v3314, %v3503
    %v3583 = vadd.f32 %v3315, %v3507
    %v3584 = vadd.f32 %v3316, %v3503
    %v3585 = vadd.f32 %v3317, %v3507
    %v3586 = vadd.f32 %v3318, %v3503
    %v3587 = vadd.f32 %v3319, %v3507
    %v3588 = vadd.f32 %v3320, %v3503
    %v3589 = vadd.f32 %v3321, %v3507
    %v3590 = vadd.f32 %v3322, %v3503
    %v3591 = vadd.f32 %v3323, %v3507
    %v3592 = vadd.f32 %v3324, %v3503
    %v3593 = vadd.f32 %v3325, %v3507
    %v3594 = vadd.f32 %v3326, %v3503
    %v3595 = vadd.f32 %v3327, %v3507
    %v3596 = vadd.f32 %v3328, %v3503
    %v3597 = vadd.f32 %v3329, %v3507
    %v3598 = vadd.f32 %v3330, %v3503
    %v3599 = vadd.f32 %v3331, %v3507
    %v3600 = vadd.f32 %v3332, %v3503
    %v3601 = vadd.f32 %v3333, %v3507
    %v3602 = vadd.f32 %v3334, %v3503
    %v3603 = vadd.f32 %v3335, %v3507
    %v3604 = vadd.f32 %v3336, %v3503
    %v3605 = vadd.f32 %v3337, %v3507
    %v3606 = vadd.f32 %v3338, %v3503
    %v3607 = vadd.f32 %v3339, %v3507
    %v3608 = vadd.f32 %v3340, %v3503
    %v3609 = vadd.f32 %v3341, %v3507
    %v3610 = vadd.f32 %v3342, %v3503
    %v3611 = vadd.f32 %v3343, %v3507
    %v3612 = vadd.f32 %v3344, %v3503
    %v3613 = vadd.f32 %v3345, %v3507
    %v3614 = vadd.f32 %v3346, %v3503
    %v3615 = vadd.f32 %v3347, %v3507
    %v3616 = vadd.f32 %v3348, %v3503
    %v3617 = vadd.f32 %v3349, %v3507
    %v3618 = vadd.f32 %v3350, %v3503
    %v3619 = vadd.f32 %v3351, %v3507
    %v3620 = vadd.f32 %v3352, %v3503
    %v3621 = vadd.f32 %v3353, %v3507
    %v3622 = vadd.f32 %v3354, %v3503
    %v3623 = vadd.f32 %v3355, %v3507
    %v3624 = vadd.f32 %v3356, %v3503
    %v3625 = vadd.f32 %v3357, %v3507
    %v3626 = vadd.f32 %v3358, %v3503
    %v3627 = vadd.f32 %v3359, %v3507
    %v3628 = vadd.f32 %v3360, %v3503
    %v3629 = vadd.f32 %v3361, %v3507
    %v3630 = vadd.f32 %v3362, %v3503
    %v3631 = vadd.f32 %v3363, %v3507
    %v3632 = vadd.f32 %v3364, %v3503
    %v3633 = vadd.f32 %v3365, %v3507
    %v3634 = vadd.f32 %v3366, %v3503
    %v3635 = vadd.f32 %v3367, %v3507
    %v3636 = vadd.f32 %v3368, %v3503
    %v3637 = vadd.f32 %v3369, %v3507
    %v3638 = vadd.f32 %v3370, %v3503
    %v3639 = vadd.f32 %v3371, %v3507
    %v3640 = vadd.f32 %v3372, %v3503
    %v3641 = vadd.f32 %v3373, %v3507
    %v3642 = vadd.f32 %v3374, %v3503
    %v3643 = vadd.f32 %v3375, %v3507
    %v3644 = vadd.f32 %v3376, %v3503
    %v3645 = vadd.f32 %v3377, %v3507
    %v3646 = vadd.f32 %v3378, %v3503
    %v3647 = vadd.f32 %v3379, %v3507
    %v3648 = vadd.f32 %v3380, %v3503
    %v3649 = vadd.f32 %v3381, %v3507
    %v3650 = vadd.f32 %v3382, %v3503
    %v3651 = vadd.f32 %v3383, %v3507
    %v3652 = vadd.f32 %v3384, %v3503
    %v3653 = vadd.f32 %v3385, %v3507
    %v3654 = vadd.f32 %v3386, %v3503
    %v3655 = vadd.f32 %v3387, %v3507
    %v3656 = vadd.f32 %v3388, %v3503
    %v3657 = vadd.f32 %v3389, %v3507
    %v3658 = vadd.f32 %v3390, %v3503
    %v3659 = vadd.f32 %v3391, %v3507
    %v3660 = vadd.f32 %v3392, %v3503
    %v3661 = vadd.f32 %v3393, %v3507
    %v3662 = vadd.f32 %v3394, %v3503
    %v3663 = vadd.f32 %v3395, %v3507
    %v3664 = vadd.f32 %v3396, %v3503
    %v3665 = vadd.f32 %v3397, %v3507
    %v3666 = vadd.f32 %v3398, %v3503
    %v3667 = vadd.f32 %v3399, %v3507
    %v3668 = vadd.f32 %v3400, %v3503
    %v3669 = vadd.f32 %v3401, %v3507
    %v3670 = vadd.f32 %v3402, %v3503
    %v3671 = vadd.f32 %v3403, %v3507
    %v3672 = vadd.f32 %v3404, %v3503
    %v3673 = vadd.f32 %v3405, %v3507
    %v3674 = vadd.f32 %v3406, %v3503
    %v3675 = vadd.f32 %v3407, %v3507
    %v3676 = vadd.f32 %v3408, %v3503
    %v3677 = vadd.f32 %v3409, %v3507
    %v3678 = vadd.f32 %v3410, %v3503
    %v3679 = vadd.f32 %v3411, %v3507
    %v3680 = vadd.f32 %v3412, %v3503
    %v3681 = vadd.f32 %v3413, %v3507
    %v3682 = vadd.f32 %v3414, %v3503
    %v3683 = vadd.f32 %v3415, %v3507
    %v3684 = vadd.f32 %v3416, %v3503
    %v3685 = vadd.f32 %v3417, %v3507
    %v3686 = vadd.f32 %v3418, %v3503
    %v3687 = vadd.f32 %v3419, %v3507
    %v3688 = vadd.f32 %v3420, %v3503
    %v3689 = vadd.f32 %v3421, %v3507
    %v3690 = vadd.f32 %v3422, %v3503
    %v3691 = vadd.f32 %v3423, %v3507
    %v3692 = vadd.f32 %v3424, %v3503
    %v3693 = vadd.f32 %v3425, %v3507
    %v3694 = vadd.f32 %v3426, %v3503
    %v3695 = vadd.f32 %v3427, %v3507
    %v3696 = vadd.f32 %v3428, %v3503
    %v3697 = vadd.f32 %v3429, %v3507
    %v3698 = vadd.f32 %v3430, %v3503
    %v3699 = vadd.f32 %v3431, %v3507
    %v3700 = vadd.f32 %v3432, %v3503
    %v3701 = vadd.f32 %v3433, %v3507
    %v3702 = vadd.f32 %v3434, %v3503
    %v3703 = vadd.f32 %v3435, %v3507
    %v3704 = vadd.f32 %v3436, %v3503
    %v3705 = vadd.f32 %v3437, %v3507
    %v3706 = vadd.f32 %v3438, %v3503
    %v3707 = vadd.f32 %v3439, %v3507
    %v3708 = vadd.f32 %v3440, %v3503
    %v3709 = vadd.f32 %v3441, %v3507
    %v3710 = vadd.f32 %v3442, %v3503
    %v3711 = vadd.f32 %v3443, %v3507
    %v3712 = vadd.f32 %v3444, %v3503
    %v3713 = vadd.f32 %v3445, %v3507
    %v3714 = vadd.f32 %v3446, %v3503
    %v3715 = vadd.f32 %v3447, %v3507
    %v3716 = vadd.f32 %v3448, %v3503
    %v3717 = vadd.f32 %v3449, %v3507
    %v3718 = vadd.f32 %v3450, %v3503
    %v3719 = vadd.f32 %v3451, %v3507
    %v3720 = vadd.f32 %v3452, %v3503
    %v3721 = vadd.f32 %v3453, %v3507
    %v3722 = vadd.f32 %v3454, %v3503
    %v3723 = vadd.f32 %v3455, %v3507
    %v3724 = vadd.f32 %v3456, %v3503
    %v3725 = vadd.f32 %v3457, %v3507
    %v3726 = vadd.f32 %v3458, %v3503
    %v3727 = vadd.f32 %v3459, %v3507
    %v3728 = vadd.f32 %v3460, %v3503
    %v3729 = vadd.f32 %v3461, %v3507
    %v3730 = vadd.f32 %v3462, %v3503
    %v3731 = vadd.f32 %v3463, %v3507
    %v3732 = vadd.f32 %v3464, %v3503
    %v3733 = vadd.f32 %v3465, %v3507
    %v3734 = vadd.f32 %v3466, %v3503
    %v3735 = vadd.f32 %v3467, %v3507
    %v3736 = vadd.f32 %v3468, %v3503
    %v3737 = vadd.f32 %v3469, %v3507
    %v3738 = vadd.f32 %v3470, %v3503
    %v3739 = vadd.f32 %v3471, %v3507
    %v3740 = vadd.f32 %v3472, %v3503
    %v3741 = vadd.f32 %v3473, %v3507
    %v3742 = vadd.f32 %v3474, %v3503
    %v3743 = vadd.f32 %v3475, %v3507
    %v3744 = vadd.f32 %v3476, %v3503
    %v3745 = vadd.f32 %v3477, %v3507
    %v3746 = vadd.f32 %v3478, %v3503
    %v3747 = vadd.f32 %v3479, %v3507
    %v3748 = vadd.f32 %v3480, %v3503
    %v3749 = vadd.f32 %v3481, %v3507
    %v3750 = vadd.f32 %v3482, %v3503
    %v3751 = vadd.f32 %v3483, %v3507
    %v3752 = vadd.f32 %v3484, %v3503
    %v3753 = vadd.f32 %v3485, %v3507
    %v3754 = vadd.f32 %v3486, %v3503
    %v3755 = vadd.f32 %v3487, %v3507
    %v3756 = vadd.f32 %v3488, %v3503
    %v3757 = vadd.f32 %v3489, %v3507
    %v3758 = vadd.f32 %v3490, %v3503
    %v3759 = vadd.f32 %v3491, %v3507
    %v3760 = vadd.f32 %v3492, %v3503
    %v3761 = vadd.f32 %v3493, %v3507
    %v3762 = vadd.f32 %v3494, %v3503
    %v3763 = vadd.f32 %v3495, %v3507
    %v3764 = vadd.f32 %v3496, %v3503
    %v3765 = vadd.f32 %v3497, %v3507
    %3766 = vst [vmem:[#allocation5] sm:$0xff] %v3510
    %3767 = vst [vmem:[#allocation5 + $0x8] sm:$0xff] %v3511
    %3768 = vst [vmem:[#allocation5 + $0x10] sm:$0xff] %v3512
    %3769 = vst [vmem:[#allocation5 + $0x18] sm:$0xff] %v3513
    %3770 = vst [vmem:[#allocation5 + $0x20] sm:$0xff] %v3514
    %3771 = vst [vmem:[#allocation5 + $0x28] sm:$0xff] %v3515
    %3772 = vst [vmem:[#allocation5 + $0x30] sm:$0xff] %v3516
    %3773 = vst [vmem:[#allocation5 + $0x38] sm:$0xff] %v3517
    %3774 = vst [vmem:[#allocation5 + $0x40] sm:$0xff] %v3518
    %3775 = vst [vmem:[#allocation5 + $0x48] sm:$0xff] %v3519
    %3776 = vst [vmem:[#allocation5 + $0x50] sm:$0xff] %v3520
    %3777 = vst [vmem:[#allocation5 + $0x58] sm:$0xff] %v3521
    %3778 = vst [vmem:[#allocation5 + $0x60] sm:$0xff] %v3522
    %3779 = vst [vmem:[#allocation5 + $0x68] sm:$0xff] %v3523
    %3780 = vst [vmem:[#allocation5 + $0x70] sm:$0xff] %v3524
    %3781 = vst [vmem:[#allocation5 + $0x78] sm:$0xff] %v3525
    %3782 = vst [vmem:[#allocation5 + $0x80] sm:$0xff] %v3526
    %3783 = vst [vmem:[#allocation5 + $0x88] sm:$0xff] %v3527
    %3784 = vst [vmem:[#allocation5 + $0x90] sm:$0xff] %v3528
    %3785 = vst [vmem:[#allocation5 + $0x98] sm:$0xff] %v3529
    %3786 = vst [vmem:[#allocation5 + $0xa0] sm:$0xff] %v3530
    %3787 = vst [vmem:[#allocation5 + $0xa8] sm:$0xff] %v3531
    %3788 = vst [vmem:[#allocation5 + $0xb0] sm:$0xff] %v3532
    %3789 = vst [vmem:[#allocation5 + $0xb8] sm:$0xff] %v3533
    %3790 = vst [vmem:[#allocation5 + $0xc0] sm:$0xff] %v3534
    %3791 = vst [vmem:[#allocation5 + $0xc8] sm:$0xff] %v3535
    %3792 = vst [vmem:[#allocation5 + $0xd0] sm:$0xff] %v3536
    %3793 = vst [vmem:[#allocation5 + $0xd8] sm:$0xff] %v3537
    %3794 = vst [vmem:[#allocation5 + $0xe0] sm:$0xff] %v3538
    %3795 = vst [vmem:[#allocation5 + $0xe8] sm:$0xff] %v3539
    %3796 = vst [vmem:[#allocation5 + $0xf0] sm:$0xff] %v3540
    %3797 = vst [vmem:[#allocation5 + $0xf8] sm:$0xff] %v3541
    %3798 = vst [vmem:[#allocation5 + $0x100] sm:$0xff] %v3542
    %3799 = vst [vmem:[#allocation5 + $0x108] sm:$0xff] %v3543
    %3800 = vst [vmem:[#allocation5 + $0x110] sm:$0xff] %v3544
    %3801 = vst [vmem:[#allocation5 + $0x118] sm:$0xff] %v3545
    %3802 = vst [vmem:[#allocation5 + $0x120] sm:$0xff] %v3546
    %3803 = vst [vmem:[#allocation5 + $0x128] sm:$0xff] %v3547
    %3804 = vst [vmem:[#allocation5 + $0x130] sm:$0xff] %v3548
    %3805 = vst [vmem:[#allocation5 + $0x138] sm:$0xff] %v3549
    %3806 = vst [vmem:[#allocation5 + $0x140] sm:$0xff] %v3550
    %3807 = vst [vmem:[#allocation5 + $0x148] sm:$0xff] %v3551
    %3808 = vst [vmem:[#allocation5 + $0x150] sm:$0xff] %v3552
    %3809 = vst [vmem:[#allocation5 + $0x158] sm:$0xff] %v3553
    %3810 = vst [vmem:[#allocation5 + $0x160] sm:$0xff] %v3554
    %3811 = vst [vmem:[#allocation5 + $0x168] sm:$0xff] %v3555
    %3812 = vst [vmem:[#allocation5 + $0x170] sm:$0xff] %v3556
    %3813 = vst [vmem:[#allocation5 + $0x178] sm:$0xff] %v3557
    %3814 = vst [vmem:[#allocation5 + $0x180] sm:$0xff] %v3558
    %3815 = vst [vmem:[#allocation5 + $0x188] sm:$0xff] %v3559
    %3816 = vst [vmem:[#allocation5 + $0x190] sm:$0xff] %v3560
    %3817 = vst [vmem:[#allocation5 + $0x198] sm:$0xff] %v3561
    %3818 = vst [vmem:[#allocation5 + $0x1a0] sm:$0xff] %v3562
    %3819 = vst [vmem:[#allocation5 + $0x1a8] sm:$0xff] %v3563
    %3820 = vst [vmem:[#allocation5 + $0x1b0] sm:$0xff] %v3564
    %3821 = vst [vmem:[#allocation5 + $0x1b8] sm:$0xff] %v3565
    %3822 = vst [vmem:[#allocation5 + $0x1c0] sm:$0xff] %v3566
    %3823 = vst [vmem:[#allocation5 + $0x1c8] sm:$0xff] %v3567
    %3824 = vst [vmem:[#allocation5 + $0x1d0] sm:$0xff] %v3568
    %3825 = vst [vmem:[#allocation5 + $0x1d8] sm:$0xff] %v3569
    %3826 = vst [vmem:[#allocation5 + $0x1e0] sm:$0xff] %v3570
    %3827 = vst [vmem:[#allocation5 + $0x1e8] sm:$0xff] %v3571
    %3828 = vst [vmem:[#allocation5 + $0x1f0] sm:$0xff] %v3572
    %3829 = vst [vmem:[#allocation5 + $0x1f8] sm:$0xff] %v3573
    %3830 = vst [vmem:[#allocation5 + $0x200] sm:$0xff] %v3574
    %3831 = vst [vmem:[#allocation5 + $0x208] sm:$0xff] %v3575
    %3832 = vst [vmem:[#allocation5 + $0x210] sm:$0xff] %v3576
    %3833 = vst [vmem:[#allocation5 + $0x218] sm:$0xff] %v3577
    %3834 = vst [vmem:[#allocation5 + $0x220] sm:$0xff] %v3578
    %3835 = vst [vmem:[#allocation5 + $0x228] sm:$0xff] %v3579
    %3836 = vst [vmem:[#allocation5 + $0x230] sm:$0xff] %v3580
    %3837 = vst [vmem:[#allocation5 + $0x238] sm:$0xff] %v3581
    %3838 = vst [vmem:[#allocation5 + $0x240] sm:$0xff] %v3582
    %3839 = vst [vmem:[#allocation5 + $0x248] sm:$0xff] %v3583
    %3840 = vst [vmem:[#allocation5 + $0x250] sm:$0xff] %v3584
    %3841 = vst [vmem:[#allocation5 + $0x258] sm:$0xff] %v3585
    %3842 = vst [vmem:[#allocation5 + $0x260] sm:$0xff] %v3586
    %3843 = vst [vmem:[#allocation5 + $0x268] sm:$0xff] %v3587
    %3844 = vst [vmem:[#allocation5 + $0x270] sm:$0xff] %v3588
    %3845 = vst [vmem:[#allocation5 + $0x278] sm:$0xff] %v3589
    %3846 = vst [vmem:[#allocation5 + $0x280] sm:$0xff] %v3590
    %3847 = vst [vmem:[#allocation5 + $0x288] sm:$0xff] %v3591
    %3848 = vst [vmem:[#allocation5 + $0x290] sm:$0xff] %v3592
    %3849 = vst [vmem:[#allocation5 + $0x298] sm:$0xff] %v3593
    %3850 = vst [vmem:[#allocation5 + $0x2a0] sm:$0xff] %v3594
    %3851 = vst [vmem:[#allocation5 + $0x2a8] sm:$0xff] %v3595
    %3852 = vst [vmem:[#allocation5 + $0x2b0] sm:$0xff] %v3596
    %3853 = vst [vmem:[#allocation5 + $0x2b8] sm:$0xff] %v3597
    %3854 = vst [vmem:[#allocation5 + $0x2c0] sm:$0xff] %v3598
    %3855 = vst [vmem:[#allocation5 + $0x2c8] sm:$0xff] %v3599
    %3856 = vst [vmem:[#allocation5 + $0x2d0] sm:$0xff] %v3600
    %3857 = vst [vmem:[#allocation5 + $0x2d8] sm:$0xff] %v3601
    %3858 = vst [vmem:[#allocation5 + $0x2e0] sm:$0xff] %v3602
    %3859 = vst [vmem:[#allocation5 + $0x2e8] sm:$0xff] %v3603
    %3860 = vst [vmem:[#allocation5 + $0x2f0] sm:$0xff] %v3604
    %3861 = vst [vmem:[#allocation5 + $0x2f8] sm:$0xff] %v3605
    %3862 = vst [vmem:[#allocation5 + $0x300] sm:$0xff] %v3606
    %3863 = vst [vmem:[#allocation5 + $0x308] sm:$0xff] %v3607
    %3864 = vst [vmem:[#allocation5 + $0x310] sm:$0xff] %v3608
    %3865 = vst [vmem:[#allocation5 + $0x318] sm:$0xff] %v3609
    %3866 = vst [vmem:[#allocation5 + $0x320] sm:$0xff] %v3610
    %3867 = vst [vmem:[#allocation5 + $0x328] sm:$0xff] %v3611
    %3868 = vst [vmem:[#allocation5 + $0x330] sm:$0xff] %v3612
    %3869 = vst [vmem:[#allocation5 + $0x338] sm:$0xff] %v3613
    %3870 = vst [vmem:[#allocation5 + $0x340] sm:$0xff] %v3614
    %3871 = vst [vmem:[#allocation5 + $0x348] sm:$0xff] %v3615
    %3872 = vst [vmem:[#allocation5 + $0x350] sm:$0xff] %v3616
    %3873 = vst [vmem:[#allocation5 + $0x358] sm:$0xff] %v3617
    %3874 = vst [vmem:[#allocation5 + $0x360] sm:$0xff] %v3618
    %3875 = vst [vmem:[#allocation5 + $0x368] sm:$0xff] %v3619
    %3876 = vst [vmem:[#allocation5 + $0x370] sm:$0xff] %v3620
    %3877 = vst [vmem:[#allocation5 + $0x378] sm:$0xff] %v3621
    %3878 = vst [vmem:[#allocation5 + $0x380] sm:$0xff] %v3622
    %3879 = vst [vmem:[#allocation5 + $0x388] sm:$0xff] %v3623
    %3880 = vst [vmem:[#allocation5 + $0x390] sm:$0xff] %v3624
    %3881 = vst [vmem:[#allocation5 + $0x398] sm:$0xff] %v3625
    %3882 = vst [vmem:[#allocation5 + $0x3a0] sm:$0xff] %v3626
    %3883 = vst [vmem:[#allocation5 + $0x3a8] sm:$0xff] %v3627
    %3884 = vst [vmem:[#allocation5 + $0x3b0] sm:$0xff] %v3628
    %3885 = vst [vmem:[#allocation5 + $0x3b8] sm:$0xff] %v3629
    %3886 = vst [vmem:[#allocation5 + $0x3c0] sm:$0xff] %v3630
    %3887 = vst [vmem:[#allocation5 + $0x3c8] sm:$0xff] %v3631
    %3888 = vst [vmem:[#allocation5 + $0x3d0] sm:$0xff] %v3632
    %3889 = vst [vmem:[#allocation5 + $0x3d8] sm:$0xff] %v3633
    %3890 = vst [vmem:[#allocation5 + $0x3e0] sm:$0xff] %v3634
    %3891 = vst [vmem:[#allocation5 + $0x3e8] sm:$0xff] %v3635
    %3892 = vst [vmem:[#allocation5 + $0x3f0] sm:$0xff] %v3636
    %3893 = vst [vmem:[#allocation5 + $0x3f8] sm:$0xff] %v3637
    %3894 = vst [vmem:[#allocation5 + $0x400] sm:$0xff] %v3638
    %3895 = vst [vmem:[#allocation5 + $0x408] sm:$0xff] %v3639
    %3896 = vst [vmem:[#allocation5 + $0x410] sm:$0xff] %v3640
    %3897 = vst [vmem:[#allocation5 + $0x418] sm:$0xff] %v3641
    %3898 = vst [vmem:[#allocation5 + $0x420] sm:$0xff] %v3642
    %3899 = vst [vmem:[#allocation5 + $0x428] sm:$0xff] %v3643
    %3900 = vst [vmem:[#allocation5 + $0x430] sm:$0xff] %v3644
    %3901 = vst [vmem:[#allocation5 + $0x438] sm:$0xff] %v3645
    %3902 = vst [vmem:[#allocation5 + $0x440] sm:$0xff] %v3646
    %3903 = vst [vmem:[#allocation5 + $0x448] sm:$0xff] %v3647
    %3904 = vst [vmem:[#allocation5 + $0x450] sm:$0xff] %v3648
    %3905 = vst [vmem:[#allocation5 + $0x458] sm:$0xff] %v3649
    %3906 = vst [vmem:[#allocation5 + $0x460] sm:$0xff] %v3650
    %3907 = vst [vmem:[#allocation5 + $0x468] sm:$0xff] %v3651
    %3908 = vst [vmem:[#allocation5 + $0x470] sm:$0xff] %v3652
    %3909 = vst [vmem:[#allocation5 + $0x478] sm:$0xff] %v3653
    %3910 = vst [vmem:[#allocation5 + $0x480] sm:$0xff] %v3654
    %3911 = vst [vmem:[#allocation5 + $0x488] sm:$0xff] %v3655
    %3912 = vst [vmem:[#allocation5 + $0x490] sm:$0xff] %v3656
    %3913 = vst [vmem:[#allocation5 + $0x498] sm:$0xff] %v3657
    %3914 = vst [vmem:[#allocation5 + $0x4a0] sm:$0xff] %v3658
    %3915 = vst [vmem:[#allocation5 + $0x4a8] sm:$0xff] %v3659
    %3916 = vst [vmem:[#allocation5 + $0x4b0] sm:$0xff] %v3660
    %3917 = vst [vmem:[#allocation5 + $0x4b8] sm:$0xff] %v3661
    %3918 = vst [vmem:[#allocation5 + $0x4c0] sm:$0xff] %v3662
    %3919 = vst [vmem:[#allocation5 + $0x4c8] sm:$0xff] %v3663
    %3920 = vst [vmem:[#allocation5 + $0x4d0] sm:$0xff] %v3664
    %3921 = vst [vmem:[#allocation5 + $0x4d8] sm:$0xff] %v3665
    %3922 = vst [vmem:[#allocation5 + $0x4e0] sm:$0xff] %v3666
    %3923 = vst [vmem:[#allocation5 + $0x4e8] sm:$0xff] %v3667
    %3924 = vst [vmem:[#allocation5 + $0x4f0] sm:$0xff] %v3668
    %3925 = vst [vmem:[#allocation5 + $0x4f8] sm:$0xff] %v3669
    %3926 = vst [vmem:[#allocation5 + $0x500] sm:$0xff] %v3670
    %3927 = vst [vmem:[#allocation5 + $0x508] sm:$0xff] %v3671
    %3928 = vst [vmem:[#allocation5 + $0x510] sm:$0xff] %v3672
    %3929 = vst [vmem:[#allocation5 + $0x518] sm:$0xff] %v3673
    %3930 = vst [vmem:[#allocation5 + $0x520] sm:$0xff] %v3674
    %3931 = vst [vmem:[#allocation5 + $0x528] sm:$0xff] %v3675
    %3932 = vst [vmem:[#allocation5 + $0x530] sm:$0xff] %v3676
    %3933 = vst [vmem:[#allocation5 + $0x538] sm:$0xff] %v3677
    %3934 = vst [vmem:[#allocation5 + $0x540] sm:$0xff] %v3678
    %3935 = vst [vmem:[#allocation5 + $0x548] sm:$0xff] %v3679
    %3936 = vst [vmem:[#allocation5 + $0x550] sm:$0xff] %v3680
    %3937 = vst [vmem:[#allocation5 + $0x558] sm:$0xff] %v3681
    %3938 = vst [vmem:[#allocation5 + $0x560] sm:$0xff] %v3682
    %3939 = vst [vmem:[#allocation5 + $0x568] sm:$0xff] %v3683
    %3940 = vst [vmem:[#allocation5 + $0x570] sm:$0xff] %v3684
    %3941 = vst [vmem:[#allocation5 + $0x578] sm:$0xff] %v3685
    %3942 = vst [vmem:[#allocation5 + $0x580] sm:$0xff] %v3686
    %3943 = vst [vmem:[#allocation5 + $0x588] sm:$0xff] %v3687
    %3944 = vst [vmem:[#allocation5 + $0x590] sm:$0xff] %v3688
    %3945 = vst [vmem:[#allocation5 + $0x598] sm:$0xff] %v3689
    %3946 = vst [vmem:[#allocation5 + $0x5a0] sm:$0xff] %v3690
    %3947 = vst [vmem:[#allocation5 + $0x5a8] sm:$0xff] %v3691
    %3948 = vst [vmem:[#allocation5 + $0x5b0] sm:$0xff] %v3692
    %3949 = vst [vmem:[#allocation5 + $0x5b8] sm:$0xff] %v3693
    %3950 = vst [vmem:[#allocation5 + $0x5c0] sm:$0xff] %v3694
    %3951 = vst [vmem:[#allocation5 + $0x5c8] sm:$0xff] %v3695
    %3952 = vst [vmem:[#allocation5 + $0x5d0] sm:$0xff] %v3696
    %3953 = vst [vmem:[#allocation5 + $0x5d8] sm:$0xff] %v3697
    %3954 = vst [vmem:[#allocation5 + $0x5e0] sm:$0xff] %v3698
    %3955 = vst [vmem:[#allocation5 + $0x5e8] sm:$0xff] %v3699
    %3956 = vst [vmem:[#allocation5 + $0x5f0] sm:$0xff] %v3700
    %3957 = vst [vmem:[#allocation5 + $0x5f8] sm:$0xff] %v3701
    %3958 = vst [vmem:[#allocation5 + $0x600] sm:$0xff] %v3702
    %3959 = vst [vmem:[#allocation5 + $0x608] sm:$0xff] %v3703
    %3960 = vst [vmem:[#allocation5 + $0x610] sm:$0xff] %v3704
    %3961 = vst [vmem:[#allocation5 + $0x618] sm:$0xff] %v3705
    %3962 = vst [vmem:[#allocation5 + $0x620] sm:$0xff] %v3706
    %3963 = vst [vmem:[#allocation5 + $0x628] sm:$0xff] %v3707
    %3964 = vst [vmem:[#allocation5 + $0x630] sm:$0xff] %v3708
    %3965 = vst [vmem:[#allocation5 + $0x638] sm:$0xff] %v3709
    %3966 = vst [vmem:[#allocation5 + $0x640] sm:$0xff] %v3710
    %3967 = vst [vmem:[#allocation5 + $0x648] sm:$0xff] %v3711
    %3968 = vst [vmem:[#allocation5 + $0x650] sm:$0xff] %v3712
    %3969 = vst [vmem:[#allocation5 + $0x658] sm:$0xff] %v3713
    %3970 = vst [vmem:[#allocation5 + $0x660] sm:$0xff] %v3714
    %3971 = vst [vmem:[#allocation5 + $0x668] sm:$0xff] %v3715
    %3972 = vst [vmem:[#allocation5 + $0x670] sm:$0xff] %v3716
    %3973 = vst [vmem:[#allocation5 + $0x678] sm:$0xff] %v3717
    %3974 = vst [vmem:[#allocation5 + $0x680] sm:$0xff] %v3718
    %3975 = vst [vmem:[#allocation5 + $0x688] sm:$0xff] %v3719
    %3976 = vst [vmem:[#allocation5 + $0x690] sm:$0xff] %v3720
    %3977 = vst [vmem:[#allocation5 + $0x698] sm:$0xff] %v3721
    %3978 = vst [vmem:[#allocation5 + $0x6a0] sm:$0xff] %v3722
    %3979 = vst [vmem:[#allocation5 + $0x6a8] sm:$0xff] %v3723
    %3980 = vst [vmem:[#allocation5 + $0x6b0] sm:$0xff] %v3724
    %3981 = vst [vmem:[#allocation5 + $0x6b8] sm:$0xff] %v3725
    %3982 = vst [vmem:[#allocation5 + $0x6c0] sm:$0xff] %v3726
    %3983 = vst [vmem:[#allocation5 + $0x6c8] sm:$0xff] %v3727
    %3984 = vst [vmem:[#allocation5 + $0x6d0] sm:$0xff] %v3728
    %3985 = vst [vmem:[#allocation5 + $0x6d8] sm:$0xff] %v3729
    %3986 = vst [vmem:[#allocation5 + $0x6e0] sm:$0xff] %v3730
    %3987 = vst [vmem:[#allocation5 + $0x6e8] sm:$0xff] %v3731
    %3988 = vst [vmem:[#allocation5 + $0x6f0] sm:$0xff] %v3732
    %3989 = vst [vmem:[#allocation5 + $0x6f8] sm:$0xff] %v3733
    %3990 = vst [vmem:[#allocation5 + $0x700] sm:$0xff] %v3734
    %3991 = vst [vmem:[#allocation5 + $0x708] sm:$0xff] %v3735
    %3992 = vst [vmem:[#allocation5 + $0x710] sm:$0xff] %v3736
    %3993 = vst [vmem:[#allocation5 + $0x718] sm:$0xff] %v3737
    %3994 = vst [vmem:[#allocation5 + $0x720] sm:$0xff] %v3738
    %3995 = vst [vmem:[#allocation5 + $0x728] sm:$0xff] %v3739
    %3996 = vst [vmem:[#allocation5 + $0x730] sm:$0xff] %v3740
    %3997 = vst [vmem:[#allocation5 + $0x738] sm:$0xff] %v3741
    %3998 = vst [vmem:[#allocation5 + $0x740] sm:$0xff] %v3742
    %3999 = vst [vmem:[#allocation5 + $0x748] sm:$0xff] %v3743
    %4000 = vst [vmem:[#allocation5 + $0x750] sm:$0xff] %v3744
    %4001 = vst [vmem:[#allocation5 + $0x758] sm:$0xff] %v3745
    %4002 = vst [vmem:[#allocation5 + $0x760] sm:$0xff] %v3746
    %4003 = vst [vmem:[#allocation5 + $0x768] sm:$0xff] %v3747
    %4004 = vst [vmem:[#allocation5 + $0x770] sm:$0xff] %v3748
    %4005 = vst [vmem:[#allocation5 + $0x778] sm:$0xff] %v3749
    %4006 = vst [vmem:[#allocation5 + $0x780] sm:$0xff] %v3750
    %4007 = vst [vmem:[#allocation5 + $0x788] sm:$0xff] %v3751
    %4008 = vst [vmem:[#allocation5 + $0x790] sm:$0xff] %v3752
    %4009 = vst [vmem:[#allocation5 + $0x798] sm:$0xff] %v3753
    %4010 = vst [vmem:[#allocation5 + $0x7a0] sm:$0xff] %v3754
    %4011 = vst [vmem:[#allocation5 + $0x7a8] sm:$0xff] %v3755
    %4012 = vst [vmem:[#allocation5 + $0x7b0] sm:$0xff] %v3756
    %4013 = vst [vmem:[#allocation5 + $0x7b8] sm:$0xff] %v3757
    %4014 = vst [vmem:[#allocation5 + $0x7c0] sm:$0xff] %v3758
    %4015 = vst [vmem:[#allocation5 + $0x7c8] sm:$0xff] %v3759
    %4016 = vst [vmem:[#allocation5 + $0x7d0] sm:$0xff] %v3760
    %4017 = vst [vmem:[#allocation5 + $0x7d8] sm:$0xff] %v3761
    %4018 = vst [vmem:[#allocation5 + $0x7e0] sm:$0xff] %v3762
    %4019 = vst [vmem:[#allocation5 + $0x7e8] sm:$0xff] %v3763
    %4020 = vst [vmem:[#allocation5 + $0x7f0] sm:$0xff] %v3764
    %4021 = vst [vmem:[#allocation5 + $0x7f8] sm:$0xff] %v3765
    // Predicated region
    $region18: #{tpu_custom_call.1} parent=1 // pred_check
      _
    $region19: #{tpu_custom_call.1} parent=1 // pred_check_branch
      %4023 = sbr.rel (0) target = $region21
    $region20: #{tpu_custom_call.1} parent=1 // pred_region
      %s4025 = ssub.s32 32768, 32768
      %4026 = vsyncadd [#allocation4], %s4025
      %s4027 = sshll.u32 [#allocation5], 4
      %s4028 = int_to_ptr.vmem [resolvable:$true] %s4027
      %4033 = dma.vmem_to_hbm [thread:$0]  %s4028, 32768, %s3, [#allocation4], 256, 256, 16
    $region21: #{tpu_custom_call.1} parent=1 // pred_fallthru
      _
    // Predicated region
    $region22: #{tpu_custom_call.1} parent=1 // pred_check
      _
    $region23: #{tpu_custom_call.1} parent=1 // pred_check_branch
      %4035 = sbr.rel (0) target = $region25
    $region24: #{tpu_custom_call.1} parent=1 // pred_region
      %4036 = dma.done [#allocation4], 32768
    $region25: #{tpu_custom_call.1} parent=1 // pred_fallthru
      _
    %4037 = vsyncpa [#allocation3], 1
    %4038 = vsyncpa [#allocation4], 1

</llo_original>
